<compile_context>
chip_gen: v6e
topology: v6e:2x2x1
jax: 0.10.0
libtpu: 0.0.40
codegen_flags: <defaults>
</compile_context>

<pallas_src>
import functools

import jax
import jax.numpy as jnp
from jax.experimental import pallas as pl
from jax.experimental.pallas import tpu as pltpu


def dmpnn_kernel(lhs_ref, gdst_ref, sdst_ref, ssrc_ref, x_ref, pool_ref, cnt_ref,
                 wx_ref, we_ref, w1_ref, w2_ref, wfm_ref, wout_ref, vec_ref,
                 out_ref, h0_ref, *, steps, hidden, eps):
    bf = jnp.bfloat16
    f32 = jnp.float32

    e_blk = lhs_ref.shape[0]

    # packed per-layer vectors: [8, H] = [b_init; b1; b2; b_final; gamma; beta; 0; 0]
    b_init = vec_ref[0:1, :]
    b_final = vec_ref[3:4, :]
    gamma = vec_ref[4:5, :]
    beta = vec_ref[5:6, :]
    # hoist the bias broadcasts out of the unrolled step loop (JAX won't CSE them)
    b1 = jnp.broadcast_to(vec_ref[1:2, :], (e_blk, hidden))
    b2 = jnp.broadcast_to(vec_ref[2:3, :], (e_blk, hidden))

    # fused node-feature projection: xw = x @ [W_init_x | W_final_x]  -> [Nb, 2H] f32
    xw = jnp.dot(x_ref[...], wx_ref[...], preferred_element_type=f32)
    xw_init = xw[:, :hidden].astype(bf)        # feeds dense_init (after source gather)
    xw_final = xw[:, hidden:]                  # feeds dense_final (per node), f32

    # h0 = ReLU([G_src | edge_attr] @ [[x @ W_init_x]; [W_init_e]] + b_init)
    # -> a single MXU push instead of a gather-matmul plus a K=16 edge matmul.
    rhs0 = jnp.concatenate([xw_init, we_ref[...]], axis=0)          # [Nb+Fe, H]
    h0 = jnp.dot(lhs_ref[...], rhs0, preferred_element_type=f32) + b_init
    h0 = jnp.maximum(h0, 0.0)                                       # [Eb, H]
    h0_ref[...] = h0          # stage residual in VMEM scratch -> bounds vreg pressure

    # `steps` message-passing iterations, factorized message operator:
    #   m = G_dst @ (G_dst^T @ h) - h ;  h = ReLU(h0 + W2 @ ReLU(W1 @ m + b1) + b2)
    def step_body(_, h):
        hb = h.astype(bf)
        node_sum = jnp.dot(sdst_ref[...], hb, preferred_element_type=f32)   # [Nb, H]
        m = jnp.dot(gdst_ref[...], node_sum.astype(bf),
                    preferred_element_type=f32) - h                          # [Eb, H]
        t = jnp.maximum(
            jnp.dot(m.astype(bf), w1_ref[...], preferred_element_type=f32) + b1, 0.0)
        t = jnp.dot(t.astype(bf), w2_ref[...], preferred_element_type=f32) + b2
        return jnp.maximum(h0_ref[...] + t, 0.0)

    h = jax.lax.fori_loop(0, steps, step_body, h0, unroll=True)              # [Eb, H]

    # aggregate edge states to their source nodes: m_node = G_src^T @ h
    m_node = jnp.dot(ssrc_ref[...], h.astype(bf), preferred_element_type=f32)  # [Nb,H]

    # dense_final(cat(x, m_node));  x-part already computed in xw_final
    y = xw_final + jnp.dot(m_node.astype(bf), wfm_ref[...],
                           preferred_element_type=f32) + b_final
    y = jnp.maximum(y, 0.0)                                                   # [Nb, H]

    # LayerNorm (two-pass variance), affine, ReLU; Dropout(p) is identity in forward
    mean = jnp.mean(y, axis=-1, keepdims=True)
    yc = y - mean
    var = jnp.mean(yc * yc, axis=-1, keepdims=True)
    y = yc * jax.lax.rsqrt(var + eps)
    y = jnp.maximum(y * gamma + beta, 0.0)

    # per-graph mean pool: exact 0/1 membership matmul, then f32 division by counts
    pooled = jnp.dot(pool_ref[...], y.astype(bf), preferred_element_type=f32)  # [g,H]
    pooled = pooled / cnt_ref[...]                                             # f32

    # final_dense (bias=False); W_out is lane-padded to 128 -> lane-dense store
    out_ref[...] = jnp.dot(pooled.astype(bf), wout_ref[...],
                           preferred_element_type=f32)


def dmpnn_forward(x, edge_attr, edge_index, batch, num_graphs, params, *, steps,
                  graphs_per_block=None):
    f32 = jnp.float32
    bf = jnp.bfloat16

    n_total, f_in = x.shape
    e_total, f_e = edge_attr.shape
    hidden = params["w1"].shape[0]
    out_features = params["w_out"].shape[1]
    assert out_features <= 128

    n_per = n_total // num_graphs
    e_per = e_total // num_graphs

    if graphs_per_block is None:
        # Fill ~256 MXU rows per block (v6e/v7x native width) while keeping several
        # grid steps when possible so v7x's two TensorCores both get work.
        gpb = max(1, min(num_graphs, pl.cdiv(256, e_per)))
        while num_graphs % gpb:
            gpb -= 1
    else:
        gpb = graphs_per_block
    num_blocks = num_graphs // gpb
    n_blk = gpb * n_per
    e_blk = gpb * e_per

    # ---- per-block dense graph operators (block-local node indices) --------------
    src = edge_index[0].reshape(num_blocks, e_blk)
    dst = edge_index[1].reshape(num_blocks, e_blk)
    node_off = (jnp.arange(num_blocks, dtype=jnp.int32) * n_blk)[:, None]
    src_l = src - node_off
    dst_l = dst - node_off
    b_ix = jnp.arange(num_blocks)[:, None]
    e_ix = jnp.arange(e_blk)[None, :]
    n_ix = jnp.arange(n_blk)[None, :]

    g_src = jnp.zeros((num_blocks, e_blk, n_blk), f32).at[b_ix, e_ix, src_l].set(1.0)
    g_dst = jnp.zeros((num_blocks, e_blk, n_blk), f32).at[b_ix, e_ix, dst_l].set(1.0)
    s_src = jnp.transpose(g_src, (0, 2, 1))     # scatter-add by src  [Nb, Eb]
    s_dst = jnp.transpose(g_dst, (0, 2, 1))     # scatter-add by dst  [Nb, Eb]

    # per-graph mean pool: exact 0/1 membership; counts kept separately in f32
    graph_l = batch.reshape(num_blocks, n_blk) - \
        (jnp.arange(num_blocks, dtype=jnp.int32) * gpb)[:, None]
    pool = jnp.zeros((num_blocks, gpb, n_blk), f32).at[b_ix, graph_l, n_ix].set(1.0)
    counts = jnp.maximum(jnp.sum(pool, axis=2, keepdims=True), 1.0)   # [nb, gpb, 1]

    # fused h0 LHS: [G_src | edge_attr]  (one MXU push inside the kernel)
    lhs_init = jnp.concatenate(
        [g_src, edge_attr.reshape(num_blocks, e_blk, f_e).astype(f32)], axis=-1)

    # fused node projection [F_in, 2H] = [W_init_x | W_final_x]
    w_x = jnp.concatenate([params["w_init_x"], params["w_final_x"]], axis=1)
    # final head padded to 128 output lanes -> lane-dense stores; sliced after call
    o_pad = 128
    w_out = jnp.zeros((hidden, o_pad), f32).at[:, :out_features].set(params["w_out"])

    packed_vecs = jnp.stack(
        [params["b_init"], params["b1"], params["b2"], params["b_final"],
         params["ln_gamma"], params["ln_beta"],
         jnp.zeros((hidden,), f32), jnp.zeros((hidden,), f32)], axis=0).astype(f32)

    args = (
        lhs_init.astype(bf),                            # [nb, Eb, Nb+Fe]
        g_dst.astype(bf),                               # [nb, Eb, Nb]
        s_dst.astype(bf),                               # [nb, Nb, Eb]
        s_src.astype(bf),                               # [nb, Nb, Eb]
        x.reshape(num_blocks, n_blk, f_in).astype(bf),  # [nb, Nb, Fin]
        pool.astype(bf),                                # exact 0/1 in bf16
        counts.astype(f32),                             # [nb, gpb, 1] f32
        w_x.astype(bf), params["w_init_e"].astype(bf),
        params["w1"].astype(bf), params["w2"].astype(bf),
        params["w_final_m"].astype(bf), w_out.astype(bf),
        packed_vecs,
    )

    def blk(shape):                     # per-block operand: one block per grid step
        nd = len(shape)
        return pl.BlockSpec((None,) + tuple(shape[1:]),
                            lambda b, _nd=nd: (b,) + (0,) * (_nd - 1))

    def const(shape):                   # grid-invariant operand: constant index_map
        nd = len(shape)
        return pl.BlockSpec(tuple(shape), lambda b, _nd=nd: (0,) * _nd)

    in_specs = [blk(a.shape) for a in args[:7]] + [const(a.shape) for a in args[7:]]

    kernel = functools.partial(dmpnn_kernel, steps=steps, hidden=hidden, eps=1e-5)

    out = pl.pallas_call(
        kernel,
        out_shape=jax.ShapeDtypeStruct((num_blocks, gpb, o_pad), jnp.float32),
        grid=(num_blocks,),
        in_specs=in_specs,
        out_specs=pl.BlockSpec((None, gpb, o_pad), lambda b: (b, 0, 0)),
        scratch_shapes=[pltpu.VMEM((e_blk, hidden), jnp.float32)],   # h0 residual
        compiler_params=pltpu.CompilerParams(
            dimension_semantics=("parallel",)),
    )(*args)

    return out.reshape(num_graphs, o_pad)[:, :out_features]


def init_params(key, in_features, edge_features, hidden, out_features):
    ks = jax.random.split(key, 11)
    s = 0.1
    nrm = jax.random.normal
    return {
        # dense_init: Linear(F_in + F_e, H)   (split into x-part / edge-part)
        "w_init_x": s * nrm(ks[0], (in_features, hidden), jnp.float32),
        "w_init_e": s * nrm(ks[1], (edge_features, hidden), jnp.float32),
        "b_init":   s * nrm(ks[2], (hidden,), jnp.float32),
        # dense_hidden: Linear(H, H) -> ReLU -> Linear(H, H)
        "w1": s * nrm(ks[3], (hidden, hidden), jnp.float32),
        "b1": s * nrm(ks[4], (hidden,), jnp.float32),
        "w2": s * nrm(ks[5], (hidden, hidden), jnp.float32),
        "b2": s * nrm(ks[6], (hidden,), jnp.float32),
        # dense_final: Linear(F_in + H, H)    (split into x-part / m-part)
        "w_final_x": s * nrm(ks[7], (in_features, hidden), jnp.float32),
        "w_final_m": s * nrm(ks[8], (hidden, hidden), jnp.float32),
        "b_final":   s * nrm(ks[9], (hidden,), jnp.float32),
        # LayerNorm affine (torch defaults)
        "ln_gamma": jnp.ones((hidden,), jnp.float32),
        "ln_beta":  jnp.zeros((hidden,), jnp.float32),
        # final_dense: Linear(H, O, bias=False)   (type == 1 path)
        "w_out": s * nrm(ks[10], (hidden, out_features), jnp.float32),
    }


if __name__ == "__main__":
    NODES_PER_GRAPH = 16
    NUM_GRAPHS = 16                 # 2 grid blocks of 8 graphs -> 256-row MXU tiles
    N = NODES_PER_GRAPH * NUM_GRAPHS              # 256 nodes
    IN_FEATURES = 32                               # input_size
    EDGE_FEATURES = 16                             # edge_size
    HIDDEN = 128                                   # hidden_size (lane-dense)
    OUT_FEATURES = 8                               # output_size
    STEPS = 3
    # dropout p = 0.0 -> identity; type = 1 (no temperature concat)

    key = jax.random.PRNGKey(0)
    kx, ke, kp = jax.random.split(key, 3)

    x = jax.random.normal(kx, (N, IN_FEATURES), jnp.float32)

    # independent bidirectional-ring graphs, 32 edges per graph, E = 512 total
    srcs, dsts = [], []
    for g in range(NUM_GRAPHS):
        off = g * NODES_PER_GRAPH
        idx = jnp.arange(NODES_PER_GRAPH, dtype=jnp.int32)
        nxt = (idx + 1) % NODES_PER_GRAPH
        srcs.append(off + jnp.concatenate([idx, nxt]))
        dsts.append(off + jnp.concatenate([nxt, idx]))
    edge_index = jnp.stack([jnp.concatenate(srcs), jnp.concatenate(dsts)], axis=0)
    E = edge_index.shape[1]

    edge_attr = jax.random.normal(ke, (E, EDGE_FEATURES), jnp.float32)
    batch = jnp.repeat(jnp.arange(NUM_GRAPHS, dtype=jnp.int32), NODES_PER_GRAPH)

    params = init_params(kp, IN_FEATURES, EDGE_FEATURES, HIDDEN, OUT_FEATURES)

    out = dmpnn_forward(x, edge_attr, edge_index, batch, NUM_GRAPHS, params,
                        steps=STEPS)
    jax.block_until_ready(out)
    assert out.shape == (NUM_GRAPHS, OUT_FEATURES)
    assert bool(jnp.all(jnp.isfinite(out)))
    print("KERNEL_OK")
</pallas_src>

<mosaic_0001>
module attributes {stable_mosaic.version = 11 : i64} {
  func.func @dmpnn_kernel(%arg0: i32, %arg1: memref<1x256x144xbf16, #tpu.memory_space<vmem>>, %arg2: memref<1x256x128xbf16, #tpu.memory_space<vmem>>, %arg3: memref<1x128x256xbf16, #tpu.memory_space<vmem>>, %arg4: memref<1x128x256xbf16, #tpu.memory_space<vmem>>, %arg5: memref<1x128x32xbf16, #tpu.memory_space<vmem>>, %arg6: memref<1x8x128xbf16, #tpu.memory_space<vmem>>, %arg7: memref<1x8x1xf32, #tpu.memory_space<vmem>>, %arg8: memref<32x256xbf16, #tpu.memory_space<vmem>>, %arg9: memref<16x128xbf16, #tpu.memory_space<vmem>>, %arg10: memref<128x128xbf16, #tpu.memory_space<vmem>>, %arg11: memref<128x128xbf16, #tpu.memory_space<vmem>>, %arg12: memref<128x128xbf16, #tpu.memory_space<vmem>>, %arg13: memref<128x128xbf16, #tpu.memory_space<vmem>>, %arg14: memref<8x128xf32, #tpu.memory_space<vmem>>, %arg15: memref<1x8x128xf32, #tpu.memory_space<vmem>>, %arg16: memref<256x128xf32, #tpu.memory_space<vmem>>) attributes {dimension_semantics = [#tpu.dimension_semantics<parallel>], iteration_bounds = array<i64: 2>, scalar_prefetch = 0 : i64, scratch_operands = 1 : i64, tpu.core_type = #tpu.core_type<tc>, window_params = [{transform_indices = @transform_0, window_bounds = array<i64: 1, 256, 144>}, {transform_indices = @transform_1, window_bounds = array<i64: 1, 256, 128>}, {transform_indices = @transform_2, window_bounds = array<i64: 1, 128, 256>}, {transform_indices = @transform_3, window_bounds = array<i64: 1, 128, 256>}, {transform_indices = @transform_4, window_bounds = array<i64: 1, 128, 32>}, {transform_indices = @transform_5, window_bounds = array<i64: 1, 8, 128>}, {transform_indices = @transform_6, window_bounds = array<i64: 1, 8, 1>}, {pipeline_mode = #tpu.pipeline_mode<synchronous>, transform_indices = @transform_7, window_bounds = array<i64: 32, 256>}, {pipeline_mode = #tpu.pipeline_mode<synchronous>, transform_indices = @transform_8, window_bounds = array<i64: 16, 128>}, {pipeline_mode = #tpu.pipeline_mode<synchronous>, transform_indices = @transform_9, window_bounds = array<i64: 128, 128>}, {pipeline_mode = #tpu.pipeline_mode<synchronous>, transform_indices = @transform_10, window_bounds = array<i64: 128, 128>}, {pipeline_mode = #tpu.pipeline_mode<synchronous>, transform_indices = @transform_11, window_bounds = array<i64: 128, 128>}, {pipeline_mode = #tpu.pipeline_mode<synchronous>, transform_indices = @transform_12, window_bounds = array<i64: 128, 128>}, {pipeline_mode = #tpu.pipeline_mode<synchronous>, transform_indices = @transform_13, window_bounds = array<i64: 8, 128>}, {transform_indices = @transform_14, window_bounds = array<i64: 1, 8, 128>}]} {
    %c0 = arith.constant 0 : index
    %c0_0 = arith.constant 0 : index
    %0 = vector.load %arg14[%c0, %c0_0] : memref<8x128xf32, #tpu.memory_space<vmem>>, vector<1x128xf32>
    %c3 = arith.constant 3 : index
    %c0_1 = arith.constant 0 : index
    %1 = vector.load %arg14[%c3, %c0_1] : memref<8x128xf32, #tpu.memory_space<vmem>>, vector<1x128xf32>
    %c4 = arith.constant 4 : index
    %c0_2 = arith.constant 0 : index
    %2 = vector.load %arg14[%c4, %c0_2] : memref<8x128xf32, #tpu.memory_space<vmem>>, vector<1x128xf32>
    %c5 = arith.constant 5 : index
    %c0_3 = arith.constant 0 : index
    %3 = vector.load %arg14[%c5, %c0_3] : memref<8x128xf32, #tpu.memory_space<vmem>>, vector<1x128xf32>
    %c1 = arith.constant 1 : index
    %c0_4 = arith.constant 0 : index
    %4 = vector.load %arg14[%c1, %c0_4] : memref<8x128xf32, #tpu.memory_space<vmem>>, vector<1x128xf32>
    %5 = vector.shape_cast %4 : vector<1x128xf32> to vector<1x128xf32>
    %6 = vector.broadcast %5 : vector<1x128xf32> to vector<256x128xf32>
    %c2 = arith.constant 2 : index
    %c0_5 = arith.constant 0 : index
    %7 = vector.load %arg14[%c2, %c0_5] : memref<8x128xf32, #tpu.memory_space<vmem>>, vector<1x128xf32>
    %8 = vector.shape_cast %7 : vector<1x128xf32> to vector<1x128xf32>
    %9 = vector.broadcast %8 : vector<1x128xf32> to vector<256x128xf32>
    %c0_6 = arith.constant 0 : index
    %c0_7 = arith.constant 0 : index
    %c0_8 = arith.constant 0 : index
    %10 = vector.load %arg5[%c0_6, %c0_7, %c0_8] : memref<1x128x32xbf16, #tpu.memory_space<vmem>>, vector<1x128x32xbf16>
    %11 = vector.shape_cast %10 : vector<1x128x32xbf16> to vector<128x32xbf16>
    %c0_9 = arith.constant 0 : index
    %c0_10 = arith.constant 0 : index
    %12 = vector.load %arg8[%c0_9, %c0_10] : memref<32x256xbf16, #tpu.memory_space<vmem>>, vector<32x256xbf16>
    %cst = arith.constant dense<0.000000e+00> : vector<128x256xf32>
    %13 = tpu.matmul %11, %12, %cst {dimension_numbers = #tpu.dot_dimension_numbers<[1], [0], [0], [1], [0, 0, 1, 1], [], []>} : vector<128x32xbf16>, vector<32x256xbf16>, vector<128x256xf32> -> vector<128x256xf32>
    %14 = vector.extract_strided_slice %13 {offsets = [0, 0], sizes = [128, 128], strides = [1, 1]} : vector<128x256xf32> to vector<128x128xf32>
    %15 = arith.truncf %14 : vector<128x128xf32> to vector<128x128xbf16>
    %16 = vector.extract_strided_slice %13 {offsets = [0, 128], sizes = [128, 128], strides = [1, 1]} : vector<128x256xf32> to vector<128x128xf32>
    %c0_11 = arith.constant 0 : index
    %c0_12 = arith.constant 0 : index
    %17 = vector.load %arg9[%c0_11, %c0_12] : memref<16x128xbf16, #tpu.memory_space<vmem>>, vector<16x128xbf16>
    %18 = tpu.concatenate %15, %17 in 0 : vector<128x128xbf16>, vector<16x128xbf16> -> vector<144x128xbf16>
    %c0_13 = arith.constant 0 : index
    %c0_14 = arith.constant 0 : index
    %c0_15 = arith.constant 0 : index
    %19 = vector.load %arg1[%c0_13, %c0_14, %c0_15] : memref<1x256x144xbf16, #tpu.memory_space<vmem>>, vector<1x256x144xbf16>
    %20 = vector.shape_cast %19 : vector<1x256x144xbf16> to vector<256x144xbf16>
    %cst_16 = arith.constant dense<0.000000e+00> : vector<256x128xf32>
    %21 = tpu.matmul %20, %18, %cst_16 {dimension_numbers = #tpu.dot_dimension_numbers<[1], [0], [0], [1], [0, 0, 1, 1], [], []>} : vector<256x144xbf16>, vector<144x128xbf16>, vector<256x128xf32> -> vector<256x128xf32>
    %22 = vector.broadcast %0 : vector<1x128xf32> to vector<256x128xf32>
    %23 = arith.addf %21, %22 : vector<256x128xf32>
    %cst_17 = arith.constant 0.000000e+00 : f32
    %24 = vector.broadcast %cst_17 : f32 to vector<256x128xf32>
    %25 = arith.maximumf %23, %24 : vector<256x128xf32>
    %c0_18 = arith.constant 0 : index
    %c0_19 = arith.constant 0 : index
    %26 = vector.load %arg16[%c0_18, %c0_19] : memref<256x128xf32, #tpu.memory_space<vmem>>, vector<256x128xf32>
    tpu.vector_store %arg16[%c0_18, %c0_19], %25 {strides = array<i32>} : memref<256x128xf32, #tpu.memory_space<vmem>>, vector<256x128xf32>,
    %c0_i32 = arith.constant 0 : i32
    %27 = arith.truncf %25 : vector<256x128xf32> to vector<256x128xbf16>
    %c0_20 = arith.constant 0 : index
    %c0_21 = arith.constant 0 : index
    %c0_22 = arith.constant 0 : index
    %28 = vector.load %arg3[%c0_20, %c0_21, %c0_22] : memref<1x128x256xbf16, #tpu.memory_space<vmem>>, vector<1x128x256xbf16>
    %29 = vector.shape_cast %28 : vector<1x128x256xbf16> to vector<128x256xbf16>
    %cst_23 = arith.constant dense<0.000000e+00> : vector<128x128xf32>
    %30 = tpu.matmul %29, %27, %cst_23 {dimension_numbers = #tpu.dot_dimension_numbers<[1], [0], [0], [1], [0, 0, 1, 1], [], []>} : vector<128x256xbf16>, vector<256x128xbf16>, vector<128x128xf32> -> vector<128x128xf32>
    %c0_24 = arith.constant 0 : index
    %c0_25 = arith.constant 0 : index
    %c0_26 = arith.constant 0 : index
    %31 = vector.load %arg2[%c0_24, %c0_25, %c0_26] : memref<1x256x128xbf16, #tpu.memory_space<vmem>>, vector<1x256x128xbf16>
    %32 = vector.shape_cast %31 : vector<1x256x128xbf16> to vector<256x128xbf16>
    %33 = arith.truncf %30 : vector<128x128xf32> to vector<128x128xbf16>
    %cst_27 = arith.constant dense<0.000000e+00> : vector<256x128xf32>
    %34 = tpu.matmul %32, %33, %cst_27 {dimension_numbers = #tpu.dot_dimension_numbers<[1], [0], [0], [1], [0, 0, 1, 1], [], []>} : vector<256x128xbf16>, vector<128x128xbf16>, vector<256x128xf32> -> vector<256x128xf32>
    %35 = arith.subf %34, %25 : vector<256x128xf32>
    %36 = arith.truncf %35 : vector<256x128xf32> to vector<256x128xbf16>
    %c0_28 = arith.constant 0 : index
    %c0_29 = arith.constant 0 : index
    %37 = vector.load %arg10[%c0_28, %c0_29] : memref<128x128xbf16, #tpu.memory_space<vmem>>, vector<128x128xbf16>
    %cst_30 = arith.constant dense<0.000000e+00> : vector<256x128xf32>
    %38 = tpu.matmul %36, %37, %cst_30 {dimension_numbers = #tpu.dot_dimension_numbers<[1], [0], [0], [1], [0, 0, 1, 1], [], []>} : vector<256x128xbf16>, vector<128x128xbf16>, vector<256x128xf32> -> vector<256x128xf32>
    %39 = arith.addf %38, %6 : vector<256x128xf32>
    %cst_31 = arith.constant 0.000000e+00 : f32
    %40 = vector.broadcast %cst_31 : f32 to vector<256x128xf32>
    %41 = arith.maximumf %39, %40 : vector<256x128xf32>
    %42 = arith.truncf %41 : vector<256x128xf32> to vector<256x128xbf16>
    %c0_32 = arith.constant 0 : index
    %c0_33 = arith.constant 0 : index
    %43 = vector.load %arg11[%c0_32, %c0_33] : memref<128x128xbf16, #tpu.memory_space<vmem>>, vector<128x128xbf16>
    %cst_34 = arith.constant dense<0.000000e+00> : vector<256x128xf32>
    %44 = tpu.matmul %42, %43, %cst_34 {dimension_numbers = #tpu.dot_dimension_numbers<[1], [0], [0], [1], [0, 0, 1, 1], [], []>} : vector<256x128xbf16>, vector<128x128xbf16>, vector<256x128xf32> -> vector<256x128xf32>
    %45 = arith.addf %44, %9 : vector<256x128xf32>
    %c0_35 = arith.constant 0 : index
    %c0_36 = arith.constant 0 : index
    %46 = vector.load %arg16[%c0_35, %c0_36] : memref<256x128xf32, #tpu.memory_space<vmem>>, vector<256x128xf32>
    %47 = arith.addf %46, %45 : vector<256x128xf32>
    %cst_37 = arith.constant 0.000000e+00 : f32
    %48 = vector.broadcast %cst_37 : f32 to vector<256x128xf32>
    %49 = arith.maximumf %47, %48 : vector<256x128xf32>
    %c1_i32 = arith.constant 1 : i32
    %50 = arith.truncf %49 : vector<256x128xf32> to vector<256x128xbf16>
    %c0_38 = arith.constant 0 : index
    %c0_39 = arith.constant 0 : index
    %c0_40 = arith.constant 0 : index
    %51 = vector.load %arg3[%c0_38, %c0_39, %c0_40] : memref<1x128x256xbf16, #tpu.memory_space<vmem>>, vector<1x128x256xbf16>
    %52 = vector.shape_cast %51 : vector<1x128x256xbf16> to vector<128x256xbf16>
    %cst_41 = arith.constant dense<0.000000e+00> : vector<128x128xf32>
    %53 = tpu.matmul %52, %50, %cst_41 {dimension_numbers = #tpu.dot_dimension_numbers<[1], [0], [0], [1], [0, 0, 1, 1], [], []>} : vector<128x256xbf16>, vector<256x128xbf16>, vector<128x128xf32> -> vector<128x128xf32>
    %c0_42 = arith.constant 0 : index
    %c0_43 = arith.constant 0 : index
    %c0_44 = arith.constant 0 : index
    %54 = vector.load %arg2[%c0_42, %c0_43, %c0_44] : memref<1x256x128xbf16, #tpu.memory_space<vmem>>, vector<1x256x128xbf16>
    %55 = vector.shape_cast %54 : vector<1x256x128xbf16> to vector<256x128xbf16>
    %56 = arith.truncf %53 : vector<128x128xf32> to vector<128x128xbf16>
    %cst_45 = arith.constant dense<0.000000e+00> : vector<256x128xf32>
    %57 = tpu.matmul %55, %56, %cst_45 {dimension_numbers = #tpu.dot_dimension_numbers<[1], [0], [0], [1], [0, 0, 1, 1], [], []>} : vector<256x128xbf16>, vector<128x128xbf16>, vector<256x128xf32> -> vector<256x128xf32>
    %58 = arith.subf %57, %49 : vector<256x128xf32>
    %59 = arith.truncf %58 : vector<256x128xf32> to vector<256x128xbf16>
    %c0_46 = arith.constant 0 : index
    %c0_47 = arith.constant 0 : index
    %60 = vector.load %arg10[%c0_46, %c0_47] : memref<128x128xbf16, #tpu.memory_space<vmem>>, vector<128x128xbf16>
    %cst_48 = arith.constant dense<0.000000e+00> : vector<256x128xf32>
    %61 = tpu.matmul %59, %60, %cst_48 {dimension_numbers = #tpu.dot_dimension_numbers<[1], [0], [0], [1], [0, 0, 1, 1], [], []>} : vector<256x128xbf16>, vector<128x128xbf16>, vector<256x128xf32> -> vector<256x128xf32>
    %62 = arith.addf %61, %6 : vector<256x128xf32>
    %cst_49 = arith.constant 0.000000e+00 : f32
    %63 = vector.broadcast %cst_49 : f32 to vector<256x128xf32>
    %64 = arith.maximumf %62, %63 : vector<256x128xf32>
    %65 = arith.truncf %64 : vector<256x128xf32> to vector<256x128xbf16>
    %c0_50 = arith.constant 0 : index
    %c0_51 = arith.constant 0 : index
    %66 = vector.load %arg11[%c0_50, %c0_51] : memref<128x128xbf16, #tpu.memory_space<vmem>>, vector<128x128xbf16>
    %cst_52 = arith.constant dense<0.000000e+00> : vector<256x128xf32>
    %67 = tpu.matmul %65, %66, %cst_52 {dimension_numbers = #tpu.dot_dimension_numbers<[1], [0], [0], [1], [0, 0, 1, 1], [], []>} : vector<256x128xbf16>, vector<128x128xbf16>, vector<256x128xf32> -> vector<256x128xf32>
    %68 = arith.addf %67, %9 : vector<256x128xf32>
    %c0_53 = arith.constant 0 : index
    %c0_54 = arith.constant 0 : index
    %69 = vector.load %arg16[%c0_53, %c0_54] : memref<256x128xf32, #tpu.memory_space<vmem>>, vector<256x128xf32>
    %70 = arith.addf %69, %68 : vector<256x128xf32>
    %cst_55 = arith.constant 0.000000e+00 : f32
    %71 = vector.broadcast %cst_55 : f32 to vector<256x128xf32>
    %72 = arith.maximumf %70, %71 : vector<256x128xf32>
    %c2_i32 = arith.constant 2 : i32
    %73 = arith.truncf %72 : vector<256x128xf32> to vector<256x128xbf16>
    %c0_56 = arith.constant 0 : index
    %c0_57 = arith.constant 0 : index
    %c0_58 = arith.constant 0 : index
    %74 = vector.load %arg3[%c0_56, %c0_57, %c0_58] : memref<1x128x256xbf16, #tpu.memory_space<vmem>>, vector<1x128x256xbf16>
    %75 = vector.shape_cast %74 : vector<1x128x256xbf16> to vector<128x256xbf16>
    %cst_59 = arith.constant dense<0.000000e+00> : vector<128x128xf32>
    %76 = tpu.matmul %75, %73, %cst_59 {dimension_numbers = #tpu.dot_dimension_numbers<[1], [0], [0], [1], [0, 0, 1, 1], [], []>} : vector<128x256xbf16>, vector<256x128xbf16>, vector<128x128xf32> -> vector<128x128xf32>
    %c0_60 = arith.constant 0 : index
    %c0_61 = arith.constant 0 : index
    %c0_62 = arith.constant 0 : index
    %77 = vector.load %arg2[%c0_60, %c0_61, %c0_62] : memref<1x256x128xbf16, #tpu.memory_space<vmem>>, vector<1x256x128xbf16>
    %78 = vector.shape_cast %77 : vector<1x256x128xbf16> to vector<256x128xbf16>
    %79 = arith.truncf %76 : vector<128x128xf32> to vector<128x128xbf16>
    %cst_63 = arith.constant dense<0.000000e+00> : vector<256x128xf32>
    %80 = tpu.matmul %78, %79, %cst_63 {dimension_numbers = #tpu.dot_dimension_numbers<[1], [0], [0], [1], [0, 0, 1, 1], [], []>} : vector<256x128xbf16>, vector<128x128xbf16>, vector<256x128xf32> -> vector<256x128xf32>
    %81 = arith.subf %80, %72 : vector<256x128xf32>
    %82 = arith.truncf %81 : vector<256x128xf32> to vector<256x128xbf16>
    %c0_64 = arith.constant 0 : index
    %c0_65 = arith.constant 0 : index
    %83 = vector.load %arg10[%c0_64, %c0_65] : memref<128x128xbf16, #tpu.memory_space<vmem>>, vector<128x128xbf16>
    %cst_66 = arith.constant dense<0.000000e+00> : vector<256x128xf32>
    %84 = tpu.matmul %82, %83, %cst_66 {dimension_numbers = #tpu.dot_dimension_numbers<[1], [0], [0], [1], [0, 0, 1, 1], [], []>} : vector<256x128xbf16>, vector<128x128xbf16>, vector<256x128xf32> -> vector<256x128xf32>
    %85 = arith.addf %84, %6 : vector<256x128xf32>
    %cst_67 = arith.constant 0.000000e+00 : f32
    %86 = vector.broadcast %cst_67 : f32 to vector<256x128xf32>
    %87 = arith.maximumf %85, %86 : vector<256x128xf32>
    %88 = arith.truncf %87 : vector<256x128xf32> to vector<256x128xbf16>
    %c0_68 = arith.constant 0 : index
    %c0_69 = arith.constant 0 : index
    %89 = vector.load %arg11[%c0_68, %c0_69] : memref<128x128xbf16, #tpu.memory_space<vmem>>, vector<128x128xbf16>
    %cst_70 = arith.constant dense<0.000000e+00> : vector<256x128xf32>
    %90 = tpu.matmul %88, %89, %cst_70 {dimension_numbers = #tpu.dot_dimension_numbers<[1], [0], [0], [1], [0, 0, 1, 1], [], []>} : vector<256x128xbf16>, vector<128x128xbf16>, vector<256x128xf32> -> vector<256x128xf32>
    %91 = arith.addf %90, %9 : vector<256x128xf32>
    %c0_71 = arith.constant 0 : index
    %c0_72 = arith.constant 0 : index
    %92 = vector.load %arg16[%c0_71, %c0_72] : memref<256x128xf32, #tpu.memory_space<vmem>>, vector<256x128xf32>
    %93 = arith.addf %92, %91 : vector<256x128xf32>
    %cst_73 = arith.constant 0.000000e+00 : f32
    %94 = vector.broadcast %cst_73 : f32 to vector<256x128xf32>
    %95 = arith.maximumf %93, %94 : vector<256x128xf32>
    %c0_74 = arith.constant 0 : index
    %c0_75 = arith.constant 0 : index
    %c0_76 = arith.constant 0 : index
    %96 = vector.load %arg4[%c0_74, %c0_75, %c0_76] : memref<1x128x256xbf16, #tpu.memory_space<vmem>>, vector<1x128x256xbf16>
    %97 = vector.shape_cast %96 : vector<1x128x256xbf16> to vector<128x256xbf16>
    %98 = arith.truncf %95 : vector<256x128xf32> to vector<256x128xbf16>
    %cst_77 = arith.constant dense<0.000000e+00> : vector<128x128xf32>
    %99 = tpu.matmul %97, %98, %cst_77 {dimension_numbers = #tpu.dot_dimension_numbers<[1], [0], [0], [1], [0, 0, 1, 1], [], []>} : vector<128x256xbf16>, vector<256x128xbf16>, vector<128x128xf32> -> vector<128x128xf32>
    %100 = arith.truncf %99 : vector<128x128xf32> to vector<128x128xbf16>
    %c0_78 = arith.constant 0 : index
    %c0_79 = arith.constant 0 : index
    %101 = vector.load %arg12[%c0_78, %c0_79] : memref<128x128xbf16, #tpu.memory_space<vmem>>, vector<128x128xbf16>
    %cst_80 = arith.constant dense<0.000000e+00> : vector<128x128xf32>
    %102 = tpu.matmul %100, %101, %cst_80 {dimension_numbers = #tpu.dot_dimension_numbers<[1], [0], [0], [1], [0, 0, 1, 1], [], []>} : vector<128x128xbf16>, vector<128x128xbf16>, vector<128x128xf32> -> vector<128x128xf32>
    %103 = arith.addf %16, %102 : vector<128x128xf32>
    %104 = vector.broadcast %1 : vector<1x128xf32> to vector<128x128xf32>
    %105 = arith.addf %103, %104 : vector<128x128xf32>
    %cst_81 = arith.constant 0.000000e+00 : f32
    %106 = vector.broadcast %cst_81 : f32 to vector<128x128xf32>
    %107 = arith.maximumf %105, %106 : vector<128x128xf32>
    %cst_82 = arith.constant dense<0.000000e+00> : vector<128xf32>
    %108 = vector.multi_reduction <add>, %107, %cst_82 [1] : vector<128x128xf32> to vector<128xf32>
    %109 = vector.shape_cast %108 : vector<128xf32> to vector<128x1xf32>
    %cst_83 = arith.constant 1.280000e+02 : f32
    %110 = vector.broadcast %cst_83 : f32 to vector<128x1xf32>
    %111 = arith.divf %109, %110 : vector<128x1xf32>
    %112 = vector.broadcast %111 : vector<128x1xf32> to vector<128x128xf32>
    %113 = arith.subf %107, %112 : vector<128x128xf32>
    %114 = arith.mulf %113, %113 : vector<128x128xf32>
    %cst_84 = arith.constant dense<0.000000e+00> : vector<128xf32>
    %115 = vector.multi_reduction <add>, %114, %cst_84 [1] : vector<128x128xf32> to vector<128xf32>
    %116 = vector.shape_cast %115 : vector<128xf32> to vector<128x1xf32>
    %cst_85 = arith.constant 1.280000e+02 : f32
    %117 = vector.broadcast %cst_85 : f32 to vector<128x1xf32>
    %118 = arith.divf %116, %117 : vector<128x1xf32>
    %cst_86 = arith.constant 9.99999974E-6 : f32
    %119 = vector.broadcast %cst_86 : f32 to vector<128x1xf32>
    %120 = arith.addf %118, %119 : vector<128x1xf32>
    %121 = math.rsqrt %120 : vector<128x1xf32>
    %122 = vector.broadcast %121 : vector<128x1xf32> to vector<128x128xf32>
    %123 = arith.mulf %113, %122 : vector<128x128xf32>
    %124 = vector.broadcast %2 : vector<1x128xf32> to vector<128x128xf32>
    %125 = arith.mulf %123, %124 : vector<128x128xf32>
    %126 = vector.broadcast %3 : vector<1x128xf32> to vector<128x128xf32>
    %127 = arith.addf %125, %126 : vector<128x128xf32>
    %cst_87 = arith.constant 0.000000e+00 : f32
    %128 = vector.broadcast %cst_87 : f32 to vector<128x128xf32>
    %129 = arith.maximumf %127, %128 : vector<128x128xf32>
    %c0_88 = arith.constant 0 : index
    %c0_89 = arith.constant 0 : index
    %c0_90 = arith.constant 0 : index
    %130 = vector.load %arg6[%c0_88, %c0_89, %c0_90] : memref<1x8x128xbf16, #tpu.memory_space<vmem>>, vector<1x8x128xbf16>
    %131 = vector.shape_cast %130 : vector<1x8x128xbf16> to vector<8x128xbf16>
    %132 = arith.truncf %129 : vector<128x128xf32> to vector<128x128xbf16>
    %cst_91 = arith.constant dense<0.000000e+00> : vector<8x128xf32>
    %133 = tpu.matmul %131, %132, %cst_91 {dimension_numbers = #tpu.dot_dimension_numbers<[1], [0], [0], [1], [0, 0, 1, 1], [], []>} : vector<8x128xbf16>, vector<128x128xbf16>, vector<8x128xf32> -> vector<8x128xf32>
    %c0_92 = arith.constant 0 : index
    %c0_93 = arith.constant 0 : index
    %c0_94 = arith.constant 0 : index
    %134 = vector.load %arg7[%c0_92, %c0_93, %c0_94] : memref<1x8x1xf32, #tpu.memory_space<vmem>>, vector<1x8x1xf32>
    %135 = vector.shape_cast %134 : vector<1x8x1xf32> to vector<8x1xf32>
    %136 = vector.broadcast %135 : vector<8x1xf32> to vector<8x128xf32>
    %137 = arith.divf %133, %136 : vector<8x128xf32>
    %138 = arith.truncf %137 : vector<8x128xf32> to vector<8x128xbf16>
    %c0_95 = arith.constant 0 : index
    %c0_96 = arith.constant 0 : index
    %139 = vector.load %arg13[%c0_95, %c0_96] : memref<128x128xbf16, #tpu.memory_space<vmem>>, vector<128x128xbf16>
    %cst_97 = arith.constant dense<0.000000e+00> : vector<8x128xf32>
    %140 = tpu.matmul %138, %139, %cst_97 {dimension_numbers = #tpu.dot_dimension_numbers<[1], [0], [0], [1], [0, 0, 1, 1], [], []>} : vector<8x128xbf16>, vector<128x128xbf16>, vector<8x128xf32> -> vector<8x128xf32>
    %c0_98 = arith.constant 0 : index
    %c0_99 = arith.constant 0 : index
    %c0_100 = arith.constant 0 : index
    %141 = vector.load %arg15[%c0_98, %c0_99, %c0_100] : memref<1x8x128xf32, #tpu.memory_space<vmem>>, vector<1x8x128xf32>
    %142 = vector.shape_cast %141 : vector<1x8x128xf32> to vector<8x128xf32>
    %143 = vector.shape_cast %140 : vector<8x128xf32> to vector<1x8x128xf32>
    tpu.vector_store %arg15[%c0_98, %c0_99, %c0_100], %143 {strides = array<i32>} : memref<1x8x128xf32, #tpu.memory_space<vmem>>, vector<1x8x128xf32>,
    return
  }
  func.func @transform_0(%arg0: i32) -> (i32, i32, i32) {
    %c0_i32 = arith.constant 0 : i32
    %c0_i32_0 = arith.constant 0 : i32
    %c0_i32_1 = arith.constant 0 : i32
    return %arg0, %c0_i32, %c0_i32_0 : i32, i32, i32
  }
  func.func @transform_1(%arg0: i32) -> (i32, i32, i32) {
    %c0_i32 = arith.constant 0 : i32
    %c0_i32_0 = arith.constant 0 : i32
    %c0_i32_1 = arith.constant 0 : i32
    return %arg0, %c0_i32, %c0_i32_0 : i32, i32, i32
  }
  func.func @transform_2(%arg0: i32) -> (i32, i32, i32) {
    %c0_i32 = arith.constant 0 : i32
    %c0_i32_0 = arith.constant 0 : i32
    %c0_i32_1 = arith.constant 0 : i32
    return %arg0, %c0_i32, %c0_i32_0 : i32, i32, i32
  }
  func.func @transform_3(%arg0: i32) -> (i32, i32, i32) {
    %c0_i32 = arith.constant 0 : i32
    %c0_i32_0 = arith.constant 0 : i32
    %c0_i32_1 = arith.constant 0 : i32
    return %arg0, %c0_i32, %c0_i32_0 : i32, i32, i32
  }
  func.func @transform_4(%arg0: i32) -> (i32, i32, i32) {
    %c0_i32 = arith.constant 0 : i32
    %c0_i32_0 = arith.constant 0 : i32
    %c0_i32_1 = arith.constant 0 : i32
    return %arg0, %c0_i32, %c0_i32_0 : i32, i32, i32
  }
  func.func @transform_5(%arg0: i32) -> (i32, i32, i32) {
    %c0_i32 = arith.constant 0 : i32
    %c0_i32_0 = arith.constant 0 : i32
    %c0_i32_1 = arith.constant 0 : i32
    return %arg0, %c0_i32, %c0_i32_0 : i32, i32, i32
  }
  func.func @transform_6(%arg0: i32) -> (i32, i32, i32) {
    %c0_i32 = arith.constant 0 : i32
    %c0_i32_0 = arith.constant 0 : i32
    %c0_i32_1 = arith.constant 0 : i32
    return %arg0, %c0_i32, %c0_i32_0 : i32, i32, i32
  }
  func.func @transform_7(%arg0: i32) -> (i32, i32) {
    %c0_i32 = arith.constant 0 : i32
    %c0_i32_0 = arith.constant 0 : i32
    %c0_i32_1 = arith.constant 0 : i32
    return %c0_i32, %c0_i32_0 : i32, i32
  }
  func.func @transform_8(%arg0: i32) -> (i32, i32) {
    %c0_i32 = arith.constant 0 : i32
    %c0_i32_0 = arith.constant 0 : i32
    %c0_i32_1 = arith.constant 0 : i32
    return %c0_i32, %c0_i32_0 : i32, i32
  }
  func.func @transform_9(%arg0: i32) -> (i32, i32) {
    %c0_i32 = arith.constant 0 : i32
    %c0_i32_0 = arith.constant 0 : i32
    %c0_i32_1 = arith.constant 0 : i32
    return %c0_i32, %c0_i32_0 : i32, i32
  }
  func.func @transform_10(%arg0: i32) -> (i32, i32) {
    %c0_i32 = arith.constant 0 : i32
    %c0_i32_0 = arith.constant 0 : i32
    %c0_i32_1 = arith.constant 0 : i32
    return %c0_i32, %c0_i32_0 : i32, i32
  }
  func.func @transform_11(%arg0: i32) -> (i32, i32) {
    %c0_i32 = arith.constant 0 : i32
    %c0_i32_0 = arith.constant 0 : i32
    %c0_i32_1 = arith.constant 0 : i32
    return %c0_i32, %c0_i32_0 : i32, i32
  }
  func.func @transform_12(%arg0: i32) -> (i32, i32) {
    %c0_i32 = arith.constant 0 : i32
    %c0_i32_0 = arith.constant 0 : i32
    %c0_i32_1 = arith.constant 0 : i32
    return %c0_i32, %c0_i32_0 : i32, i32
  }
  func.func @transform_13(%arg0: i32) -> (i32, i32) {
    %c0_i32 = arith.constant 0 : i32
    %c0_i32_0 = arith.constant 0 : i32
    %c0_i32_1 = arith.constant 0 : i32
    return %c0_i32, %c0_i32_0 : i32, i32
  }
  func.func @transform_14(%arg0: i32) -> (i32, i32, i32) {
    %c0_i32 = arith.constant 0 : i32
    %c0_i32_0 = arith.constant 0 : i32
    %c0_i32_1 = arith.constant 0 : i32
    return %arg0, %c0_i32, %c0_i32_0 : i32, i32, i32
  }
}

</mosaic_0001>

<llo_original>
// kernel: tpu_custom_call.1
$region0: #{tpu_custom_call.1}
  #allocation0 [shape = 'u32[]', space=smem, size = 0x4, offset = 0x4, fixed_abs, tag = 'smem constant byte address 0x4 - core index']
  #allocation1 [shape = 'u32[144,128]{1,0:T(1,128)}', space=vmem, size = 0x12000, scoped, tag = 'internal scratch']
  #allocation2 [shape = 'f32[256,128]{1,0:T(8,128)}', space=vmem, size = 0x20000, scoped, tag = 'scratch operand']
  %s0 = inlined_call_operand.vmem [shape: bf16[2,256,144], index: 0, kind: input, shape index: {}]
  %s1 = inlined_call_operand.vmem [shape: bf16[2,256,128], index: 1, kind: input, shape index: {}]
  %s2 = inlined_call_operand.vmem [shape: bf16[2,128,256], index: 2, kind: input, shape index: {}]
  %s3 = inlined_call_operand.vmem [shape: bf16[2,128,256], index: 3, kind: input, shape index: {}]
  %s4 = inlined_call_operand.vmem [shape: bf16[2,128,32], index: 4, kind: input, shape index: {}]
  %s5 = inlined_call_operand.vmem [shape: bf16[2,8,128], index: 5, kind: input, shape index: {}]
  %s6 = inlined_call_operand.vmem [shape: f32[2,8,1], index: 6, kind: input, shape index: {}]
  %s7 = inlined_call_operand.hbm [shape: bf16[32,256], index: 7, kind: input, shape index: {}]
  %s8 = inlined_call_operand.vmem [shape: bf16[16,128], index: 8, kind: input, shape index: {}]
  %s9 = inlined_call_operand.vmem [shape: bf16[128,128], index: 9, kind: input, shape index: {}]
  %s10 = inlined_call_operand.vmem [shape: bf16[128,128], index: 10, kind: input, shape index: {}]
  %s11 = inlined_call_operand.vmem [shape: bf16[128,128], index: 11, kind: input, shape index: {}]
  %s12 = inlined_call_operand.hbm [shape: bf16[128,128], index: 12, kind: input, shape index: {}]
  %s13 = inlined_call_operand.vmem [shape: f32[8,128], index: 13, kind: input, shape index: {}]
  %s14 = inlined_call_operand.hbm [shape: f32[2,8,128], index: 14, kind: output, shape index: {}]
  %s15 = sld [smem:[#allocation0]]
  $region97: #{tpu_custom_call.1} parent=0
    _
  %s17 = ssub.s32 1, %s15
  %s18 = scalar_select 0, %s17, %s15
  $region1: #{tpu_custom_call.1} parent=0
    #allocation3 [shape = 'u8[16384]{0}', space=vmem, size = 0x4000, scoped, tag = 'input window, operand 7, single buffered']
    #allocation4 [shape = 's32[2]{0}', space=sflag, size = 0x8, scoped, tag = 'scoped memory for tpu_custom_call.1']
    #allocation5 [shape = 's32[2]{0}', space=sflag, size = 0x8, scoped, tag = 'scoped memory for tpu_custom_call.1']
    #allocation6 [shape = 'u8[32768]{0}', space=vmem, size = 0x8000, scoped, tag = 'input window, operand 12, single buffered']
    #allocation7 [shape = 's32[1]{0}', space=sflag, size = 0x4, scoped, tag = 'scoped memory for tpu_custom_call.1']
    #allocation8 [shape = 'u8[8192]{0}', space=vmem, size = 0x2000, scoped, tag = 'output window, operand 0']
    %19 = vsyncpa [#allocation4], 0
    %20 = vsyncpa [#allocation7], 0
    %21 = vsyncpa [#allocation5], 0
    %s22 = scalar_lea.sflag [#allocation5], 1
    %23 = vsyncpa %s22, 0
    loop: start=0, step=1, limit=4
    $region2: #{tpu_custom_call.1} parent=1 // loop_pre_header
      _
    $region3: #{tpu_custom_call.1} parent=1 // loop_header
      %s25 = sphi 0, %s29
      %p26 = scmp.ge.s32.totalorder %s25, 4
      %s35 = sphi 0, %s37
      %s38 = sphi 0, %s35
      %s39 = sphi 0, %s38
      %s55 = sphi 0, %s39
      %s61 = sphi 0, %s63
      %s64 = sphi 0, %s61
      %s65 = sphi 0, %s64
      %s81 = sphi 0, %s65
      %s87 = sphi 0, %s89
      %s90 = sphi 0, %s87
      %s91 = sphi 0, %s90
      %s107 = sphi 0, %s91
      %s113 = sphi 0, %s115
      %s116 = sphi 0, %s113
      %s117 = sphi 0, %s116
      %s133 = sphi 0, %s117
      %s139 = sphi 0, %s141
      %s142 = sphi 0, %s139
      %s143 = sphi 0, %s142
      %s159 = sphi 0, %s143
      %s165 = sphi 0, %s167
      %s168 = sphi 0, %s165
      %s169 = sphi 0, %s168
      %s185 = sphi 0, %s169
      %s191 = sphi 0, %s193
      %s194 = sphi 0, %s191
      %s195 = sphi 0, %s194
      %s211 = sphi 0, %s195
      %s215 = sphi 0, %s215
      %s217 = sphi 0, %s215
      %s218 = sphi 0, %s217
      %s232 = sphi 0, %s218
      %s236 = sphi 0, %s236
      %s238 = sphi 0, %s236
      %s239 = sphi 0, %s238
      %s253 = sphi 0, %s239
      %s257 = sphi 0, %s257
      %s259 = sphi 0, %s257
      %s260 = sphi 0, %s259
      %s274 = sphi 0, %s260
      %s278 = sphi 0, %s278
      %s280 = sphi 0, %s278
      %s281 = sphi 0, %s280
      %s295 = sphi 0, %s281
      %s299 = sphi 0, %s299
      %s301 = sphi 0, %s299
      %s302 = sphi 0, %s301
      %s316 = sphi 0, %s302
      %s320 = sphi 0, %s320
      %s322 = sphi 0, %s320
      %s323 = sphi 0, %s322
      %s337 = sphi 0, %s323
      %s341 = sphi 0, %s341
      %s343 = sphi 0, %s341
      %s344 = sphi 0, %s343
      %s358 = sphi 0, %s344
      %s364 = sphi 0, %s366
      %s367 = sphi 0, %s364
      %s368 = sphi 0, %s367
      %s384 = sphi 0, %s368
    $region4: #{tpu_custom_call.1} parent=1 // loop_header_branch
      %28 = sbr.rel (%p26) target = $region8
    $region5: #{tpu_custom_call.1} parent=1 // loop_body
      %s30 = ssub.s32 %s25, 1
      %s31 = ssub.s32 %s25, 2
      %s32 = sadd.s32 %s25, 1
      %s33 = ssub.s32 %s25, %s32
      %p34 = scmp.eq.s32.totalorder %s33, 0
      %s36 = sadd.s32 %s35, 1
      %s37 = scalar_select %p34, %s35, %s36
      %p40 = pneg %p34
      %p41 = scmp.eq.s32.totalorder %s25, 1
      %p42 = por %p40, %p41
      %p43 = scmp.ne.s32.totalorder %s35, %s38
      %p44 = scmp.eq.s32.totalorder %s25, 0
      %p45 = por %p43, %p44
      %p46 = scmp.ne.s32.totalorder %s35, %s38
      %p47 = scmp.eq.s32.totalorder %s30, 1
      %p48 = por %p46, %p47
      %p49 = scmp.ne.s32.totalorder %s38, %s39
      %p50 = scmp.eq.s32.totalorder %s30, 0
      %p51 = por %p49, %p50
      %p52 = scmp.ne.s32.totalorder %s38, %s39
      %p53 = scmp.eq.s32.totalorder %s31, 1
      %p54 = por %p52, %p53
      %p56 = scmp.ne.s32.totalorder %s39, %s55
      %p57 = scmp.eq.s32.totalorder %s31, 0
      %p58 = por %p56, %p57
      %s59 = ssub.s32 %s25, %s32
      %p60 = scmp.eq.s32.totalorder %s59, 0
      %s62 = sadd.s32 %s61, 1
      %s63 = scalar_select %p60, %s61, %s62
      %p66 = pneg %p60
      %p67 = scmp.eq.s32.totalorder %s25, 1
      %p68 = por %p66, %p67
      %p69 = scmp.ne.s32.totalorder %s61, %s64
      %p70 = scmp.eq.s32.totalorder %s25, 0
      %p71 = por %p69, %p70
      %p72 = scmp.ne.s32.totalorder %s61, %s64
      %p73 = scmp.eq.s32.totalorder %s30, 1
      %p74 = por %p72, %p73
      %p75 = scmp.ne.s32.totalorder %s64, %s65
      %p76 = scmp.eq.s32.totalorder %s30, 0
      %p77 = por %p75, %p76
      %p78 = scmp.ne.s32.totalorder %s64, %s65
      %p79 = scmp.eq.s32.totalorder %s31, 1
      %p80 = por %p78, %p79
      %p82 = scmp.ne.s32.totalorder %s65, %s81
      %p83 = scmp.eq.s32.totalorder %s31, 0
      %p84 = por %p82, %p83
      %s85 = ssub.s32 %s25, %s32
      %p86 = scmp.eq.s32.totalorder %s85, 0
      %s88 = sadd.s32 %s87, 1
      %s89 = scalar_select %p86, %s87, %s88
      %p92 = pneg %p86
      %p93 = scmp.eq.s32.totalorder %s25, 1
      %p94 = por %p92, %p93
      %p95 = scmp.ne.s32.totalorder %s87, %s90
      %p96 = scmp.eq.s32.totalorder %s25, 0
      %p97 = por %p95, %p96
      %p98 = scmp.ne.s32.totalorder %s87, %s90
      %p99 = scmp.eq.s32.totalorder %s30, 1
      %p100 = por %p98, %p99
      %p101 = scmp.ne.s32.totalorder %s90, %s91
      %p102 = scmp.eq.s32.totalorder %s30, 0
      %p103 = por %p101, %p102
      %p104 = scmp.ne.s32.totalorder %s90, %s91
      %p105 = scmp.eq.s32.totalorder %s31, 1
      %p106 = por %p104, %p105
      %p108 = scmp.ne.s32.totalorder %s91, %s107
      %p109 = scmp.eq.s32.totalorder %s31, 0
      %p110 = por %p108, %p109
      %s111 = ssub.s32 %s25, %s32
      %p112 = scmp.eq.s32.totalorder %s111, 0
      %s114 = sadd.s32 %s113, 1
      %s115 = scalar_select %p112, %s113, %s114
      %p118 = pneg %p112
      %p119 = scmp.eq.s32.totalorder %s25, 1
      %p120 = por %p118, %p119
      %p121 = scmp.ne.s32.totalorder %s113, %s116
      %p122 = scmp.eq.s32.totalorder %s25, 0
      %p123 = por %p121, %p122
      %p124 = scmp.ne.s32.totalorder %s113, %s116
      %p125 = scmp.eq.s32.totalorder %s30, 1
      %p126 = por %p124, %p125
      %p127 = scmp.ne.s32.totalorder %s116, %s117
      %p128 = scmp.eq.s32.totalorder %s30, 0
      %p129 = por %p127, %p128
      %p130 = scmp.ne.s32.totalorder %s116, %s117
      %p131 = scmp.eq.s32.totalorder %s31, 1
      %p132 = por %p130, %p131
      %p134 = scmp.ne.s32.totalorder %s117, %s133
      %p135 = scmp.eq.s32.totalorder %s31, 0
      %p136 = por %p134, %p135
      %s137 = ssub.s32 %s25, %s32
      %p138 = scmp.eq.s32.totalorder %s137, 0
      %s140 = sadd.s32 %s139, 1
      %s141 = scalar_select %p138, %s139, %s140
      %p144 = pneg %p138
      %p145 = scmp.eq.s32.totalorder %s25, 1
      %p146 = por %p144, %p145
      %p147 = scmp.ne.s32.totalorder %s139, %s142
      %p148 = scmp.eq.s32.totalorder %s25, 0
      %p149 = por %p147, %p148
      %p150 = scmp.ne.s32.totalorder %s139, %s142
      %p151 = scmp.eq.s32.totalorder %s30, 1
      %p152 = por %p150, %p151
      %p153 = scmp.ne.s32.totalorder %s142, %s143
      %p154 = scmp.eq.s32.totalorder %s30, 0
      %p155 = por %p153, %p154
      %p156 = scmp.ne.s32.totalorder %s142, %s143
      %p157 = scmp.eq.s32.totalorder %s31, 1
      %p158 = por %p156, %p157
      %p160 = scmp.ne.s32.totalorder %s143, %s159
      %p161 = scmp.eq.s32.totalorder %s31, 0
      %p162 = por %p160, %p161
      %s163 = ssub.s32 %s25, %s32
      %p164 = scmp.eq.s32.totalorder %s163, 0
      %s166 = sadd.s32 %s165, 1
      %s167 = scalar_select %p164, %s165, %s166
      %p170 = pneg %p164
      %p171 = scmp.eq.s32.totalorder %s25, 1
      %p172 = por %p170, %p171
      %p173 = scmp.ne.s32.totalorder %s165, %s168
      %p174 = scmp.eq.s32.totalorder %s25, 0
      %p175 = por %p173, %p174
      %p176 = scmp.ne.s32.totalorder %s165, %s168
      %p177 = scmp.eq.s32.totalorder %s30, 1
      %p178 = por %p176, %p177
      %p179 = scmp.ne.s32.totalorder %s168, %s169
      %p180 = scmp.eq.s32.totalorder %s30, 0
      %p181 = por %p179, %p180
      %p182 = scmp.ne.s32.totalorder %s168, %s169
      %p183 = scmp.eq.s32.totalorder %s31, 1
      %p184 = por %p182, %p183
      %p186 = scmp.ne.s32.totalorder %s169, %s185
      %p187 = scmp.eq.s32.totalorder %s31, 0
      %p188 = por %p186, %p187
      %s189 = ssub.s32 %s25, %s32
      %p190 = scmp.eq.s32.totalorder %s189, 0
      %s192 = sadd.s32 %s191, 1
      %s193 = scalar_select %p190, %s191, %s192
      %p196 = pneg %p190
      %p197 = scmp.eq.s32.totalorder %s25, 1
      %p198 = por %p196, %p197
      %p199 = scmp.ne.s32.totalorder %s191, %s194
      %p200 = scmp.eq.s32.totalorder %s25, 0
      %p201 = por %p199, %p200
      %p202 = scmp.ne.s32.totalorder %s191, %s194
      %p203 = scmp.eq.s32.totalorder %s30, 1
      %p204 = por %p202, %p203
      %p205 = scmp.ne.s32.totalorder %s194, %s195
      %p206 = scmp.eq.s32.totalorder %s30, 0
      %p207 = por %p205, %p206
      %p208 = scmp.ne.s32.totalorder %s194, %s195
      %p209 = scmp.eq.s32.totalorder %s31, 1
      %p210 = por %p208, %p209
      %p212 = scmp.ne.s32.totalorder %s195, %s211
      %p213 = scmp.eq.s32.totalorder %s31, 0
      %p214 = por %p212, %p213
      %s216 = sadd.s32 %s215, 1
      %p219 = scmp.eq.s32.totalorder %s25, 1
      %p220 = scmp.ne.s32.totalorder %s215, %s217
      %p221 = scmp.eq.s32.totalorder %s25, 0
      %p222 = por %p220, %p221
      %p223 = scmp.ne.s32.totalorder %s215, %s217
      %p224 = scmp.eq.s32.totalorder %s30, 1
      %p225 = por %p223, %p224
      %p226 = scmp.ne.s32.totalorder %s217, %s218
      %p227 = scmp.eq.s32.totalorder %s30, 0
      %p228 = por %p226, %p227
      %p229 = scmp.ne.s32.totalorder %s217, %s218
      %p230 = scmp.eq.s32.totalorder %s31, 1
      %p231 = por %p229, %p230
      %p233 = scmp.ne.s32.totalorder %s218, %s232
      %p234 = scmp.eq.s32.totalorder %s31, 0
      %p235 = por %p233, %p234
      %s237 = sadd.s32 %s236, 1
      %p240 = scmp.eq.s32.totalorder %s25, 1
      %p241 = scmp.ne.s32.totalorder %s236, %s238
      %p242 = scmp.eq.s32.totalorder %s25, 0
      %p243 = por %p241, %p242
      %p244 = scmp.ne.s32.totalorder %s236, %s238
      %p245 = scmp.eq.s32.totalorder %s30, 1
      %p246 = por %p244, %p245
      %p247 = scmp.ne.s32.totalorder %s238, %s239
      %p248 = scmp.eq.s32.totalorder %s30, 0
      %p249 = por %p247, %p248
      %p250 = scmp.ne.s32.totalorder %s238, %s239
      %p251 = scmp.eq.s32.totalorder %s31, 1
      %p252 = por %p250, %p251
      %p254 = scmp.ne.s32.totalorder %s239, %s253
      %p255 = scmp.eq.s32.totalorder %s31, 0
      %p256 = por %p254, %p255
      %s258 = sadd.s32 %s257, 1
      %p261 = scmp.eq.s32.totalorder %s25, 1
      %p262 = scmp.ne.s32.totalorder %s257, %s259
      %p263 = scmp.eq.s32.totalorder %s25, 0
      %p264 = por %p262, %p263
      %p265 = scmp.ne.s32.totalorder %s257, %s259
      %p266 = scmp.eq.s32.totalorder %s30, 1
      %p267 = por %p265, %p266
      %p268 = scmp.ne.s32.totalorder %s259, %s260
      %p269 = scmp.eq.s32.totalorder %s30, 0
      %p270 = por %p268, %p269
      %p271 = scmp.ne.s32.totalorder %s259, %s260
      %p272 = scmp.eq.s32.totalorder %s31, 1
      %p273 = por %p271, %p272
      %p275 = scmp.ne.s32.totalorder %s260, %s274
      %p276 = scmp.eq.s32.totalorder %s31, 0
      %p277 = por %p275, %p276
      %s279 = sadd.s32 %s278, 1
      %p282 = scmp.eq.s32.totalorder %s25, 1
      %p283 = scmp.ne.s32.totalorder %s278, %s280
      %p284 = scmp.eq.s32.totalorder %s25, 0
      %p285 = por %p283, %p284
      %p286 = scmp.ne.s32.totalorder %s278, %s280
      %p287 = scmp.eq.s32.totalorder %s30, 1
      %p288 = por %p286, %p287
      %p289 = scmp.ne.s32.totalorder %s280, %s281
      %p290 = scmp.eq.s32.totalorder %s30, 0
      %p291 = por %p289, %p290
      %p292 = scmp.ne.s32.totalorder %s280, %s281
      %p293 = scmp.eq.s32.totalorder %s31, 1
      %p294 = por %p292, %p293
      %p296 = scmp.ne.s32.totalorder %s281, %s295
      %p297 = scmp.eq.s32.totalorder %s31, 0
      %p298 = por %p296, %p297
      %s300 = sadd.s32 %s299, 1
      %p303 = scmp.eq.s32.totalorder %s25, 1
      %p304 = scmp.ne.s32.totalorder %s299, %s301
      %p305 = scmp.eq.s32.totalorder %s25, 0
      %p306 = por %p304, %p305
      %p307 = scmp.ne.s32.totalorder %s299, %s301
      %p308 = scmp.eq.s32.totalorder %s30, 1
      %p309 = por %p307, %p308
      %p310 = scmp.ne.s32.totalorder %s301, %s302
      %p311 = scmp.eq.s32.totalorder %s30, 0
      %p312 = por %p310, %p311
      %p313 = scmp.ne.s32.totalorder %s301, %s302
      %p314 = scmp.eq.s32.totalorder %s31, 1
      %p315 = por %p313, %p314
      %p317 = scmp.ne.s32.totalorder %s302, %s316
      %p318 = scmp.eq.s32.totalorder %s31, 0
      %p319 = por %p317, %p318
      %s321 = sadd.s32 %s320, 1
      %p324 = scmp.eq.s32.totalorder %s25, 1
      %p325 = scmp.ne.s32.totalorder %s320, %s322
      %p326 = scmp.eq.s32.totalorder %s25, 0
      %p327 = por %p325, %p326
      %p328 = scmp.ne.s32.totalorder %s320, %s322
      %p329 = scmp.eq.s32.totalorder %s30, 1
      %p330 = por %p328, %p329
      %p331 = scmp.ne.s32.totalorder %s322, %s323
      %p332 = scmp.eq.s32.totalorder %s30, 0
      %p333 = por %p331, %p332
      %p334 = scmp.ne.s32.totalorder %s322, %s323
      %p335 = scmp.eq.s32.totalorder %s31, 1
      %p336 = por %p334, %p335
      %p338 = scmp.ne.s32.totalorder %s323, %s337
      %p339 = scmp.eq.s32.totalorder %s31, 0
      %p340 = por %p338, %p339
      %s342 = sadd.s32 %s341, 1
      %p345 = scmp.eq.s32.totalorder %s25, 1
      %p346 = scmp.ne.s32.totalorder %s341, %s343
      %p347 = scmp.eq.s32.totalorder %s25, 0
      %p348 = por %p346, %p347
      %p349 = scmp.ne.s32.totalorder %s341, %s343
      %p350 = scmp.eq.s32.totalorder %s30, 1
      %p351 = por %p349, %p350
      %p352 = scmp.ne.s32.totalorder %s343, %s344
      %p353 = scmp.eq.s32.totalorder %s30, 0
      %p354 = por %p352, %p353
      %p355 = scmp.ne.s32.totalorder %s343, %s344
      %p356 = scmp.eq.s32.totalorder %s31, 1
      %p357 = por %p355, %p356
      %p359 = scmp.ne.s32.totalorder %s344, %s358
      %p360 = scmp.eq.s32.totalorder %s31, 0
      %p361 = por %p359, %p360
      %s362 = ssub.s32 %s25, %s32
      %p363 = scmp.eq.s32.totalorder %s362, 0
      %s365 = sadd.s32 %s364, 1
      %s366 = scalar_select %p363, %s364, %s365
      %p369 = pneg %p363
      %p370 = scmp.eq.s32.totalorder %s25, 1
      %p371 = por %p369, %p370
      %p372 = scmp.ne.s32.totalorder %s364, %s367
      %p373 = scmp.eq.s32.totalorder %s25, 0
      %p374 = por %p372, %p373
      %p375 = scmp.ne.s32.totalorder %s364, %s367
      %p376 = scmp.eq.s32.totalorder %s30, 1
      %p377 = por %p375, %p376
      %p378 = scmp.ne.s32.totalorder %s367, %s368
      %p379 = scmp.eq.s32.totalorder %s30, 0
      %p380 = por %p378, %p379
      %p381 = scmp.ne.s32.totalorder %s367, %s368
      %p382 = scmp.eq.s32.totalorder %s31, 1
      %p383 = por %p381, %p382
      %p385 = scmp.ne.s32.totalorder %s368, %s384
      %p386 = scmp.eq.s32.totalorder %s31, 0
      %p387 = por %p385, %p386
      %p388 = scmp.le.s32.totalorder 1, %s25
      %p389 = scmp.lt.s32.totalorder %s25, 3
      %p390 = pnand %p388, %p389
      %p391 = pneg %p390
      // Predicated region
      $region9: #{tpu_custom_call.1} parent=5 // pred_check
        _
      $region10: #{tpu_custom_call.1} parent=5 // pred_check_branch
        %393 = sbr.rel (%p390) target = $region12
      $region11: #{tpu_custom_call.1} parent=5 // pred_region
        %s394 = ssub.s32 %s25, 1
        // Predicated region
        $region13: #{tpu_custom_call.1} parent=11 // pred_check
          %p395 = pneg %p228
        $region14: #{tpu_custom_call.1} parent=11 // pred_check_branch
          %397 = sbr.rel (%p395) target = $region16
        $region15: #{tpu_custom_call.1} parent=11 // pred_region
          %s399 = ssub.s32 512, 512
          %400 = vsyncadd [#allocation4], %s399
          %s401 = sshll.u32 [#allocation3], 4
          %s402 = int_to_ptr.vmem [resolvable:$true] %s401
          %407 = dma.hbm_to_vmem [thread:$0]  %s7, 512, %s402, [#allocation4], 128, 128, 8
        $region16: #{tpu_custom_call.1} parent=11 // pred_fallthru
          _
        // Predicated region
        $region17: #{tpu_custom_call.1} parent=11 // pred_check
          %p408 = pneg %p249
        $region18: #{tpu_custom_call.1} parent=11 // pred_check_branch
          %410 = sbr.rel (%p408) target = $region20
        $region19: #{tpu_custom_call.1} parent=11 // pred_region
          _
        $region20: #{tpu_custom_call.1} parent=11 // pred_fallthru
          _
        // Predicated region
        $region21: #{tpu_custom_call.1} parent=11 // pred_check
          %p411 = pneg %p270
        $region22: #{tpu_custom_call.1} parent=11 // pred_check_branch
          %413 = sbr.rel (%p411) target = $region24
        $region23: #{tpu_custom_call.1} parent=11 // pred_region
          _
        $region24: #{tpu_custom_call.1} parent=11 // pred_fallthru
          _
        // Predicated region
        $region25: #{tpu_custom_call.1} parent=11 // pred_check
          %p414 = pneg %p291
        $region26: #{tpu_custom_call.1} parent=11 // pred_check_branch
          %416 = sbr.rel (%p414) target = $region28
        $region27: #{tpu_custom_call.1} parent=11 // pred_region
          _
        $region28: #{tpu_custom_call.1} parent=11 // pred_fallthru
          _
        // Predicated region
        $region29: #{tpu_custom_call.1} parent=11 // pred_check
          %p417 = pneg %p312
        $region30: #{tpu_custom_call.1} parent=11 // pred_check_branch
          %419 = sbr.rel (%p417) target = $region32
        $region31: #{tpu_custom_call.1} parent=11 // pred_region
          _
        $region32: #{tpu_custom_call.1} parent=11 // pred_fallthru
          _
        // Predicated region
        $region33: #{tpu_custom_call.1} parent=11 // pred_check
          %p420 = pneg %p333
        $region34: #{tpu_custom_call.1} parent=11 // pred_check_branch
          %422 = sbr.rel (%p420) target = $region36
        $region35: #{tpu_custom_call.1} parent=11 // pred_region
          %s424 = ssub.s32 1024, 1024
          %425 = vsyncadd [#allocation7], %s424
          %s426 = sshll.u32 [#allocation6], 4
          %s427 = int_to_ptr.vmem [resolvable:$true] %s426
          %432 = dma.hbm_to_vmem [thread:$0]  %s12, 1024, %s427, [#allocation7], 64, 64, 4
        $region36: #{tpu_custom_call.1} parent=11 // pred_fallthru
          _
        // Predicated region
        $region37: #{tpu_custom_call.1} parent=11 // pred_check
          %p433 = pneg %p354
        $region38: #{tpu_custom_call.1} parent=11 // pred_check_branch
          %435 = sbr.rel (%p433) target = $region40
        $region39: #{tpu_custom_call.1} parent=11 // pred_region
          _
        $region40: #{tpu_custom_call.1} parent=11 // pred_fallthru
          _
      $region12: #{tpu_custom_call.1} parent=5 // pred_fallthru
        _
      %p436 = scmp.lt.s32.totalorder %s25, 2
      // Predicated region
      $region41: #{tpu_custom_call.1} parent=5 // pred_check
        %p437 = pneg %p436
      $region42: #{tpu_custom_call.1} parent=5 // pred_check_branch
        %439 = sbr.rel (%p437) target = $region44
      $region43: #{tpu_custom_call.1} parent=5 // pred_region
        // Predicated region
        $region45: #{tpu_custom_call.1} parent=43 // pred_check
          %p440 = pneg %p45
        $region46: #{tpu_custom_call.1} parent=43 // pred_check_branch
          %442 = sbr.rel (%p440) target = $region48
        $region47: #{tpu_custom_call.1} parent=43 // pred_region
          %p443 = scmp.lt.s32.totalorder %s25, 1
          %s444 = scalar_select %p443, %s25, 1
          %s445 = smul.addr %s444, 64
          %s446 = smul.addr %s445, 4
          %s447 = scalar_lea.vmem %s0, %s446
        $region48: #{tpu_custom_call.1} parent=43 // pred_fallthru
          _
        // Predicated region
        $region49: #{tpu_custom_call.1} parent=43 // pred_check
          %p448 = pneg %p71
        $region50: #{tpu_custom_call.1} parent=43 // pred_check_branch
          %450 = sbr.rel (%p448) target = $region52
        $region51: #{tpu_custom_call.1} parent=43 // pred_region
          %p451 = scmp.lt.s32.totalorder %s25, 1
          %s452 = scalar_select %p451, %s25, 1
          %s453 = smul.addr %s452, 32
          %s454 = smul.addr %s453, 4
          %s455 = scalar_lea.vmem %s1, %s454
        $region52: #{tpu_custom_call.1} parent=43 // pred_fallthru
          _
        // Predicated region
        $region53: #{tpu_custom_call.1} parent=43 // pred_check
          %p456 = pneg %p97
        $region54: #{tpu_custom_call.1} parent=43 // pred_check_branch
          %458 = sbr.rel (%p456) target = $region56
        $region55: #{tpu_custom_call.1} parent=43 // pred_region
          %p459 = scmp.lt.s32.totalorder %s25, 1
          %s460 = scalar_select %p459, %s25, 1
          %s461 = smul.addr %s460, 32
          %s462 = smul.addr %s461, 4
          %s463 = scalar_lea.vmem %s2, %s462
        $region56: #{tpu_custom_call.1} parent=43 // pred_fallthru
          _
        // Predicated region
        $region57: #{tpu_custom_call.1} parent=43 // pred_check
          %p464 = pneg %p123
        $region58: #{tpu_custom_call.1} parent=43 // pred_check_branch
          %466 = sbr.rel (%p464) target = $region60
        $region59: #{tpu_custom_call.1} parent=43 // pred_region
          %p467 = scmp.lt.s32.totalorder %s25, 1
          %s468 = scalar_select %p467, %s25, 1
          %s469 = smul.addr %s468, 32
          %s470 = smul.addr %s469, 4
          %s471 = scalar_lea.vmem %s3, %s470
        $region60: #{tpu_custom_call.1} parent=43 // pred_fallthru
          _
        // Predicated region
        $region61: #{tpu_custom_call.1} parent=43 // pred_check
          %p472 = pneg %p149
        $region62: #{tpu_custom_call.1} parent=43 // pred_check_branch
          %474 = sbr.rel (%p472) target = $region64
        $region63: #{tpu_custom_call.1} parent=43 // pred_region
          %p475 = scmp.lt.s32.totalorder %s25, 1
          %s476 = scalar_select %p475, %s25, 1
          %s477 = smul.addr %s476, 16
          %s478 = smul.addr %s477, 4
          %s479 = scalar_lea.vmem %s4, %s478
        $region64: #{tpu_custom_call.1} parent=43 // pred_fallthru
          _
        // Predicated region
        $region65: #{tpu_custom_call.1} parent=43 // pred_check
          %p480 = pneg %p175
        $region66: #{tpu_custom_call.1} parent=43 // pred_check_branch
          %482 = sbr.rel (%p480) target = $region68
        $region67: #{tpu_custom_call.1} parent=43 // pred_region
          %p483 = scmp.lt.s32.totalorder %s25, 1
          %s484 = scalar_select %p483, %s25, 1
          %s485 = smul.addr %s484, 4
          %s486 = scalar_lea.vmem %s5, %s485
        $region68: #{tpu_custom_call.1} parent=43 // pred_fallthru
          _
        // Predicated region
        $region69: #{tpu_custom_call.1} parent=43 // pred_check
          %p487 = pneg %p201
        $region70: #{tpu_custom_call.1} parent=43 // pred_check_branch
          %489 = sbr.rel (%p487) target = $region72
        $region71: #{tpu_custom_call.1} parent=43 // pred_region
          %p490 = scmp.lt.s32.totalorder %s25, 1
          %s491 = scalar_select %p490, %s25, 1
          %s492 = smul.addr %s491, 8
          %s493 = scalar_lea.vmem %s6, %s492
        $region72: #{tpu_custom_call.1} parent=43 // pred_fallthru
          _
      $region44: #{tpu_custom_call.1} parent=5 // pred_fallthru
        _
      %p494 = scmp.le.s32.totalorder 1, %s25
      %p495 = scmp.lt.s32.totalorder %s25, 3
      %p496 = pnand %p494, %p495
      %p497 = pneg %p496
      // Predicated region
      $region73: #{tpu_custom_call.1} parent=5 // pred_check
        _
      $region74: #{tpu_custom_call.1} parent=5 // pred_check_branch
        %499 = sbr.rel (%p496) target = $region76
      $region75: #{tpu_custom_call.1} parent=5 // pred_region
        %s500 = ssub.s32 %s25, 1
        // Predicated region
        $region77: #{tpu_custom_call.1} parent=75 // pred_check
          %p501 = pneg %p228
        $region78: #{tpu_custom_call.1} parent=75 // pred_check_branch
          %503 = sbr.rel (%p501) target = $region80
        $region79: #{tpu_custom_call.1} parent=75 // pred_region
          %504 = dma.done [#allocation4], 512
        $region80: #{tpu_custom_call.1} parent=75 // pred_fallthru
          _
        // Predicated region
        $region81: #{tpu_custom_call.1} parent=75 // pred_check
          %p505 = pneg %p333
        $region82: #{tpu_custom_call.1} parent=75 // pred_check_branch
          %507 = sbr.rel (%p505) target = $region84
        $region83: #{tpu_custom_call.1} parent=75 // pred_region
          %508 = dma.done [#allocation7], 1024
        $region84: #{tpu_custom_call.1} parent=75 // pred_fallthru
          _
        %p509 = scmp.lt.s32.totalorder %s30, 1
        %s510 = scalar_select %p509, %s30, 1
        %s511 = smul.addr %s510, 64
        %s512 = smul.addr %s511, 4
        %s513 = scalar_lea.vmem %s0, %s512
        %p514 = pneg %p51
        %p515 = pneg %p48
        %p516 = scmp.lt.s32.totalorder %s30, 1
        %s517 = scalar_select %p516, %s30, 1
        %s518 = smul.addr %s517, 32
        %s519 = smul.addr %s518, 4
        %s520 = scalar_lea.vmem %s1, %s519
        %p521 = pneg %p77
        %p522 = pneg %p74
        %p523 = scmp.lt.s32.totalorder %s30, 1
        %s524 = scalar_select %p523, %s30, 1
        %s525 = smul.addr %s524, 32
        %s526 = smul.addr %s525, 4
        %s527 = scalar_lea.vmem %s2, %s526
        %p528 = pneg %p103
        %p529 = pneg %p100
        %p530 = scmp.lt.s32.totalorder %s30, 1
        %s531 = scalar_select %p530, %s30, 1
        %s532 = smul.addr %s531, 32
        %s533 = smul.addr %s532, 4
        %s534 = scalar_lea.vmem %s3, %s533
        %p535 = pneg %p129
        %p536 = pneg %p126
        %p537 = scmp.lt.s32.totalorder %s30, 1
        %s538 = scalar_select %p537, %s30, 1
        %s539 = smul.addr %s538, 16
        %s540 = smul.addr %s539, 4
        %s541 = scalar_lea.vmem %s4, %s540
        %p542 = pneg %p155
        %p543 = pneg %p152
        %p544 = scmp.lt.s32.totalorder %s30, 1
        %s545 = scalar_select %p544, %s30, 1
        %s546 = smul.addr %s545, 4
        %s547 = scalar_lea.vmem %s5, %s546
        %p548 = pneg %p181
        %p549 = pneg %p178
        %p550 = scmp.lt.s32.totalorder %s30, 1
        %s551 = scalar_select %p550, %s30, 1
        %s552 = smul.addr %s551, 8
        %s553 = scalar_lea.vmem %s6, %s552
        %p554 = pneg %p207
        %p555 = pneg %p204
        %p556 = pneg %p228
        %p557 = pneg %p225
        %p558 = pneg %p249
        %p559 = pneg %p246
        %p560 = pneg %p270
        %p561 = pneg %p267
        %p562 = pneg %p291
        %p563 = pneg %p288
        %p564 = pneg %p312
        %p565 = pneg %p309
        %p566 = pneg %p333
        %p567 = pneg %p330
        %p568 = pneg %p354
        %p569 = pneg %p351
        %p570 = pneg %p380
        %p571 = pneg %p377
        %s572 = sand.u32 %s367, 1
        %s573 = scalar_lea.sflag [#allocation5], %s572
        %s574 = sand.u32 %s367, 1
        %s575 = smul.addr %s574, 8
        %s576 = scalar_lea.vmem [#allocation8], %s575
        %p577 = scmp.lt.s32.totalorder %s30, 1
        %s578 = scalar_select %p577, %s30, 1
        %s579 = smul.addr %s578, 64
        %s580 = smul.addr %s579, 4
        %s581 = scalar_lea.vmem %s0, %s580
        %p582 = scmp.lt.s32.totalorder %s30, 1
        %s583 = scalar_select %p582, %s30, 1
        %s584 = smul.addr %s583, 32
        %s585 = smul.addr %s584, 4
        %s586 = scalar_lea.vmem %s1, %s585
        %p587 = scmp.lt.s32.totalorder %s30, 1
        %s588 = scalar_select %p587, %s30, 1
        %s589 = smul.addr %s588, 32
        %s590 = smul.addr %s589, 4
        %s591 = scalar_lea.vmem %s2, %s590
        %p592 = scmp.lt.s32.totalorder %s30, 1
        %s593 = scalar_select %p592, %s30, 1
        %s594 = smul.addr %s593, 32
        %s595 = smul.addr %s594, 4
        %s596 = scalar_lea.vmem %s3, %s595
        %p597 = scmp.lt.s32.totalorder %s30, 1
        %s598 = scalar_select %p597, %s30, 1
        %s599 = smul.addr %s598, 16
        %s600 = smul.addr %s599, 4
        %s601 = scalar_lea.vmem %s4, %s600
        %p602 = scmp.lt.s32.totalorder %s30, 1
        %s603 = scalar_select %p602, %s30, 1
        %s604 = smul.addr %s603, 4
        %s605 = scalar_lea.vmem %s5, %s604
        %p606 = scmp.lt.s32.totalorder %s30, 1
        %s607 = scalar_select %p606, %s30, 1
        %s608 = smul.addr %s607, 8
        %s609 = scalar_lea.vmem %s6, %s608
        %v611 = vld [vmem:[%s13] sm:$0x1]
        %v612 = vld [vmem:[%s13 + $0x3] sm:$0x1]
        %v613 = vld [vmem:[%s13 + $0x4] sm:$0x1]
        %v614 = vld [vmem:[%s13 + $0x5] sm:$0x1]
        %v615 = vld [vmem:[%s13 + $0x1] sm:$0x1]
        %v616 = vlaneseq
        %v617 = vshrl.u32 %v616, 7
        %v618 = vsub.s32 0, %v617
        %v619 = vrot.slane %v615, %v618
        %v620 = vld [vmem:[%s13 + $0x2] sm:$0x1]
        %v621 = vlaneseq
        %v622 = vshrl.u32 %v621, 7
        %v623 = vsub.s32 0, %v622
        %v624 = vrot.slane %v620, %v623
        %v625 = vld [vmem:[%s601] sm:$0xf]
        %v626 = vld [vmem:[%s601 + $0x4] sm:$0xf]
        %v627 = vld [vmem:[%s601 + $0x8] sm:$0xf]
        %v628 = vld [vmem:[%s601 + $0xc] sm:$0xf]
        %v629 = vld [vmem:[%s601 + $0x10] sm:$0xf]
        %v630 = vld [vmem:[%s601 + $0x14] sm:$0xf]
        %v631 = vld [vmem:[%s601 + $0x18] sm:$0xf]
        %v632 = vld [vmem:[%s601 + $0x1c] sm:$0xf]
        %v633 = vld [vmem:[%s601 + $0x20] sm:$0xf]
        %v634 = vld [vmem:[%s601 + $0x24] sm:$0xf]
        %v635 = vld [vmem:[%s601 + $0x28] sm:$0xf]
        %v636 = vld [vmem:[%s601 + $0x2c] sm:$0xf]
        %v637 = vld [vmem:[%s601 + $0x30] sm:$0xf]
        %v638 = vld [vmem:[%s601 + $0x34] sm:$0xf]
        %v639 = vld [vmem:[%s601 + $0x38] sm:$0xf]
        %v640 = vld [vmem:[%s601 + $0x3c] sm:$0xf]
        %v641 = vld [vmem:[#allocation3] sm:$0xff]
        %v642 = vld [vmem:[#allocation3 + $0x8] sm:$0xff]
        %v643 = vld [vmem:[#allocation3 + $0x10] sm:$0xff]
        %v644 = vld [vmem:[#allocation3 + $0x18] sm:$0xff]
        %v661 = vunpack.c.l.b16 %v625
        %v662 = vunpack.c.l.b16 %v626
        %v663 = vunpack.c.l.b16 %v627
        %v664 = vunpack.c.l.b16 %v628
        %v665 = vunpack.c.l.b16 %v629
        %v666 = vunpack.c.l.b16 %v630
        %v667 = vunpack.c.l.b16 %v631
        %v668 = vunpack.c.l.b16 %v632
        %v669 = vunpack.c.l.b16 %v633
        %v670 = vunpack.c.l.b16 %v634
        %v671 = vunpack.c.l.b16 %v635
        %v672 = vunpack.c.l.b16 %v636
        %v673 = vunpack.c.l.b16 %v637
        %v674 = vunpack.c.l.b16 %v638
        %v675 = vunpack.c.l.b16 %v639
        %v676 = vunpack.c.l.b16 %v640
        %v677 = vpack.c.b16 %v662, %v661
        %v678 = vpack.c.b16 %v664, %v663
        %v679 = vpack.c.b16 %v666, %v665
        %v680 = vpack.c.b16 %v668, %v667
        %v681 = vpack.c.b16 %v670, %v669
        %v682 = vpack.c.b16 %v672, %v671
        %v683 = vpack.c.b16 %v674, %v673
        %v684 = vpack.c.b16 %v676, %v675
        %v689 = vunpack.c.l.b16 %v641
        %v690 = vunpack.c.h.b16 %v641
        %v691 = vunpack.c.l.b16 %v642
        %v692 = vunpack.c.h.b16 %v642
        %v693 = vunpack.c.l.b16 %v643
        %v694 = vunpack.c.h.b16 %v643
        %v695 = vunpack.c.l.b16 %v644
        %v696 = vunpack.c.h.b16 %v644
        %v697 = vpack.c.b16 %v691, %v689
        %v698 = vpack.c.b16 %v692, %v690
        %v699 = vpack.c.b16 %v695, %v693
        %v700 = vpack.c.b16 %v696, %v694
        %vm705 = vcmask 261120
        %v707 = vsel %vm705, %v677, 0
        %v710 = vsel %vm705, %v678, 0
        %v713 = vsel %vm705, %v679, 0
        %v716 = vsel %vm705, %v680, 0
        %v719 = vsel %vm705, %v681, 0
        %v722 = vsel %vm705, %v682, 0
        %v725 = vsel %vm705, %v683, 0
        %v728 = vsel %vm705, %v684, 0
        %730 = vmatprep.subr.bf16.mxu0 0
        %731 = vmatpush1.bf16.msra.mxu0 0
        %732 = vmatprep.subr.bf16.mxu0 0
        %733 = vmatpush1.bf16.msra.mxu0 0
        %734 = vmatprep.subr.bf16.mxu0 0
        %735 = vmatpush1.bf16.msra.mxu0 0
        %736 = vmatprep.subr.bf16.mxu0 0
        %737 = vmatpush1.bf16.msra.mxu0 0
        %738 = vmatprep.subr.bf16.mxu0 0
        %739 = vmatpush1.bf16.msra.mxu0 0
        %740 = vmatprep.subr.bf16.mxu0 0
        %741 = vmatpush1.bf16.msra.mxu0 0
        %742 = vmatprep.subr.bf16.mxu0 %v700
        %743 = vmatpush1.bf16.msra.mxu0 %v699
        %744 = vmatprep.subr.bf16.mxu0 %v698
        %745 = vmatpush1.bf16.msra.mxu0 %v697
        %746 = vmatprep.subr.bf16.mxu0 0
        %747 = vmatpush2.bf16.msra.mxu0 0
        %748 = vmatprep.subr.bf16.mxu0 0
        %749 = vmatpush2.bf16.msra.mxu0 0
        %750 = vmatprep.subr.bf16.mxu0 0
        %751 = vmatpush2.bf16.msra.mxu0 0
        %752 = vmatprep.subr.bf16.mxu0 0
        %753 = vmatpush2.bf16.msra.mxu0 0
        %754 = vmatprep.subr.bf16.mxu0 0
        %755 = vmatpush2.bf16.msra.mxu0 0
        %756 = vmatprep.subr.bf16.mxu0 0
        %757 = vmatpush2.bf16.msra.mxu0 0
        %758 = vmatprep.subr.bf16.mxu0 0
        %759 = vmatpush2.bf16.msra.mxu0 0
        %760 = vmatprep.subr.bf16.mxu0 0
        %761 = vmatpush2.bf16.msra.mxu0 0
        %762 = vmatprep.mubr.bf16.mxu0 0
        %763 = vmatmul.mubr.bf16.gmra.mxu0 %v707
        %v764 = vpop.f32.mrf.mxu0
        %v765 = vadd.f32 0.0, %v764
        %v766 = vpop.f32.mrf.mxu0
        %v767 = vadd.f32 0.0, %v766
        %v768 = vpop.f32.mrf.mxu0
        %v769 = vadd.f32 0.0, %v768
        %v770 = vpop.f32.mrf.mxu0
        %v771 = vadd.f32 0.0, %v770
        %772 = vmatprep.mubr.bf16.mxu0 0
        %773 = vmatmul.mubr.bf16.gmra.mxu0 %v710
        %v774 = vpop.f32.mrf.mxu0
        %v775 = vadd.f32 0.0, %v774
        %v776 = vpop.f32.mrf.mxu0
        %v777 = vadd.f32 0.0, %v776
        %v778 = vpop.f32.mrf.mxu0
        %v779 = vadd.f32 0.0, %v778
        %v780 = vpop.f32.mrf.mxu0
        %v781 = vadd.f32 0.0, %v780
        %782 = vmatprep.mubr.bf16.mxu0 0
        %783 = vmatmul.mubr.bf16.gmra.mxu0 %v713
        %v784 = vpop.f32.mrf.mxu0
        %v785 = vadd.f32 0.0, %v784
        %v786 = vpop.f32.mrf.mxu0
        %v787 = vadd.f32 0.0, %v786
        %v788 = vpop.f32.mrf.mxu0
        %v789 = vadd.f32 0.0, %v788
        %v790 = vpop.f32.mrf.mxu0
        %v791 = vadd.f32 0.0, %v790
        %792 = vmatprep.mubr.bf16.mxu0 0
        %793 = vmatmul.mubr.bf16.gmra.mxu0 %v716
        %v794 = vpop.f32.mrf.mxu0
        %v795 = vadd.f32 0.0, %v794
        %v796 = vpop.f32.mrf.mxu0
        %v797 = vadd.f32 0.0, %v796
        %v798 = vpop.f32.mrf.mxu0
        %v799 = vadd.f32 0.0, %v798
        %v800 = vpop.f32.mrf.mxu0
        %v801 = vadd.f32 0.0, %v800
        %802 = vmatprep.mubr.bf16.mxu0 0
        %803 = vmatmul.mubr.bf16.gmra.mxu0 %v719
        %v804 = vpop.f32.mrf.mxu0
        %v805 = vadd.f32 0.0, %v804
        %v806 = vpop.f32.mrf.mxu0
        %v807 = vadd.f32 0.0, %v806
        %v808 = vpop.f32.mrf.mxu0
        %v809 = vadd.f32 0.0, %v808
        %v810 = vpop.f32.mrf.mxu0
        %v811 = vadd.f32 0.0, %v810
        %812 = vmatprep.mubr.bf16.mxu0 0
        %813 = vmatmul.mubr.bf16.gmra.mxu0 %v722
        %v814 = vpop.f32.mrf.mxu0
        %v815 = vadd.f32 0.0, %v814
        %v816 = vpop.f32.mrf.mxu0
        %v817 = vadd.f32 0.0, %v816
        %v818 = vpop.f32.mrf.mxu0
        %v819 = vadd.f32 0.0, %v818
        %v820 = vpop.f32.mrf.mxu0
        %v821 = vadd.f32 0.0, %v820
        %822 = vmatprep.mubr.bf16.mxu0 0
        %823 = vmatmul.mubr.bf16.gmra.mxu0 %v725
        %v824 = vpop.f32.mrf.mxu0
        %v825 = vadd.f32 0.0, %v824
        %v826 = vpop.f32.mrf.mxu0
        %v827 = vadd.f32 0.0, %v826
        %v828 = vpop.f32.mrf.mxu0
        %v829 = vadd.f32 0.0, %v828
        %v830 = vpop.f32.mrf.mxu0
        %v831 = vadd.f32 0.0, %v830
        %832 = vmatprep.mubr.bf16.mxu0 0
        %833 = vmatmul.mubr.bf16.gmra.mxu0 %v728
        %v834 = vpop.f32.mrf.mxu0
        %v835 = vadd.f32 0.0, %v834
        %v836 = vpop.f32.mrf.mxu0
        %v837 = vadd.f32 0.0, %v836
        %v838 = vpop.f32.mrf.mxu0
        %v839 = vadd.f32 0.0, %v838
        %v840 = vpop.f32.mrf.mxu0
        %v841 = vadd.f32 0.0, %v840
        %842 = vdwg.mxu0
        %v843 = vpack.c.bf16 %v769, %v765
        %v844 = vpack.c.bf16 %v779, %v775
        %v845 = vpack.c.bf16 %v789, %v785
        %v846 = vpack.c.bf16 %v799, %v795
        %v847 = vpack.c.bf16 %v809, %v805
        %v848 = vpack.c.bf16 %v819, %v815
        %v849 = vpack.c.bf16 %v829, %v825
        %v850 = vpack.c.bf16 %v839, %v835
        %v851 = vld [vmem:[%s8] sm:$0xf]
        %v852 = vld [vmem:[%s8 + $0x4] sm:$0xf]
        %v855 = vunpack.c.l.b16 %v851
        %v856 = vunpack.c.l.b16 %v852
        %v857 = vpack.c.b16 %v856, %v855
        %v859 = vld [vmem:[%s581] sm:$0xff]
        %v860 = vld [vmem:[%s581 + $0x8] sm:$0xff]
        %v861 = vld [vmem:[%s581 + $0x10] sm:$0xff]
        %v862 = vld [vmem:[%s581 + $0x18] sm:$0xff]
        %v863 = vld [vmem:[%s581 + $0x20] sm:$0xff]
        %v864 = vld [vmem:[%s581 + $0x28] sm:$0xff]
        %v865 = vld [vmem:[%s581 + $0x30] sm:$0xff]
        %v866 = vld [vmem:[%s581 + $0x38] sm:$0xff]
        %v867 = vld [vmem:[%s581 + $0x40] sm:$0xff]
        %v868 = vld [vmem:[%s581 + $0x48] sm:$0xff]
        %v869 = vld [vmem:[%s581 + $0x50] sm:$0xff]
        %v870 = vld [vmem:[%s581 + $0x58] sm:$0xff]
        %v871 = vld [vmem:[%s581 + $0x60] sm:$0xff]
        %v872 = vld [vmem:[%s581 + $0x68] sm:$0xff]
        %v873 = vld [vmem:[%s581 + $0x70] sm:$0xff]
        %v874 = vld [vmem:[%s581 + $0x78] sm:$0xff]
        %v875 = vld [vmem:[%s581 + $0x80] sm:$0xff]
        %v876 = vld [vmem:[%s581 + $0x88] sm:$0xff]
        %v877 = vld [vmem:[%s581 + $0x90] sm:$0xff]
        %v878 = vld [vmem:[%s581 + $0x98] sm:$0xff]
        %v879 = vld [vmem:[%s581 + $0xa0] sm:$0xff]
        %v880 = vld [vmem:[%s581 + $0xa8] sm:$0xff]
        %v881 = vld [vmem:[%s581 + $0xb0] sm:$0xff]
        %v882 = vld [vmem:[%s581 + $0xb8] sm:$0xff]
        %v883 = vld [vmem:[%s581 + $0xc0] sm:$0xff]
        %v884 = vld [vmem:[%s581 + $0xc8] sm:$0xff]
        %v885 = vld [vmem:[%s581 + $0xd0] sm:$0xff]
        %v886 = vld [vmem:[%s581 + $0xd8] sm:$0xff]
        %v887 = vld [vmem:[%s581 + $0xe0] sm:$0xff]
        %v888 = vld [vmem:[%s581 + $0xe8] sm:$0xff]
        %v889 = vld [vmem:[%s581 + $0xf0] sm:$0xff]
        %v890 = vld [vmem:[%s581 + $0xf8] sm:$0xff]
        %v891 = vlaneseq
        %v892 = vshrl.u32 %v891, 7
        %v893 = vsub.s32 0, %v892
        %v894 = vrot.slane %v611, %v893
        %v927 = vunpack.c.l.b16 %v859
        %v928 = vunpack.c.h.b16 %v859
        %v929 = vunpack.c.l.b16 %v860
        %v930 = vunpack.c.h.b16 %v860
        %v931 = vunpack.c.l.b16 %v861
        %v932 = vunpack.c.h.b16 %v861
        %v933 = vunpack.c.l.b16 %v862
        %v934 = vunpack.c.h.b16 %v862
        %v935 = vunpack.c.l.b16 %v863
        %v936 = vunpack.c.h.b16 %v863
        %v937 = vunpack.c.l.b16 %v864
        %v938 = vunpack.c.h.b16 %v864
        %v939 = vunpack.c.l.b16 %v865
        %v940 = vunpack.c.h.b16 %v865
        %v941 = vunpack.c.l.b16 %v866
        %v942 = vunpack.c.h.b16 %v866
        %v943 = vunpack.c.l.b16 %v867
        %v944 = vunpack.c.h.b16 %v867
        %v945 = vunpack.c.l.b16 %v868
        %v946 = vunpack.c.h.b16 %v868
        %v947 = vunpack.c.l.b16 %v869
        %v948 = vunpack.c.h.b16 %v869
        %v949 = vunpack.c.l.b16 %v870
        %v950 = vunpack.c.h.b16 %v870
        %v951 = vunpack.c.l.b16 %v871
        %v952 = vunpack.c.h.b16 %v871
        %v953 = vunpack.c.l.b16 %v872
        %v954 = vunpack.c.h.b16 %v872
        %v955 = vunpack.c.l.b16 %v873
        %v956 = vunpack.c.h.b16 %v873
        %v957 = vunpack.c.l.b16 %v874
        %v958 = vunpack.c.h.b16 %v874
        %v959 = vunpack.c.l.b16 %v875
        %v960 = vunpack.c.h.b16 %v875
        %v961 = vunpack.c.l.b16 %v876
        %v962 = vunpack.c.h.b16 %v876
        %v963 = vunpack.c.l.b16 %v877
        %v964 = vunpack.c.h.b16 %v877
        %v965 = vunpack.c.l.b16 %v878
        %v966 = vunpack.c.h.b16 %v878
        %v967 = vunpack.c.l.b16 %v879
        %v968 = vunpack.c.h.b16 %v879
        %v969 = vunpack.c.l.b16 %v880
        %v970 = vunpack.c.h.b16 %v880
        %v971 = vunpack.c.l.b16 %v881
        %v972 = vunpack.c.h.b16 %v881
        %v973 = vunpack.c.l.b16 %v882
        %v974 = vunpack.c.h.b16 %v882
        %v975 = vunpack.c.l.b16 %v883
        %v976 = vunpack.c.h.b16 %v883
        %v977 = vunpack.c.l.b16 %v884
        %v978 = vunpack.c.h.b16 %v884
        %v979 = vunpack.c.l.b16 %v885
        %v980 = vunpack.c.h.b16 %v885
        %v981 = vunpack.c.l.b16 %v886
        %v982 = vunpack.c.h.b16 %v886
        %v983 = vunpack.c.l.b16 %v887
        %v984 = vunpack.c.h.b16 %v887
        %v985 = vunpack.c.l.b16 %v888
        %v986 = vunpack.c.h.b16 %v888
        %v987 = vunpack.c.l.b16 %v889
        %v988 = vunpack.c.h.b16 %v889
        %v989 = vunpack.c.l.b16 %v890
        %v990 = vunpack.c.h.b16 %v890
        %v991 = vpack.c.b16 %v929, %v927
        %v992 = vpack.c.b16 %v930, %v928
        %v993 = vpack.c.b16 %v933, %v931
        %v994 = vpack.c.b16 %v934, %v932
        %v995 = vpack.c.b16 %v937, %v935
        %v996 = vpack.c.b16 %v938, %v936
        %v997 = vpack.c.b16 %v941, %v939
        %v998 = vpack.c.b16 %v942, %v940
        %v999 = vpack.c.b16 %v945, %v943
        %v1000 = vpack.c.b16 %v946, %v944
        %v1001 = vpack.c.b16 %v949, %v947
        %v1002 = vpack.c.b16 %v950, %v948
        %v1003 = vpack.c.b16 %v953, %v951
        %v1004 = vpack.c.b16 %v954, %v952
        %v1005 = vpack.c.b16 %v957, %v955
        %v1006 = vpack.c.b16 %v958, %v956
        %v1007 = vpack.c.b16 %v961, %v959
        %v1008 = vpack.c.b16 %v962, %v960
        %v1009 = vpack.c.b16 %v965, %v963
        %v1010 = vpack.c.b16 %v966, %v964
        %v1011 = vpack.c.b16 %v969, %v967
        %v1012 = vpack.c.b16 %v970, %v968
        %v1013 = vpack.c.b16 %v973, %v971
        %v1014 = vpack.c.b16 %v974, %v972
        %v1015 = vpack.c.b16 %v977, %v975
        %v1016 = vpack.c.b16 %v978, %v976
        %v1017 = vpack.c.b16 %v981, %v979
        %v1018 = vpack.c.b16 %v982, %v980
        %v1019 = vpack.c.b16 %v985, %v983
        %v1020 = vpack.c.b16 %v986, %v984
        %v1021 = vpack.c.b16 %v989, %v987
        %v1022 = vpack.c.b16 %v990, %v988
        %vm1039 = vcmask 130048
        %v1041 = vsel %vm1039, %v992, 0
        %v1044 = vsel %vm1039, %v994, 0
        %v1047 = vsel %vm1039, %v996, 0
        %v1050 = vsel %vm1039, %v998, 0
        %v1053 = vsel %vm1039, %v1000, 0
        %v1056 = vsel %vm1039, %v1002, 0
        %v1059 = vsel %vm1039, %v1004, 0
        %v1062 = vsel %vm1039, %v1006, 0
        %v1065 = vsel %vm1039, %v1008, 0
        %v1068 = vsel %vm1039, %v1010, 0
        %v1071 = vsel %vm1039, %v1012, 0
        %v1074 = vsel %vm1039, %v1014, 0
        %v1077 = vsel %vm1039, %v1016, 0
        %v1080 = vsel %vm1039, %v1018, 0
        %v1083 = vsel %vm1039, %v1020, 0
        %v1086 = vsel %vm1039, %v1022, 0
        %1088 = vmatprep.subr.bf16.mxu0 0
        %1089 = vmatpush1.bf16.msra.mxu0 %v850
        %1090 = vmatprep.subr.bf16.mxu0 0
        %1091 = vmatpush1.bf16.msra.mxu0 %v849
        %1092 = vmatprep.subr.bf16.mxu0 0
        %1093 = vmatpush1.bf16.msra.mxu0 %v848
        %1094 = vmatprep.subr.bf16.mxu0 0
        %1095 = vmatpush1.bf16.msra.mxu0 %v847
        %1096 = vmatprep.subr.bf16.mxu0 0
        %1097 = vmatpush1.bf16.msra.mxu0 %v846
        %1098 = vmatprep.subr.bf16.mxu0 0
        %1099 = vmatpush1.bf16.msra.mxu0 %v845
        %1100 = vmatprep.subr.bf16.mxu0 0
        %1101 = vmatpush1.bf16.msra.mxu0 %v844
        %1102 = vmatprep.subr.bf16.mxu0 0
        %1103 = vmatpush1.bf16.msra.mxu0 %v843
        %1104 = vmatprep.subr.bf16.mxu0 0
        %1105 = vmatpush2.bf16.msra.mxu0 0
        %1106 = vmatprep.subr.bf16.mxu0 0
        %1107 = vmatpush2.bf16.msra.mxu0 0
        %1108 = vmatprep.subr.bf16.mxu0 0
        %1109 = vmatpush2.bf16.msra.mxu0 0
        %1110 = vmatprep.subr.bf16.mxu0 0
        %1111 = vmatpush2.bf16.msra.mxu0 0
        %1112 = vmatprep.subr.bf16.mxu0 0
        %1113 = vmatpush2.bf16.msra.mxu0 0
        %1114 = vmatprep.subr.bf16.mxu0 0
        %1115 = vmatpush2.bf16.msra.mxu0 0
        %1116 = vmatprep.subr.bf16.mxu0 0
        %1117 = vmatpush2.bf16.msra.mxu0 0
        %1118 = vmatprep.subr.bf16.mxu0 0
        %1119 = vmatpush2.bf16.msra.mxu0 %v857
        %1120 = vmatprep.mubr.bf16.mxu0 %v1041
        %1121 = vmatmul.mubr.bf16.gmra.mxu0 %v991
        %v1122 = vpop.f32.mrf.mxu0
        %v1123 = vadd.f32 %v894, %v1122
        %v1124 = vpop.f32.mrf.mxu0
        %v1125 = vpop.f32.mrf.mxu0
        %v1126 = vadd.f32 %v894, %v1125
        %v1127 = vpop.f32.mrf.mxu0
        %1128 = vmatprep.mubr.bf16.mxu0 %v1044
        %1129 = vmatmul.mubr.bf16.gmra.mxu0 %v993
        %v1130 = vpop.f32.mrf.mxu0
        %v1131 = vadd.f32 %v894, %v1130
        %v1132 = vpop.f32.mrf.mxu0
        %v1133 = vpop.f32.mrf.mxu0
        %v1134 = vadd.f32 %v894, %v1133
        %v1135 = vpop.f32.mrf.mxu0
        %1136 = vmatprep.mubr.bf16.mxu0 %v1047
        %1137 = vmatmul.mubr.bf16.gmra.mxu0 %v995
        %v1138 = vpop.f32.mrf.mxu0
        %v1139 = vadd.f32 %v894, %v1138
        %v1140 = vpop.f32.mrf.mxu0
        %v1141 = vpop.f32.mrf.mxu0
        %v1142 = vadd.f32 %v894, %v1141
        %v1143 = vpop.f32.mrf.mxu0
        %1144 = vmatprep.mubr.bf16.mxu0 %v1050
        %1145 = vmatmul.mubr.bf16.gmra.mxu0 %v997
        %v1146 = vpop.f32.mrf.mxu0
        %v1147 = vadd.f32 %v894, %v1146
        %v1148 = vpop.f32.mrf.mxu0
        %v1149 = vpop.f32.mrf.mxu0
        %v1150 = vadd.f32 %v894, %v1149
        %v1151 = vpop.f32.mrf.mxu0
        %1152 = vmatprep.mubr.bf16.mxu0 %v1053
        %1153 = vmatmul.mubr.bf16.gmra.mxu0 %v999
        %v1154 = vpop.f32.mrf.mxu0
        %v1155 = vadd.f32 %v894, %v1154
        %v1156 = vpop.f32.mrf.mxu0
        %v1157 = vpop.f32.mrf.mxu0
        %v1158 = vadd.f32 %v894, %v1157
        %v1159 = vpop.f32.mrf.mxu0
        %1160 = vmatprep.mubr.bf16.mxu0 %v1056
        %1161 = vmatmul.mubr.bf16.gmra.mxu0 %v1001
        %v1162 = vpop.f32.mrf.mxu0
        %v1163 = vadd.f32 %v894, %v1162
        %v1164 = vpop.f32.mrf.mxu0
        %v1165 = vpop.f32.mrf.mxu0
        %v1166 = vadd.f32 %v894, %v1165
        %v1167 = vpop.f32.mrf.mxu0
        %1168 = vmatprep.mubr.bf16.mxu0 %v1059
        %1169 = vmatmul.mubr.bf16.gmra.mxu0 %v1003
        %v1170 = vpop.f32.mrf.mxu0
        %v1171 = vadd.f32 %v894, %v1170
        %v1172 = vpop.f32.mrf.mxu0
        %v1173 = vpop.f32.mrf.mxu0
        %v1174 = vadd.f32 %v894, %v1173
        %v1175 = vpop.f32.mrf.mxu0
        %1176 = vmatprep.mubr.bf16.mxu0 %v1062
        %1177 = vmatmul.mubr.bf16.gmra.mxu0 %v1005
        %v1178 = vpop.f32.mrf.mxu0
        %v1179 = vadd.f32 %v894, %v1178
        %v1180 = vpop.f32.mrf.mxu0
        %v1181 = vpop.f32.mrf.mxu0
        %v1182 = vadd.f32 %v894, %v1181
        %v1183 = vpop.f32.mrf.mxu0
        %1184 = vmatprep.mubr.bf16.mxu0 %v1065
        %1185 = vmatmul.mubr.bf16.gmra.mxu0 %v1007
        %v1186 = vpop.f32.mrf.mxu0
        %v1187 = vadd.f32 %v894, %v1186
        %v1188 = vpop.f32.mrf.mxu0
        %v1189 = vpop.f32.mrf.mxu0
        %v1190 = vadd.f32 %v894, %v1189
        %v1191 = vpop.f32.mrf.mxu0
        %1192 = vmatprep.mubr.bf16.mxu0 %v1068
        %1193 = vmatmul.mubr.bf16.gmra.mxu0 %v1009
        %v1194 = vpop.f32.mrf.mxu0
        %v1195 = vadd.f32 %v894, %v1194
        %v1196 = vpop.f32.mrf.mxu0
        %v1197 = vpop.f32.mrf.mxu0
        %v1198 = vadd.f32 %v894, %v1197
        %v1199 = vpop.f32.mrf.mxu0
        %1200 = vmatprep.mubr.bf16.mxu0 %v1071
        %1201 = vmatmul.mubr.bf16.gmra.mxu0 %v1011
        %v1202 = vpop.f32.mrf.mxu0
        %v1203 = vadd.f32 %v894, %v1202
        %v1204 = vpop.f32.mrf.mxu0
        %v1205 = vpop.f32.mrf.mxu0
        %v1206 = vadd.f32 %v894, %v1205
        %v1207 = vpop.f32.mrf.mxu0
        %1208 = vmatprep.mubr.bf16.mxu0 %v1074
        %1209 = vmatmul.mubr.bf16.gmra.mxu0 %v1013
        %v1210 = vpop.f32.mrf.mxu0
        %v1211 = vadd.f32 %v894, %v1210
        %v1212 = vpop.f32.mrf.mxu0
        %v1213 = vpop.f32.mrf.mxu0
        %v1214 = vadd.f32 %v894, %v1213
        %v1215 = vpop.f32.mrf.mxu0
        %1216 = vmatprep.mubr.bf16.mxu0 %v1077
        %1217 = vmatmul.mubr.bf16.gmra.mxu0 %v1015
        %v1218 = vpop.f32.mrf.mxu0
        %v1219 = vadd.f32 %v894, %v1218
        %v1220 = vpop.f32.mrf.mxu0
        %v1221 = vpop.f32.mrf.mxu0
        %v1222 = vadd.f32 %v894, %v1221
        %v1223 = vpop.f32.mrf.mxu0
        %1224 = vmatprep.mubr.bf16.mxu0 %v1080
        %1225 = vmatmul.mubr.bf16.gmra.mxu0 %v1017
        %v1226 = vpop.f32.mrf.mxu0
        %v1227 = vadd.f32 %v894, %v1226
        %v1228 = vpop.f32.mrf.mxu0
        %v1229 = vpop.f32.mrf.mxu0
        %v1230 = vadd.f32 %v894, %v1229
        %v1231 = vpop.f32.mrf.mxu0
        %1232 = vmatprep.mubr.bf16.mxu0 %v1083
        %1233 = vmatmul.mubr.bf16.gmra.mxu0 %v1019
        %v1234 = vpop.f32.mrf.mxu0
        %v1235 = vadd.f32 %v894, %v1234
        %v1236 = vpop.f32.mrf.mxu0
        %v1237 = vpop.f32.mrf.mxu0
        %v1238 = vadd.f32 %v894, %v1237
        %v1239 = vpop.f32.mrf.mxu0
        %1240 = vmatprep.mubr.bf16.mxu0 %v1086
        %1241 = vmatmul.mubr.bf16.gmra.mxu0 %v1021
        %v1242 = vpop.f32.mrf.mxu0
        %v1243 = vadd.f32 %v894, %v1242
        %v1244 = vpop.f32.mrf.mxu0
        %v1245 = vpop.f32.mrf.mxu0
        %v1246 = vadd.f32 %v894, %v1245
        %v1247 = vpop.f32.mrf.mxu0
        %1248 = vdwg.mxu0
        %v1249 = vmax.f32 %v1123, 0.0
        %v1250 = vmax.f32 %v1126, 0.0
        %v1251 = vmax.f32 %v1131, 0.0
        %v1252 = vmax.f32 %v1134, 0.0
        %v1253 = vmax.f32 %v1139, 0.0
        %v1254 = vmax.f32 %v1142, 0.0
        %v1255 = vmax.f32 %v1147, 0.0
        %v1256 = vmax.f32 %v1150, 0.0
        %v1257 = vmax.f32 %v1155, 0.0
        %v1258 = vmax.f32 %v1158, 0.0
        %v1259 = vmax.f32 %v1163, 0.0
        %v1260 = vmax.f32 %v1166, 0.0
        %v1261 = vmax.f32 %v1171, 0.0
        %v1262 = vmax.f32 %v1174, 0.0
        %v1263 = vmax.f32 %v1179, 0.0
        %v1264 = vmax.f32 %v1182, 0.0
        %v1265 = vmax.f32 %v1187, 0.0
        %v1266 = vmax.f32 %v1190, 0.0
        %v1267 = vmax.f32 %v1195, 0.0
        %v1268 = vmax.f32 %v1198, 0.0
        %v1269 = vmax.f32 %v1203, 0.0
        %v1270 = vmax.f32 %v1206, 0.0
        %v1271 = vmax.f32 %v1211, 0.0
        %v1272 = vmax.f32 %v1214, 0.0
        %v1273 = vmax.f32 %v1219, 0.0
        %v1274 = vmax.f32 %v1222, 0.0
        %v1275 = vmax.f32 %v1227, 0.0
        %v1276 = vmax.f32 %v1230, 0.0
        %v1277 = vmax.f32 %v1235, 0.0
        %v1278 = vmax.f32 %v1238, 0.0
        %v1279 = vmax.f32 %v1243, 0.0
        %v1280 = vmax.f32 %v1246, 0.0
        %1281 = vst [vmem:[#allocation2] sm:$0xff] %v1249
        %1282 = vst [vmem:[#allocation2 + $0x8] sm:$0xff] %v1250
        %1283 = vst [vmem:[#allocation2 + $0x10] sm:$0xff] %v1251
        %1284 = vst [vmem:[#allocation2 + $0x18] sm:$0xff] %v1252
        %1285 = vst [vmem:[#allocation2 + $0x20] sm:$0xff] %v1253
        %1286 = vst [vmem:[#allocation2 + $0x28] sm:$0xff] %v1254
        %1287 = vst [vmem:[#allocation2 + $0x30] sm:$0xff] %v1255
        %1288 = vst [vmem:[#allocation2 + $0x38] sm:$0xff] %v1256
        %1289 = vst [vmem:[#allocation2 + $0x40] sm:$0xff] %v1257
        %1290 = vst [vmem:[#allocation2 + $0x48] sm:$0xff] %v1258
        %1291 = vst [vmem:[#allocation2 + $0x50] sm:$0xff] %v1259
        %1292 = vst [vmem:[#allocation2 + $0x58] sm:$0xff] %v1260
        %1293 = vst [vmem:[#allocation2 + $0x60] sm:$0xff] %v1261
        %1294 = vst [vmem:[#allocation2 + $0x68] sm:$0xff] %v1262
        %1295 = vst [vmem:[#allocation2 + $0x70] sm:$0xff] %v1263
        %1296 = vst [vmem:[#allocation2 + $0x78] sm:$0xff] %v1264
        %1297 = vst [vmem:[#allocation2 + $0x80] sm:$0xff] %v1265
        %1298 = vst [vmem:[#allocation2 + $0x88] sm:$0xff] %v1266
        %1299 = vst [vmem:[#allocation2 + $0x90] sm:$0xff] %v1267
        %1300 = vst [vmem:[#allocation2 + $0x98] sm:$0xff] %v1268
        %1301 = vst [vmem:[#allocation2 + $0xa0] sm:$0xff] %v1269
        %1302 = vst [vmem:[#allocation2 + $0xa8] sm:$0xff] %v1270
        %1303 = vst [vmem:[#allocation2 + $0xb0] sm:$0xff] %v1271
        %1304 = vst [vmem:[#allocation2 + $0xb8] sm:$0xff] %v1272
        %1305 = vst [vmem:[#allocation2 + $0xc0] sm:$0xff] %v1273
        %1306 = vst [vmem:[#allocation2 + $0xc8] sm:$0xff] %v1274
        %1307 = vst [vmem:[#allocation2 + $0xd0] sm:$0xff] %v1275
        %1308 = vst [vmem:[#allocation2 + $0xd8] sm:$0xff] %v1276
        %1309 = vst [vmem:[#allocation2 + $0xe0] sm:$0xff] %v1277
        %1310 = vst [vmem:[#allocation2 + $0xe8] sm:$0xff] %v1278
        %1311 = vst [vmem:[#allocation2 + $0xf0] sm:$0xff] %v1279
        %1312 = vst [vmem:[#allocation2 + $0xf8] sm:$0xff] %v1280
        %v1313 = vpack.c.bf16 %v1250, %v1249
        %v1314 = vpack.c.bf16 %v1252, %v1251
        %v1315 = vpack.c.bf16 %v1254, %v1253
        %v1316 = vpack.c.bf16 %v1256, %v1255
        %v1317 = vpack.c.bf16 %v1258, %v1257
        %v1318 = vpack.c.bf16 %v1260, %v1259
        %v1319 = vpack.c.bf16 %v1262, %v1261
        %v1320 = vpack.c.bf16 %v1264, %v1263
        %v1321 = vpack.c.bf16 %v1266, %v1265
        %v1322 = vpack.c.bf16 %v1268, %v1267
        %v1323 = vpack.c.bf16 %v1270, %v1269
        %v1324 = vpack.c.bf16 %v1272, %v1271
        %v1325 = vpack.c.bf16 %v1274, %v1273
        %v1326 = vpack.c.bf16 %v1276, %v1275
        %v1327 = vpack.c.bf16 %v1278, %v1277
        %v1328 = vpack.c.bf16 %v1280, %v1279
        %v1329 = vld [vmem:[%s591] sm:$0xff]
        %v1330 = vld [vmem:[%s591 + $0x8] sm:$0xff]
        %v1331 = vld [vmem:[%s591 + $0x10] sm:$0xff]
        %v1332 = vld [vmem:[%s591 + $0x18] sm:$0xff]
        %v1333 = vld [vmem:[%s591 + $0x20] sm:$0xff]
        %v1334 = vld [vmem:[%s591 + $0x28] sm:$0xff]
        %v1335 = vld [vmem:[%s591 + $0x30] sm:$0xff]
        %v1336 = vld [vmem:[%s591 + $0x38] sm:$0xff]
        %v1337 = vld [vmem:[%s591 + $0x40] sm:$0xff]
        %v1338 = vld [vmem:[%s591 + $0x48] sm:$0xff]
        %v1339 = vld [vmem:[%s591 + $0x50] sm:$0xff]
        %v1340 = vld [vmem:[%s591 + $0x58] sm:$0xff]
        %v1341 = vld [vmem:[%s591 + $0x60] sm:$0xff]
        %v1342 = vld [vmem:[%s591 + $0x68] sm:$0xff]
        %v1343 = vld [vmem:[%s591 + $0x70] sm:$0xff]
        %v1344 = vld [vmem:[%s591 + $0x78] sm:$0xff]
        %v1361 = vunpack.c.l.b16 %v1329
        %v1362 = vunpack.c.h.b16 %v1329
        %v1363 = vunpack.c.l.b16 %v1330
        %v1364 = vunpack.c.h.b16 %v1330
        %v1365 = vunpack.c.l.b16 %v1331
        %v1366 = vunpack.c.h.b16 %v1331
        %v1367 = vunpack.c.l.b16 %v1332
        %v1368 = vunpack.c.h.b16 %v1332
        %v1369 = vunpack.c.l.b16 %v1333
        %v1370 = vunpack.c.h.b16 %v1333
        %v1371 = vunpack.c.l.b16 %v1334
        %v1372 = vunpack.c.h.b16 %v1334
        %v1373 = vunpack.c.l.b16 %v1335
        %v1374 = vunpack.c.h.b16 %v1335
        %v1375 = vunpack.c.l.b16 %v1336
        %v1376 = vunpack.c.h.b16 %v1336
        %v1377 = vunpack.c.l.b16 %v1337
        %v1378 = vunpack.c.h.b16 %v1337
        %v1379 = vunpack.c.l.b16 %v1338
        %v1380 = vunpack.c.h.b16 %v1338
        %v1381 = vunpack.c.l.b16 %v1339
        %v1382 = vunpack.c.h.b16 %v1339
        %v1383 = vunpack.c.l.b16 %v1340
        %v1384 = vunpack.c.h.b16 %v1340
        %v1385 = vunpack.c.l.b16 %v1341
        %v1386 = vunpack.c.h.b16 %v1341
        %v1387 = vunpack.c.l.b16 %v1342
        %v1388 = vunpack.c.h.b16 %v1342
        %v1389 = vunpack.c.l.b16 %v1343
        %v1390 = vunpack.c.h.b16 %v1343
        %v1391 = vunpack.c.l.b16 %v1344
        %v1392 = vunpack.c.h.b16 %v1344
        %v1393 = vpack.c.b16 %v1363, %v1361
        %v1394 = vpack.c.b16 %v1364, %v1362
        %v1395 = vpack.c.b16 %v1367, %v1365
        %v1396 = vpack.c.b16 %v1368, %v1366
        %v1397 = vpack.c.b16 %v1371, %v1369
        %v1398 = vpack.c.b16 %v1372, %v1370
        %v1399 = vpack.c.b16 %v1375, %v1373
        %v1400 = vpack.c.b16 %v1376, %v1374
        %v1401 = vpack.c.b16 %v1379, %v1377
        %v1402 = vpack.c.b16 %v1380, %v1378
        %v1403 = vpack.c.b16 %v1383, %v1381
        %v1404 = vpack.c.b16 %v1384, %v1382
        %v1405 = vpack.c.b16 %v1387, %v1385
        %v1406 = vpack.c.b16 %v1388, %v1386
        %v1407 = vpack.c.b16 %v1391, %v1389
        %v1408 = vpack.c.b16 %v1392, %v1390
        %1425 = vmatprep.subr.bf16.mxu0 0
        %1426 = vmatpush1.bf16.msra.mxu0 %v1320
        %1427 = vmatprep.subr.bf16.mxu0 0
        %1428 = vmatpush1.bf16.msra.mxu0 %v1319
        %1429 = vmatprep.subr.bf16.mxu0 0
        %1430 = vmatpush1.bf16.msra.mxu0 %v1318
        %1431 = vmatprep.subr.bf16.mxu0 0
        %1432 = vmatpush1.bf16.msra.mxu0 %v1317
        %1433 = vmatprep.subr.bf16.mxu0 0
        %1434 = vmatpush1.bf16.msra.mxu0 %v1316
        %1435 = vmatprep.subr.bf16.mxu0 0
        %1436 = vmatpush1.bf16.msra.mxu0 %v1315
        %1437 = vmatprep.subr.bf16.mxu0 0
        %1438 = vmatpush1.bf16.msra.mxu0 %v1314
        %1439 = vmatprep.subr.bf16.mxu0 0
        %1440 = vmatpush1.bf16.msra.mxu0 %v1313
        %1441 = vmatprep.subr.bf16.mxu0 0
        %1442 = vmatpush2.bf16.msra.mxu0 %v1328
        %1443 = vmatprep.subr.bf16.mxu0 0
        %1444 = vmatpush2.bf16.msra.mxu0 %v1327
        %1445 = vmatprep.subr.bf16.mxu0 0
        %1446 = vmatpush2.bf16.msra.mxu0 %v1326
        %1447 = vmatprep.subr.bf16.mxu0 0
        %1448 = vmatpush2.bf16.msra.mxu0 %v1325
        %1449 = vmatprep.subr.bf16.mxu0 0
        %1450 = vmatpush2.bf16.msra.mxu0 %v1324
        %1451 = vmatprep.subr.bf16.mxu0 0
        %1452 = vmatpush2.bf16.msra.mxu0 %v1323
        %1453 = vmatprep.subr.bf16.mxu0 0
        %1454 = vmatpush2.bf16.msra.mxu0 %v1322
        %1455 = vmatprep.subr.bf16.mxu0 0
        %1456 = vmatpush2.bf16.msra.mxu0 %v1321
        %1457 = vmatprep.mubr.bf16.mxu0 %v1394
        %1458 = vmatmul.mubr.bf16.gmra.mxu0 %v1393
        %v1459 = vpop.f32.mrf.mxu0
        %v1460 = vadd.f32 0.0, %v1459
        %v1461 = vpop.f32.mrf.mxu0
        %v1462 = vpop.f32.mrf.mxu0
        %v1463 = vadd.f32 0.0, %v1462
        %v1464 = vpop.f32.mrf.mxu0
        %1465 = vmatprep.mubr.bf16.mxu0 %v1396
        %1466 = vmatmul.mubr.bf16.gmra.mxu0 %v1395
        %v1467 = vpop.f32.mrf.mxu0
        %v1468 = vadd.f32 0.0, %v1467
        %v1469 = vpop.f32.mrf.mxu0
        %v1470 = vpop.f32.mrf.mxu0
        %v1471 = vadd.f32 0.0, %v1470
        %v1472 = vpop.f32.mrf.mxu0
        %1473 = vmatprep.mubr.bf16.mxu0 %v1398
        %1474 = vmatmul.mubr.bf16.gmra.mxu0 %v1397
        %v1475 = vpop.f32.mrf.mxu0
        %v1476 = vadd.f32 0.0, %v1475
        %v1477 = vpop.f32.mrf.mxu0
        %v1478 = vpop.f32.mrf.mxu0
        %v1479 = vadd.f32 0.0, %v1478
        %v1480 = vpop.f32.mrf.mxu0
        %1481 = vmatprep.mubr.bf16.mxu0 %v1400
        %1482 = vmatmul.mubr.bf16.gmra.mxu0 %v1399
        %v1483 = vpop.f32.mrf.mxu0
        %v1484 = vadd.f32 0.0, %v1483
        %v1485 = vpop.f32.mrf.mxu0
        %v1486 = vpop.f32.mrf.mxu0
        %v1487 = vadd.f32 0.0, %v1486
        %v1488 = vpop.f32.mrf.mxu0
        %1489 = vmatprep.mubr.bf16.mxu0 %v1402
        %1490 = vmatmul.mubr.bf16.gmra.mxu0 %v1401
        %v1491 = vpop.f32.mrf.mxu0
        %v1492 = vadd.f32 0.0, %v1491
        %v1493 = vpop.f32.mrf.mxu0
        %v1494 = vpop.f32.mrf.mxu0
        %v1495 = vadd.f32 0.0, %v1494
        %v1496 = vpop.f32.mrf.mxu0
        %1497 = vmatprep.mubr.bf16.mxu0 %v1404
        %1498 = vmatmul.mubr.bf16.gmra.mxu0 %v1403
        %v1499 = vpop.f32.mrf.mxu0
        %v1500 = vadd.f32 0.0, %v1499
        %v1501 = vpop.f32.mrf.mxu0
        %v1502 = vpop.f32.mrf.mxu0
        %v1503 = vadd.f32 0.0, %v1502
        %v1504 = vpop.f32.mrf.mxu0
        %1505 = vmatprep.mubr.bf16.mxu0 %v1406
        %1506 = vmatmul.mubr.bf16.gmra.mxu0 %v1405
        %v1507 = vpop.f32.mrf.mxu0
        %v1508 = vadd.f32 0.0, %v1507
        %v1509 = vpop.f32.mrf.mxu0
        %v1510 = vpop.f32.mrf.mxu0
        %v1511 = vadd.f32 0.0, %v1510
        %v1512 = vpop.f32.mrf.mxu0
        %1513 = vmatprep.mubr.bf16.mxu0 %v1408
        %1514 = vmatmul.mubr.bf16.gmra.mxu0 %v1407
        %v1515 = vpop.f32.mrf.mxu0
        %v1516 = vadd.f32 0.0, %v1515
        %v1517 = vpop.f32.mrf.mxu0
        %v1518 = vpop.f32.mrf.mxu0
        %v1519 = vadd.f32 0.0, %v1518
        %v1520 = vpop.f32.mrf.mxu0
        %1521 = vdwg.mxu0
        %v1522 = vld [vmem:[%s586] sm:$0xf]
        %v1523 = vld [vmem:[%s586 + $0x4] sm:$0xf]
        %v1524 = vld [vmem:[%s586 + $0x8] sm:$0xf]
        %v1525 = vld [vmem:[%s586 + $0xc] sm:$0xf]
        %v1526 = vld [vmem:[%s586 + $0x10] sm:$0xf]
        %v1527 = vld [vmem:[%s586 + $0x14] sm:$0xf]
        %v1528 = vld [vmem:[%s586 + $0x18] sm:$0xf]
        %v1529 = vld [vmem:[%s586 + $0x1c] sm:$0xf]
        %v1530 = vld [vmem:[%s586 + $0x20] sm:$0xf]
        %v1531 = vld [vmem:[%s586 + $0x24] sm:$0xf]
        %v1532 = vld [vmem:[%s586 + $0x28] sm:$0xf]
        %v1533 = vld [vmem:[%s586 + $0x2c] sm:$0xf]
        %v1534 = vld [vmem:[%s586 + $0x30] sm:$0xf]
        %v1535 = vld [vmem:[%s586 + $0x34] sm:$0xf]
        %v1536 = vld [vmem:[%s586 + $0x38] sm:$0xf]
        %v1537 = vld [vmem:[%s586 + $0x3c] sm:$0xf]
        %v1538 = vld [vmem:[%s586 + $0x40] sm:$0xf]
        %v1539 = vld [vmem:[%s586 + $0x44] sm:$0xf]
        %v1540 = vld [vmem:[%s586 + $0x48] sm:$0xf]
        %v1541 = vld [vmem:[%s586 + $0x4c] sm:$0xf]
        %v1542 = vld [vmem:[%s586 + $0x50] sm:$0xf]
        %v1543 = vld [vmem:[%s586 + $0x54] sm:$0xf]
        %v1544 = vld [vmem:[%s586 + $0x58] sm:$0xf]
        %v1545 = vld [vmem:[%s586 + $0x5c] sm:$0xf]
        %v1546 = vld [vmem:[%s586 + $0x60] sm:$0xf]
        %v1547 = vld [vmem:[%s586 + $0x64] sm:$0xf]
        %v1548 = vld [vmem:[%s586 + $0x68] sm:$0xf]
        %v1549 = vld [vmem:[%s586 + $0x6c] sm:$0xf]
        %v1550 = vld [vmem:[%s586 + $0x70] sm:$0xf]
        %v1551 = vld [vmem:[%s586 + $0x74] sm:$0xf]
        %v1552 = vld [vmem:[%s586 + $0x78] sm:$0xf]
        %v1553 = vld [vmem:[%s586 + $0x7c] sm:$0xf]
        %v1554 = vpack.c.bf16 %v1463, %v1460
        %v1555 = vpack.c.bf16 %v1471, %v1468
        %v1556 = vpack.c.bf16 %v1479, %v1476
        %v1557 = vpack.c.bf16 %v1487, %v1484
        %v1558 = vpack.c.bf16 %v1495, %v1492
        %v1559 = vpack.c.bf16 %v1503, %v1500
        %v1560 = vpack.c.bf16 %v1511, %v1508
        %v1561 = vpack.c.bf16 %v1519, %v1516
        %v1594 = vunpack.c.l.b16 %v1522
        %v1595 = vunpack.c.l.b16 %v1523
        %v1596 = vunpack.c.l.b16 %v1524
        %v1597 = vunpack.c.l.b16 %v1525
        %v1598 = vunpack.c.l.b16 %v1526
        %v1599 = vunpack.c.l.b16 %v1527
        %v1600 = vunpack.c.l.b16 %v1528
        %v1601 = vunpack.c.l.b16 %v1529
        %v1602 = vunpack.c.l.b16 %v1530
        %v1603 = vunpack.c.l.b16 %v1531
        %v1604 = vunpack.c.l.b16 %v1532
        %v1605 = vunpack.c.l.b16 %v1533
        %v1606 = vunpack.c.l.b16 %v1534
        %v1607 = vunpack.c.l.b16 %v1535
        %v1608 = vunpack.c.l.b16 %v1536
        %v1609 = vunpack.c.l.b16 %v1537
        %v1610 = vunpack.c.l.b16 %v1538
        %v1611 = vunpack.c.l.b16 %v1539
        %v1612 = vunpack.c.l.b16 %v1540
        %v1613 = vunpack.c.l.b16 %v1541
        %v1614 = vunpack.c.l.b16 %v1542
        %v1615 = vunpack.c.l.b16 %v1543
        %v1616 = vunpack.c.l.b16 %v1544
        %v1617 = vunpack.c.l.b16 %v1545
        %v1618 = vunpack.c.l.b16 %v1546
        %v1619 = vunpack.c.l.b16 %v1547
        %v1620 = vunpack.c.l.b16 %v1548
        %v1621 = vunpack.c.l.b16 %v1549
        %v1622 = vunpack.c.l.b16 %v1550
        %v1623 = vunpack.c.l.b16 %v1551
        %v1624 = vunpack.c.l.b16 %v1552
        %v1625 = vunpack.c.l.b16 %v1553
        %v1626 = vpack.c.b16 %v1595, %v1594
        %v1627 = vpack.c.b16 %v1597, %v1596
        %v1628 = vpack.c.b16 %v1599, %v1598
        %v1629 = vpack.c.b16 %v1601, %v1600
        %v1630 = vpack.c.b16 %v1603, %v1602
        %v1631 = vpack.c.b16 %v1605, %v1604
        %v1632 = vpack.c.b16 %v1607, %v1606
        %v1633 = vpack.c.b16 %v1609, %v1608
        %v1634 = vpack.c.b16 %v1611, %v1610
        %v1635 = vpack.c.b16 %v1613, %v1612
        %v1636 = vpack.c.b16 %v1615, %v1614
        %v1637 = vpack.c.b16 %v1617, %v1616
        %v1638 = vpack.c.b16 %v1619, %v1618
        %v1639 = vpack.c.b16 %v1621, %v1620
        %v1640 = vpack.c.b16 %v1623, %v1622
        %v1641 = vpack.c.b16 %v1625, %v1624
        %1658 = vmatprep.subr.bf16.mxu0 0
        %1659 = vmatpush1.bf16.msra.mxu0 %v1561
        %1660 = vmatprep.subr.bf16.mxu0 0
        %1661 = vmatpush1.bf16.msra.mxu0 %v1560
        %1662 = vmatprep.subr.bf16.mxu0 0
        %1663 = vmatpush1.bf16.msra.mxu0 %v1559
        %1664 = vmatprep.subr.bf16.mxu0 0
        %1665 = vmatpush1.bf16.msra.mxu0 %v1558
        %1666 = vmatprep.subr.bf16.mxu0 0
        %1667 = vmatpush1.bf16.msra.mxu0 %v1557
        %1668 = vmatprep.subr.bf16.mxu0 0
        %1669 = vmatpush1.bf16.msra.mxu0 %v1556
        %1670 = vmatprep.subr.bf16.mxu0 0
        %1671 = vmatpush1.bf16.msra.mxu0 %v1555
        %1672 = vmatprep.subr.bf16.mxu0 0
        %1673 = vmatpush1.bf16.msra.mxu0 %v1554
        %1674 = vmatprep.subr.bf16.mxu0 0
        %1675 = vmatpush2.bf16.msra.mxu0 0
        %1676 = vmatprep.subr.bf16.mxu0 0
        %1677 = vmatpush2.bf16.msra.mxu0 0
        %1678 = vmatprep.subr.bf16.mxu0 0
        %1679 = vmatpush2.bf16.msra.mxu0 0
        %1680 = vmatprep.subr.bf16.mxu0 0
        %1681 = vmatpush2.bf16.msra.mxu0 0
        %1682 = vmatprep.subr.bf16.mxu0 0
        %1683 = vmatpush2.bf16.msra.mxu0 0
        %1684 = vmatprep.subr.bf16.mxu0 0
        %1685 = vmatpush2.bf16.msra.mxu0 0
        %1686 = vmatprep.subr.bf16.mxu0 0
        %1687 = vmatpush2.bf16.msra.mxu0 0
        %1688 = vmatprep.subr.bf16.mxu0 0
        %1689 = vmatpush2.bf16.msra.mxu0 0
        %1690 = vmatprep.mubr.bf16.mxu0 0
        %1691 = vmatmul.mubr.bf16.gmra.mxu0 %v1626
        %v1692 = vpop.f32.mrf.mxu0
        %v1693 = vadd.f32 0.0, %v1692
        %v1694 = vpop.f32.mrf.mxu0
        %v1695 = vpop.f32.mrf.mxu0
        %v1696 = vadd.f32 0.0, %v1695
        %v1697 = vpop.f32.mrf.mxu0
        %1698 = vmatprep.mubr.bf16.mxu0 0
        %1699 = vmatmul.mubr.bf16.gmra.mxu0 %v1627
        %v1700 = vpop.f32.mrf.mxu0
        %v1701 = vadd.f32 0.0, %v1700
        %v1702 = vpop.f32.mrf.mxu0
        %v1703 = vpop.f32.mrf.mxu0
        %v1704 = vadd.f32 0.0, %v1703
        %v1705 = vpop.f32.mrf.mxu0
        %1706 = vmatprep.mubr.bf16.mxu0 0
        %1707 = vmatmul.mubr.bf16.gmra.mxu0 %v1628
        %v1708 = vpop.f32.mrf.mxu0
        %v1709 = vadd.f32 0.0, %v1708
        %v1710 = vpop.f32.mrf.mxu0
        %v1711 = vpop.f32.mrf.mxu0
        %v1712 = vadd.f32 0.0, %v1711
        %v1713 = vpop.f32.mrf.mxu0
        %1714 = vmatprep.mubr.bf16.mxu0 0
        %1715 = vmatmul.mubr.bf16.gmra.mxu0 %v1629
        %v1716 = vpop.f32.mrf.mxu0
        %v1717 = vadd.f32 0.0, %v1716
        %v1718 = vpop.f32.mrf.mxu0
        %v1719 = vpop.f32.mrf.mxu0
        %v1720 = vadd.f32 0.0, %v1719
        %v1721 = vpop.f32.mrf.mxu0
        %1722 = vmatprep.mubr.bf16.mxu0 0
        %1723 = vmatmul.mubr.bf16.gmra.mxu0 %v1630
        %v1724 = vpop.f32.mrf.mxu0
        %v1725 = vadd.f32 0.0, %v1724
        %v1726 = vpop.f32.mrf.mxu0
        %v1727 = vpop.f32.mrf.mxu0
        %v1728 = vadd.f32 0.0, %v1727
        %v1729 = vpop.f32.mrf.mxu0
        %1730 = vmatprep.mubr.bf16.mxu0 0
        %1731 = vmatmul.mubr.bf16.gmra.mxu0 %v1631
        %v1732 = vpop.f32.mrf.mxu0
        %v1733 = vadd.f32 0.0, %v1732
        %v1734 = vpop.f32.mrf.mxu0
        %v1735 = vpop.f32.mrf.mxu0
        %v1736 = vadd.f32 0.0, %v1735
        %v1737 = vpop.f32.mrf.mxu0
        %1738 = vmatprep.mubr.bf16.mxu0 0
        %1739 = vmatmul.mubr.bf16.gmra.mxu0 %v1632
        %v1740 = vpop.f32.mrf.mxu0
        %v1741 = vadd.f32 0.0, %v1740
        %v1742 = vpop.f32.mrf.mxu0
        %v1743 = vpop.f32.mrf.mxu0
        %v1744 = vadd.f32 0.0, %v1743
        %v1745 = vpop.f32.mrf.mxu0
        %1746 = vmatprep.mubr.bf16.mxu0 0
        %1747 = vmatmul.mubr.bf16.gmra.mxu0 %v1633
        %v1748 = vpop.f32.mrf.mxu0
        %v1749 = vadd.f32 0.0, %v1748
        %v1750 = vpop.f32.mrf.mxu0
        %v1751 = vpop.f32.mrf.mxu0
        %v1752 = vadd.f32 0.0, %v1751
        %v1753 = vpop.f32.mrf.mxu0
        %1754 = vmatprep.mubr.bf16.mxu0 0
        %1755 = vmatmul.mubr.bf16.gmra.mxu0 %v1634
        %v1756 = vpop.f32.mrf.mxu0
        %v1757 = vadd.f32 0.0, %v1756
        %v1758 = vpop.f32.mrf.mxu0
        %v1759 = vpop.f32.mrf.mxu0
        %v1760 = vadd.f32 0.0, %v1759
        %v1761 = vpop.f32.mrf.mxu0
        %1762 = vmatprep.mubr.bf16.mxu0 0
        %1763 = vmatmul.mubr.bf16.gmra.mxu0 %v1635
        %v1764 = vpop.f32.mrf.mxu0
        %v1765 = vadd.f32 0.0, %v1764
        %v1766 = vpop.f32.mrf.mxu0
        %v1767 = vpop.f32.mrf.mxu0
        %v1768 = vadd.f32 0.0, %v1767
        %v1769 = vpop.f32.mrf.mxu0
        %1770 = vmatprep.mubr.bf16.mxu0 0
        %1771 = vmatmul.mubr.bf16.gmra.mxu0 %v1636
        %v1772 = vpop.f32.mrf.mxu0
        %v1773 = vadd.f32 0.0, %v1772
        %v1774 = vpop.f32.mrf.mxu0
        %v1775 = vpop.f32.mrf.mxu0
        %v1776 = vadd.f32 0.0, %v1775
        %v1777 = vpop.f32.mrf.mxu0
        %1778 = vmatprep.mubr.bf16.mxu0 0
        %1779 = vmatmul.mubr.bf16.gmra.mxu0 %v1637
        %v1780 = vpop.f32.mrf.mxu0
        %v1781 = vadd.f32 0.0, %v1780
        %v1782 = vpop.f32.mrf.mxu0
        %v1783 = vpop.f32.mrf.mxu0
        %v1784 = vadd.f32 0.0, %v1783
        %v1785 = vpop.f32.mrf.mxu0
        %1786 = vmatprep.mubr.bf16.mxu0 0
        %1787 = vmatmul.mubr.bf16.gmra.mxu0 %v1638
        %v1788 = vpop.f32.mrf.mxu0
        %v1789 = vadd.f32 0.0, %v1788
        %v1790 = vpop.f32.mrf.mxu0
        %v1791 = vpop.f32.mrf.mxu0
        %v1792 = vadd.f32 0.0, %v1791
        %v1793 = vpop.f32.mrf.mxu0
        %1794 = vmatprep.mubr.bf16.mxu0 0
        %1795 = vmatmul.mubr.bf16.gmra.mxu0 %v1639
        %v1796 = vpop.f32.mrf.mxu0
        %v1797 = vadd.f32 0.0, %v1796
        %v1798 = vpop.f32.mrf.mxu0
        %v1799 = vpop.f32.mrf.mxu0
        %v1800 = vadd.f32 0.0, %v1799
        %v1801 = vpop.f32.mrf.mxu0
        %1802 = vmatprep.mubr.bf16.mxu0 0
        %1803 = vmatmul.mubr.bf16.gmra.mxu0 %v1640
        %v1804 = vpop.f32.mrf.mxu0
        %v1805 = vadd.f32 0.0, %v1804
        %v1806 = vpop.f32.mrf.mxu0
        %v1807 = vpop.f32.mrf.mxu0
        %v1808 = vadd.f32 0.0, %v1807
        %v1809 = vpop.f32.mrf.mxu0
        %1810 = vmatprep.mubr.bf16.mxu0 0
        %1811 = vmatmul.mubr.bf16.gmra.mxu0 %v1641
        %v1812 = vpop.f32.mrf.mxu0
        %v1813 = vadd.f32 0.0, %v1812
        %v1814 = vpop.f32.mrf.mxu0
        %v1815 = vpop.f32.mrf.mxu0
        %v1816 = vadd.f32 0.0, %v1815
        %v1817 = vpop.f32.mrf.mxu0
        %1818 = vdwg.mxu0
        %v1819 = vsub.f32 %v1693, %v1249
        %v1820 = vsub.f32 %v1696, %v1250
        %v1821 = vsub.f32 %v1701, %v1251
        %v1822 = vsub.f32 %v1704, %v1252
        %v1823 = vsub.f32 %v1709, %v1253
        %v1824 = vsub.f32 %v1712, %v1254
        %v1825 = vsub.f32 %v1717, %v1255
        %v1826 = vsub.f32 %v1720, %v1256
        %v1827 = vsub.f32 %v1725, %v1257
        %v1828 = vsub.f32 %v1728, %v1258
        %v1829 = vsub.f32 %v1733, %v1259
        %v1830 = vsub.f32 %v1736, %v1260
        %v1831 = vsub.f32 %v1741, %v1261
        %v1832 = vsub.f32 %v1744, %v1262
        %v1833 = vsub.f32 %v1749, %v1263
        %v1834 = vsub.f32 %v1752, %v1264
        %v1835 = vsub.f32 %v1757, %v1265
        %v1836 = vsub.f32 %v1760, %v1266
        %v1837 = vsub.f32 %v1765, %v1267
        %v1838 = vsub.f32 %v1768, %v1268
        %v1839 = vsub.f32 %v1773, %v1269
        %v1840 = vsub.f32 %v1776, %v1270
        %v1841 = vsub.f32 %v1781, %v1271
        %v1842 = vsub.f32 %v1784, %v1272
        %v1843 = vsub.f32 %v1789, %v1273
        %v1844 = vsub.f32 %v1792, %v1274
        %v1845 = vsub.f32 %v1797, %v1275
        %v1846 = vsub.f32 %v1800, %v1276
        %v1847 = vsub.f32 %v1805, %v1277
        %v1848 = vsub.f32 %v1808, %v1278
        %v1849 = vsub.f32 %v1813, %v1279
        %v1850 = vsub.f32 %v1816, %v1280
        %v1851 = vpack.c.bf16 %v1820, %v1819
        %v1852 = vpack.c.bf16 %v1822, %v1821
        %v1853 = vpack.c.bf16 %v1824, %v1823
        %v1854 = vpack.c.bf16 %v1826, %v1825
        %v1855 = vpack.c.bf16 %v1828, %v1827
        %v1856 = vpack.c.bf16 %v1830, %v1829
        %v1857 = vpack.c.bf16 %v1832, %v1831
        %v1858 = vpack.c.bf16 %v1834, %v1833
        %v1859 = vpack.c.bf16 %v1836, %v1835
        %v1860 = vpack.c.bf16 %v1838, %v1837
        %v1861 = vpack.c.bf16 %v1840, %v1839
        %v1862 = vpack.c.bf16 %v1842, %v1841
        %v1863 = vpack.c.bf16 %v1844, %v1843
        %v1864 = vpack.c.bf16 %v1846, %v1845
        %v1865 = vpack.c.bf16 %v1848, %v1847
        %v1866 = vpack.c.bf16 %v1850, %v1849
        %v1867 = vld [vmem:[%s9] sm:$0xf]
        %v1868 = vld [vmem:[%s9 + $0x4] sm:$0xf]
        %v1869 = vld [vmem:[%s9 + $0x8] sm:$0xf]
        %v1870 = vld [vmem:[%s9 + $0xc] sm:$0xf]
        %v1871 = vld [vmem:[%s9 + $0x10] sm:$0xf]
        %v1872 = vld [vmem:[%s9 + $0x14] sm:$0xf]
        %v1873 = vld [vmem:[%s9 + $0x18] sm:$0xf]
        %v1874 = vld [vmem:[%s9 + $0x1c] sm:$0xf]
        %v1875 = vld [vmem:[%s9 + $0x20] sm:$0xf]
        %v1876 = vld [vmem:[%s9 + $0x24] sm:$0xf]
        %v1877 = vld [vmem:[%s9 + $0x28] sm:$0xf]
        %v1878 = vld [vmem:[%s9 + $0x2c] sm:$0xf]
        %v1879 = vld [vmem:[%s9 + $0x30] sm:$0xf]
        %v1880 = vld [vmem:[%s9 + $0x34] sm:$0xf]
        %v1881 = vld [vmem:[%s9 + $0x38] sm:$0xf]
        %v1882 = vld [vmem:[%s9 + $0x3c] sm:$0xf]
        %v1899 = vunpack.c.l.b16 %v1867
        %v1900 = vunpack.c.l.b16 %v1868
        %v1901 = vunpack.c.l.b16 %v1869
        %v1902 = vunpack.c.l.b16 %v1870
        %v1903 = vunpack.c.l.b16 %v1871
        %v1904 = vunpack.c.l.b16 %v1872
        %v1905 = vunpack.c.l.b16 %v1873
        %v1906 = vunpack.c.l.b16 %v1874
        %v1907 = vunpack.c.l.b16 %v1875
        %v1908 = vunpack.c.l.b16 %v1876
        %v1909 = vunpack.c.l.b16 %v1877
        %v1910 = vunpack.c.l.b16 %v1878
        %v1911 = vunpack.c.l.b16 %v1879
        %v1912 = vunpack.c.l.b16 %v1880
        %v1913 = vunpack.c.l.b16 %v1881
        %v1914 = vunpack.c.l.b16 %v1882
        %v1915 = vpack.c.b16 %v1900, %v1899
        %v1916 = vpack.c.b16 %v1902, %v1901
        %v1917 = vpack.c.b16 %v1904, %v1903
        %v1918 = vpack.c.b16 %v1906, %v1905
        %v1919 = vpack.c.b16 %v1908, %v1907
        %v1920 = vpack.c.b16 %v1910, %v1909
        %v1921 = vpack.c.b16 %v1912, %v1911
        %v1922 = vpack.c.b16 %v1914, %v1913
        %1931 = vmatprep.subr.bf16.mxu0 0
        %1932 = vmatpush1.bf16.msra.mxu0 %v1922
        %1933 = vmatprep.subr.bf16.mxu0 0
        %1934 = vmatpush1.bf16.msra.mxu0 %v1921
        %1935 = vmatprep.subr.bf16.mxu0 0
        %1936 = vmatpush1.bf16.msra.mxu0 %v1920
        %1937 = vmatprep.subr.bf16.mxu0 0
        %1938 = vmatpush1.bf16.msra.mxu0 %v1919
        %1939 = vmatprep.subr.bf16.mxu0 0
        %1940 = vmatpush1.bf16.msra.mxu0 %v1918
        %1941 = vmatprep.subr.bf16.mxu0 0
        %1942 = vmatpush1.bf16.msra.mxu0 %v1917
        %1943 = vmatprep.subr.bf16.mxu0 0
        %1944 = vmatpush1.bf16.msra.mxu0 %v1916
        %1945 = vmatprep.subr.bf16.mxu0 0
        %1946 = vmatpush1.bf16.msra.mxu0 %v1915
        %1947 = vmatprep.subr.bf16.mxu0 0
        %1948 = vmatpush2.bf16.msra.mxu0 0
        %1949 = vmatprep.subr.bf16.mxu0 0
        %1950 = vmatpush2.bf16.msra.mxu0 0
        %1951 = vmatprep.subr.bf16.mxu0 0
        %1952 = vmatpush2.bf16.msra.mxu0 0
        %1953 = vmatprep.subr.bf16.mxu0 0
        %1954 = vmatpush2.bf16.msra.mxu0 0
        %1955 = vmatprep.subr.bf16.mxu0 0
        %1956 = vmatpush2.bf16.msra.mxu0 0
        %1957 = vmatprep.subr.bf16.mxu0 0
        %1958 = vmatpush2.bf16.msra.mxu0 0
        %1959 = vmatprep.subr.bf16.mxu0 0
        %1960 = vmatpush2.bf16.msra.mxu0 0
        %1961 = vmatprep.subr.bf16.mxu0 0
        %1962 = vmatpush2.bf16.msra.mxu0 0
        %1963 = vmatprep.mubr.bf16.mxu0 0
        %1964 = vmatmul.mubr.bf16.gmra.mxu0 %v1851
        %v1965 = vpop.f32.mrf.mxu0
        %v1966 = vadd.f32 %v619, %v1965
        %v1967 = vpop.f32.mrf.mxu0
        %v1968 = vpop.f32.mrf.mxu0
        %v1969 = vadd.f32 %v619, %v1968
        %v1970 = vpop.f32.mrf.mxu0
        %1971 = vmatprep.mubr.bf16.mxu0 0
        %1972 = vmatmul.mubr.bf16.gmra.mxu0 %v1852
        %v1973 = vpop.f32.mrf.mxu0
        %v1974 = vadd.f32 %v619, %v1973
        %v1975 = vpop.f32.mrf.mxu0
        %v1976 = vpop.f32.mrf.mxu0
        %v1977 = vadd.f32 %v619, %v1976
        %v1978 = vpop.f32.mrf.mxu0
        %1979 = vmatprep.mubr.bf16.mxu0 0
        %1980 = vmatmul.mubr.bf16.gmra.mxu0 %v1853
        %v1981 = vpop.f32.mrf.mxu0
        %v1982 = vadd.f32 %v619, %v1981
        %v1983 = vpop.f32.mrf.mxu0
        %v1984 = vpop.f32.mrf.mxu0
        %v1985 = vadd.f32 %v619, %v1984
        %v1986 = vpop.f32.mrf.mxu0
        %1987 = vmatprep.mubr.bf16.mxu0 0
        %1988 = vmatmul.mubr.bf16.gmra.mxu0 %v1854
        %v1989 = vpop.f32.mrf.mxu0
        %v1990 = vadd.f32 %v619, %v1989
        %v1991 = vpop.f32.mrf.mxu0
        %v1992 = vpop.f32.mrf.mxu0
        %v1993 = vadd.f32 %v619, %v1992
        %v1994 = vpop.f32.mrf.mxu0
        %1995 = vmatprep.mubr.bf16.mxu0 0
        %1996 = vmatmul.mubr.bf16.gmra.mxu0 %v1855
        %v1997 = vpop.f32.mrf.mxu0
        %v1998 = vadd.f32 %v619, %v1997
        %v1999 = vpop.f32.mrf.mxu0
        %v2000 = vpop.f32.mrf.mxu0
        %v2001 = vadd.f32 %v619, %v2000
        %v2002 = vpop.f32.mrf.mxu0
        %2003 = vmatprep.mubr.bf16.mxu0 0
        %2004 = vmatmul.mubr.bf16.gmra.mxu0 %v1856
        %v2005 = vpop.f32.mrf.mxu0
        %v2006 = vadd.f32 %v619, %v2005
        %v2007 = vpop.f32.mrf.mxu0
        %v2008 = vpop.f32.mrf.mxu0
        %v2009 = vadd.f32 %v619, %v2008
        %v2010 = vpop.f32.mrf.mxu0
        %2011 = vmatprep.mubr.bf16.mxu0 0
        %2012 = vmatmul.mubr.bf16.gmra.mxu0 %v1857
        %v2013 = vpop.f32.mrf.mxu0
        %v2014 = vadd.f32 %v619, %v2013
        %v2015 = vpop.f32.mrf.mxu0
        %v2016 = vpop.f32.mrf.mxu0
        %v2017 = vadd.f32 %v619, %v2016
        %v2018 = vpop.f32.mrf.mxu0
        %2019 = vmatprep.mubr.bf16.mxu0 0
        %2020 = vmatmul.mubr.bf16.gmra.mxu0 %v1858
        %v2021 = vpop.f32.mrf.mxu0
        %v2022 = vadd.f32 %v619, %v2021
        %v2023 = vpop.f32.mrf.mxu0
        %v2024 = vpop.f32.mrf.mxu0
        %v2025 = vadd.f32 %v619, %v2024
        %v2026 = vpop.f32.mrf.mxu0
        %2027 = vmatprep.mubr.bf16.mxu0 0
        %2028 = vmatmul.mubr.bf16.gmra.mxu0 %v1859
        %v2029 = vpop.f32.mrf.mxu0
        %v2030 = vadd.f32 %v619, %v2029
        %v2031 = vpop.f32.mrf.mxu0
        %v2032 = vpop.f32.mrf.mxu0
        %v2033 = vadd.f32 %v619, %v2032
        %v2034 = vpop.f32.mrf.mxu0
        %2035 = vmatprep.mubr.bf16.mxu0 0
        %2036 = vmatmul.mubr.bf16.gmra.mxu0 %v1860
        %v2037 = vpop.f32.mrf.mxu0
        %v2038 = vadd.f32 %v619, %v2037
        %v2039 = vpop.f32.mrf.mxu0
        %v2040 = vpop.f32.mrf.mxu0
        %v2041 = vadd.f32 %v619, %v2040
        %v2042 = vpop.f32.mrf.mxu0
        %2043 = vmatprep.mubr.bf16.mxu0 0
        %2044 = vmatmul.mubr.bf16.gmra.mxu0 %v1861
        %v2045 = vpop.f32.mrf.mxu0
        %v2046 = vadd.f32 %v619, %v2045
        %v2047 = vpop.f32.mrf.mxu0
        %v2048 = vpop.f32.mrf.mxu0
        %v2049 = vadd.f32 %v619, %v2048
        %v2050 = vpop.f32.mrf.mxu0
        %2051 = vmatprep.mubr.bf16.mxu0 0
        %2052 = vmatmul.mubr.bf16.gmra.mxu0 %v1862
        %v2053 = vpop.f32.mrf.mxu0
        %v2054 = vadd.f32 %v619, %v2053
        %v2055 = vpop.f32.mrf.mxu0
        %v2056 = vpop.f32.mrf.mxu0
        %v2057 = vadd.f32 %v619, %v2056
        %v2058 = vpop.f32.mrf.mxu0
        %2059 = vmatprep.mubr.bf16.mxu0 0
        %2060 = vmatmul.mubr.bf16.gmra.mxu0 %v1863
        %v2061 = vpop.f32.mrf.mxu0
        %v2062 = vadd.f32 %v619, %v2061
        %v2063 = vpop.f32.mrf.mxu0
        %v2064 = vpop.f32.mrf.mxu0
        %v2065 = vadd.f32 %v619, %v2064
        %v2066 = vpop.f32.mrf.mxu0
        %2067 = vmatprep.mubr.bf16.mxu0 0
        %2068 = vmatmul.mubr.bf16.gmra.mxu0 %v1864
        %v2069 = vpop.f32.mrf.mxu0
        %v2070 = vadd.f32 %v619, %v2069
        %v2071 = vpop.f32.mrf.mxu0
        %v2072 = vpop.f32.mrf.mxu0
        %v2073 = vadd.f32 %v619, %v2072
        %v2074 = vpop.f32.mrf.mxu0
        %2075 = vmatprep.mubr.bf16.mxu0 0
        %2076 = vmatmul.mubr.bf16.gmra.mxu0 %v1865
        %v2077 = vpop.f32.mrf.mxu0
        %v2078 = vadd.f32 %v619, %v2077
        %v2079 = vpop.f32.mrf.mxu0
        %v2080 = vpop.f32.mrf.mxu0
        %v2081 = vadd.f32 %v619, %v2080
        %v2082 = vpop.f32.mrf.mxu0
        %2083 = vmatprep.mubr.bf16.mxu0 0
        %2084 = vmatmul.mubr.bf16.gmra.mxu0 %v1866
        %v2085 = vpop.f32.mrf.mxu0
        %v2086 = vadd.f32 %v619, %v2085
        %v2087 = vpop.f32.mrf.mxu0
        %v2088 = vpop.f32.mrf.mxu0
        %v2089 = vadd.f32 %v619, %v2088
        %v2090 = vpop.f32.mrf.mxu0
        %2091 = vdwg.mxu0
        %v2092 = vmax.f32 %v1966, 0.0
        %v2093 = vmax.f32 %v1969, 0.0
        %v2094 = vmax.f32 %v1974, 0.0
        %v2095 = vmax.f32 %v1977, 0.0
        %v2096 = vmax.f32 %v1982, 0.0
        %v2097 = vmax.f32 %v1985, 0.0
        %v2098 = vmax.f32 %v1990, 0.0
        %v2099 = vmax.f32 %v1993, 0.0
        %v2100 = vmax.f32 %v1998, 0.0
        %v2101 = vmax.f32 %v2001, 0.0
        %v2102 = vmax.f32 %v2006, 0.0
        %v2103 = vmax.f32 %v2009, 0.0
        %v2104 = vmax.f32 %v2014, 0.0
        %v2105 = vmax.f32 %v2017, 0.0
        %v2106 = vmax.f32 %v2022, 0.0
        %v2107 = vmax.f32 %v2025, 0.0
        %v2108 = vmax.f32 %v2030, 0.0
        %v2109 = vmax.f32 %v2033, 0.0
        %v2110 = vmax.f32 %v2038, 0.0
        %v2111 = vmax.f32 %v2041, 0.0
        %v2112 = vmax.f32 %v2046, 0.0
        %v2113 = vmax.f32 %v2049, 0.0
        %v2114 = vmax.f32 %v2054, 0.0
        %v2115 = vmax.f32 %v2057, 0.0
        %v2116 = vmax.f32 %v2062, 0.0
        %v2117 = vmax.f32 %v2065, 0.0
        %v2118 = vmax.f32 %v2070, 0.0
        %v2119 = vmax.f32 %v2073, 0.0
        %v2120 = vmax.f32 %v2078, 0.0
        %v2121 = vmax.f32 %v2081, 0.0
        %v2122 = vmax.f32 %v2086, 0.0
        %v2123 = vmax.f32 %v2089, 0.0
        %v2124 = vpack.c.bf16 %v2093, %v2092
        %v2125 = vpack.c.bf16 %v2095, %v2094
        %v2126 = vpack.c.bf16 %v2097, %v2096
        %v2127 = vpack.c.bf16 %v2099, %v2098
        %v2128 = vpack.c.bf16 %v2101, %v2100
        %v2129 = vpack.c.bf16 %v2103, %v2102
        %v2130 = vpack.c.bf16 %v2105, %v2104
        %v2131 = vpack.c.bf16 %v2107, %v2106
        %v2132 = vpack.c.bf16 %v2109, %v2108
        %v2133 = vpack.c.bf16 %v2111, %v2110
        %v2134 = vpack.c.bf16 %v2113, %v2112
        %v2135 = vpack.c.bf16 %v2115, %v2114
        %v2136 = vpack.c.bf16 %v2117, %v2116
        %v2137 = vpack.c.bf16 %v2119, %v2118
        %v2138 = vpack.c.bf16 %v2121, %v2120
        %v2139 = vpack.c.bf16 %v2123, %v2122
        %v2140 = vld [vmem:[%s10] sm:$0xf]
        %v2141 = vld [vmem:[%s10 + $0x4] sm:$0xf]
        %v2142 = vld [vmem:[%s10 + $0x8] sm:$0xf]
        %v2143 = vld [vmem:[%s10 + $0xc] sm:$0xf]
        %v2144 = vld [vmem:[%s10 + $0x10] sm:$0xf]
        %v2145 = vld [vmem:[%s10 + $0x14] sm:$0xf]
        %v2146 = vld [vmem:[%s10 + $0x18] sm:$0xf]
        %v2147 = vld [vmem:[%s10 + $0x1c] sm:$0xf]
        %v2148 = vld [vmem:[%s10 + $0x20] sm:$0xf]
        %v2149 = vld [vmem:[%s10 + $0x24] sm:$0xf]
        %v2150 = vld [vmem:[%s10 + $0x28] sm:$0xf]
        %v2151 = vld [vmem:[%s10 + $0x2c] sm:$0xf]
        %v2152 = vld [vmem:[%s10 + $0x30] sm:$0xf]
        %v2153 = vld [vmem:[%s10 + $0x34] sm:$0xf]
        %v2154 = vld [vmem:[%s10 + $0x38] sm:$0xf]
        %v2155 = vld [vmem:[%s10 + $0x3c] sm:$0xf]
        %v2172 = vunpack.c.l.b16 %v2140
        %v2173 = vunpack.c.l.b16 %v2141
        %v2174 = vunpack.c.l.b16 %v2142
        %v2175 = vunpack.c.l.b16 %v2143
        %v2176 = vunpack.c.l.b16 %v2144
        %v2177 = vunpack.c.l.b16 %v2145
        %v2178 = vunpack.c.l.b16 %v2146
        %v2179 = vunpack.c.l.b16 %v2147
        %v2180 = vunpack.c.l.b16 %v2148
        %v2181 = vunpack.c.l.b16 %v2149
        %v2182 = vunpack.c.l.b16 %v2150
        %v2183 = vunpack.c.l.b16 %v2151
        %v2184 = vunpack.c.l.b16 %v2152
        %v2185 = vunpack.c.l.b16 %v2153
        %v2186 = vunpack.c.l.b16 %v2154
        %v2187 = vunpack.c.l.b16 %v2155
        %v2188 = vpack.c.b16 %v2173, %v2172
        %v2189 = vpack.c.b16 %v2175, %v2174
        %v2190 = vpack.c.b16 %v2177, %v2176
        %v2191 = vpack.c.b16 %v2179, %v2178
        %v2192 = vpack.c.b16 %v2181, %v2180
        %v2193 = vpack.c.b16 %v2183, %v2182
        %v2194 = vpack.c.b16 %v2185, %v2184
        %v2195 = vpack.c.b16 %v2187, %v2186
        %2204 = vmatprep.subr.bf16.mxu0 0
        %2205 = vmatpush1.bf16.msra.mxu0 %v2195
        %2206 = vmatprep.subr.bf16.mxu0 0
        %2207 = vmatpush1.bf16.msra.mxu0 %v2194
        %2208 = vmatprep.subr.bf16.mxu0 0
        %2209 = vmatpush1.bf16.msra.mxu0 %v2193
        %2210 = vmatprep.subr.bf16.mxu0 0
        %2211 = vmatpush1.bf16.msra.mxu0 %v2192
        %2212 = vmatprep.subr.bf16.mxu0 0
        %2213 = vmatpush1.bf16.msra.mxu0 %v2191
        %2214 = vmatprep.subr.bf16.mxu0 0
        %2215 = vmatpush1.bf16.msra.mxu0 %v2190
        %2216 = vmatprep.subr.bf16.mxu0 0
        %2217 = vmatpush1.bf16.msra.mxu0 %v2189
        %2218 = vmatprep.subr.bf16.mxu0 0
        %2219 = vmatpush1.bf16.msra.mxu0 %v2188
        %2220 = vmatprep.subr.bf16.mxu0 0
        %2221 = vmatpush2.bf16.msra.mxu0 0
        %2222 = vmatprep.subr.bf16.mxu0 0
        %2223 = vmatpush2.bf16.msra.mxu0 0
        %2224 = vmatprep.subr.bf16.mxu0 0
        %2225 = vmatpush2.bf16.msra.mxu0 0
        %2226 = vmatprep.subr.bf16.mxu0 0
        %2227 = vmatpush2.bf16.msra.mxu0 0
        %2228 = vmatprep.subr.bf16.mxu0 0
        %2229 = vmatpush2.bf16.msra.mxu0 0
        %2230 = vmatprep.subr.bf16.mxu0 0
        %2231 = vmatpush2.bf16.msra.mxu0 0
        %2232 = vmatprep.subr.bf16.mxu0 0
        %2233 = vmatpush2.bf16.msra.mxu0 0
        %2234 = vmatprep.subr.bf16.mxu0 0
        %2235 = vmatpush2.bf16.msra.mxu0 0
        %2236 = vmatprep.mubr.bf16.mxu0 0
        %2237 = vmatmul.mubr.bf16.gmra.mxu0 %v2124
        %v2238 = vpop.f32.mrf.mxu0
        %v2239 = vadd.f32 %v624, %v2238
        %v2240 = vpop.f32.mrf.mxu0
        %v2241 = vpop.f32.mrf.mxu0
        %v2242 = vadd.f32 %v624, %v2241
        %v2243 = vpop.f32.mrf.mxu0
        %2244 = vmatprep.mubr.bf16.mxu0 0
        %2245 = vmatmul.mubr.bf16.gmra.mxu0 %v2125
        %v2246 = vpop.f32.mrf.mxu0
        %v2247 = vadd.f32 %v624, %v2246
        %v2248 = vpop.f32.mrf.mxu0
        %v2249 = vpop.f32.mrf.mxu0
        %v2250 = vadd.f32 %v624, %v2249
        %v2251 = vpop.f32.mrf.mxu0
        %2252 = vmatprep.mubr.bf16.mxu0 0
        %2253 = vmatmul.mubr.bf16.gmra.mxu0 %v2126
        %v2254 = vpop.f32.mrf.mxu0
        %v2255 = vadd.f32 %v624, %v2254
        %v2256 = vpop.f32.mrf.mxu0
        %v2257 = vpop.f32.mrf.mxu0
        %v2258 = vadd.f32 %v624, %v2257
        %v2259 = vpop.f32.mrf.mxu0
        %2260 = vmatprep.mubr.bf16.mxu0 0
        %2261 = vmatmul.mubr.bf16.gmra.mxu0 %v2127
        %v2262 = vpop.f32.mrf.mxu0
        %v2263 = vadd.f32 %v624, %v2262
        %v2264 = vpop.f32.mrf.mxu0
        %v2265 = vpop.f32.mrf.mxu0
        %v2266 = vadd.f32 %v624, %v2265
        %v2267 = vpop.f32.mrf.mxu0
        %2268 = vmatprep.mubr.bf16.mxu0 0
        %2269 = vmatmul.mubr.bf16.gmra.mxu0 %v2128
        %v2270 = vpop.f32.mrf.mxu0
        %v2271 = vadd.f32 %v624, %v2270
        %v2272 = vpop.f32.mrf.mxu0
        %v2273 = vpop.f32.mrf.mxu0
        %v2274 = vadd.f32 %v624, %v2273
        %v2275 = vpop.f32.mrf.mxu0
        %2276 = vmatprep.mubr.bf16.mxu0 0
        %2277 = vmatmul.mubr.bf16.gmra.mxu0 %v2129
        %v2278 = vpop.f32.mrf.mxu0
        %v2279 = vadd.f32 %v624, %v2278
        %v2280 = vpop.f32.mrf.mxu0
        %v2281 = vpop.f32.mrf.mxu0
        %v2282 = vadd.f32 %v624, %v2281
        %v2283 = vpop.f32.mrf.mxu0
        %2284 = vmatprep.mubr.bf16.mxu0 0
        %2285 = vmatmul.mubr.bf16.gmra.mxu0 %v2130
        %v2286 = vpop.f32.mrf.mxu0
        %v2287 = vadd.f32 %v624, %v2286
        %v2288 = vpop.f32.mrf.mxu0
        %v2289 = vpop.f32.mrf.mxu0
        %v2290 = vadd.f32 %v624, %v2289
        %v2291 = vpop.f32.mrf.mxu0
        %2292 = vmatprep.mubr.bf16.mxu0 0
        %2293 = vmatmul.mubr.bf16.gmra.mxu0 %v2131
        %v2294 = vpop.f32.mrf.mxu0
        %v2295 = vadd.f32 %v624, %v2294
        %v2296 = vpop.f32.mrf.mxu0
        %v2297 = vpop.f32.mrf.mxu0
        %v2298 = vadd.f32 %v624, %v2297
        %v2299 = vpop.f32.mrf.mxu0
        %2300 = vmatprep.mubr.bf16.mxu0 0
        %2301 = vmatmul.mubr.bf16.gmra.mxu0 %v2132
        %v2302 = vpop.f32.mrf.mxu0
        %v2303 = vadd.f32 %v624, %v2302
        %v2304 = vpop.f32.mrf.mxu0
        %v2305 = vpop.f32.mrf.mxu0
        %v2306 = vadd.f32 %v624, %v2305
        %v2307 = vpop.f32.mrf.mxu0
        %2308 = vmatprep.mubr.bf16.mxu0 0
        %2309 = vmatmul.mubr.bf16.gmra.mxu0 %v2133
        %v2310 = vpop.f32.mrf.mxu0
        %v2311 = vadd.f32 %v624, %v2310
        %v2312 = vpop.f32.mrf.mxu0
        %v2313 = vpop.f32.mrf.mxu0
        %v2314 = vadd.f32 %v624, %v2313
        %v2315 = vpop.f32.mrf.mxu0
        %2316 = vmatprep.mubr.bf16.mxu0 0
        %2317 = vmatmul.mubr.bf16.gmra.mxu0 %v2134
        %v2318 = vpop.f32.mrf.mxu0
        %v2319 = vadd.f32 %v624, %v2318
        %v2320 = vpop.f32.mrf.mxu0
        %v2321 = vpop.f32.mrf.mxu0
        %v2322 = vadd.f32 %v624, %v2321
        %v2323 = vpop.f32.mrf.mxu0
        %2324 = vmatprep.mubr.bf16.mxu0 0
        %2325 = vmatmul.mubr.bf16.gmra.mxu0 %v2135
        %v2326 = vpop.f32.mrf.mxu0
        %v2327 = vadd.f32 %v624, %v2326
        %v2328 = vpop.f32.mrf.mxu0
        %v2329 = vpop.f32.mrf.mxu0
        %v2330 = vadd.f32 %v624, %v2329
        %v2331 = vpop.f32.mrf.mxu0
        %2332 = vmatprep.mubr.bf16.mxu0 0
        %2333 = vmatmul.mubr.bf16.gmra.mxu0 %v2136
        %v2334 = vpop.f32.mrf.mxu0
        %v2335 = vadd.f32 %v624, %v2334
        %v2336 = vpop.f32.mrf.mxu0
        %v2337 = vpop.f32.mrf.mxu0
        %v2338 = vadd.f32 %v624, %v2337
        %v2339 = vpop.f32.mrf.mxu0
        %2340 = vmatprep.mubr.bf16.mxu0 0
        %2341 = vmatmul.mubr.bf16.gmra.mxu0 %v2137
        %v2342 = vpop.f32.mrf.mxu0
        %v2343 = vadd.f32 %v624, %v2342
        %v2344 = vpop.f32.mrf.mxu0
        %v2345 = vpop.f32.mrf.mxu0
        %v2346 = vadd.f32 %v624, %v2345
        %v2347 = vpop.f32.mrf.mxu0
        %2348 = vmatprep.mubr.bf16.mxu0 0
        %2349 = vmatmul.mubr.bf16.gmra.mxu0 %v2138
        %v2350 = vpop.f32.mrf.mxu0
        %v2351 = vadd.f32 %v624, %v2350
        %v2352 = vpop.f32.mrf.mxu0
        %v2353 = vpop.f32.mrf.mxu0
        %v2354 = vadd.f32 %v624, %v2353
        %v2355 = vpop.f32.mrf.mxu0
        %2356 = vmatprep.mubr.bf16.mxu0 0
        %2357 = vmatmul.mubr.bf16.gmra.mxu0 %v2139
        %v2358 = vpop.f32.mrf.mxu0
        %v2359 = vadd.f32 %v624, %v2358
        %v2360 = vpop.f32.mrf.mxu0
        %v2361 = vpop.f32.mrf.mxu0
        %v2362 = vadd.f32 %v624, %v2361
        %v2363 = vpop.f32.mrf.mxu0
        %2364 = vdwg.mxu0
        %v2365 = vld [vmem:[#allocation2] sm:$0xff]
        %v2366 = vld [vmem:[#allocation2 + $0x8] sm:$0xff]
        %v2367 = vld [vmem:[#allocation2 + $0x10] sm:$0xff]
        %v2368 = vld [vmem:[#allocation2 + $0x18] sm:$0xff]
        %v2369 = vld [vmem:[#allocation2 + $0x20] sm:$0xff]
        %v2370 = vld [vmem:[#allocation2 + $0x28] sm:$0xff]
        %v2371 = vld [vmem:[#allocation2 + $0x30] sm:$0xff]
        %v2372 = vld [vmem:[#allocation2 + $0x38] sm:$0xff]
        %v2373 = vld [vmem:[#allocation2 + $0x40] sm:$0xff]
        %v2374 = vld [vmem:[#allocation2 + $0x48] sm:$0xff]
        %v2375 = vld [vmem:[#allocation2 + $0x50] sm:$0xff]
        %v2376 = vld [vmem:[#allocation2 + $0x58] sm:$0xff]
        %v2377 = vld [vmem:[#allocation2 + $0x60] sm:$0xff]
        %v2378 = vld [vmem:[#allocation2 + $0x68] sm:$0xff]
        %v2379 = vld [vmem:[#allocation2 + $0x70] sm:$0xff]
        %v2380 = vld [vmem:[#allocation2 + $0x78] sm:$0xff]
        %v2381 = vld [vmem:[#allocation2 + $0x80] sm:$0xff]
        %v2382 = vld [vmem:[#allocation2 + $0x88] sm:$0xff]
        %v2383 = vld [vmem:[#allocation2 + $0x90] sm:$0xff]
        %v2384 = vld [vmem:[#allocation2 + $0x98] sm:$0xff]
        %v2385 = vld [vmem:[#allocation2 + $0xa0] sm:$0xff]
        %v2386 = vld [vmem:[#allocation2 + $0xa8] sm:$0xff]
        %v2387 = vld [vmem:[#allocation2 + $0xb0] sm:$0xff]
        %v2388 = vld [vmem:[#allocation2 + $0xb8] sm:$0xff]
        %v2389 = vld [vmem:[#allocation2 + $0xc0] sm:$0xff]
        %v2390 = vld [vmem:[#allocation2 + $0xc8] sm:$0xff]
        %v2391 = vld [vmem:[#allocation2 + $0xd0] sm:$0xff]
        %v2392 = vld [vmem:[#allocation2 + $0xd8] sm:$0xff]
        %v2393 = vld [vmem:[#allocation2 + $0xe0] sm:$0xff]
        %v2394 = vld [vmem:[#allocation2 + $0xe8] sm:$0xff]
        %v2395 = vld [vmem:[#allocation2 + $0xf0] sm:$0xff]
        %v2396 = vld [vmem:[#allocation2 + $0xf8] sm:$0xff]
        %v2397 = vadd.f32 %v2365, %v2239
        %v2398 = vadd.f32 %v2366, %v2242
        %v2399 = vadd.f32 %v2367, %v2247
        %v2400 = vadd.f32 %v2368, %v2250
        %v2401 = vadd.f32 %v2369, %v2255
        %v2402 = vadd.f32 %v2370, %v2258
        %v2403 = vadd.f32 %v2371, %v2263
        %v2404 = vadd.f32 %v2372, %v2266
        %v2405 = vadd.f32 %v2373, %v2271
        %v2406 = vadd.f32 %v2374, %v2274
        %v2407 = vadd.f32 %v2375, %v2279
        %v2408 = vadd.f32 %v2376, %v2282
        %v2409 = vadd.f32 %v2377, %v2287
        %v2410 = vadd.f32 %v2378, %v2290
        %v2411 = vadd.f32 %v2379, %v2295
        %v2412 = vadd.f32 %v2380, %v2298
        %v2413 = vadd.f32 %v2381, %v2303
        %v2414 = vadd.f32 %v2382, %v2306
        %v2415 = vadd.f32 %v2383, %v2311
        %v2416 = vadd.f32 %v2384, %v2314
        %v2417 = vadd.f32 %v2385, %v2319
        %v2418 = vadd.f32 %v2386, %v2322
        %v2419 = vadd.f32 %v2387, %v2327
        %v2420 = vadd.f32 %v2388, %v2330
        %v2421 = vadd.f32 %v2389, %v2335
        %v2422 = vadd.f32 %v2390, %v2338
        %v2423 = vadd.f32 %v2391, %v2343
        %v2424 = vadd.f32 %v2392, %v2346
        %v2425 = vadd.f32 %v2393, %v2351
        %v2426 = vadd.f32 %v2394, %v2354
        %v2427 = vadd.f32 %v2395, %v2359
        %v2428 = vadd.f32 %v2396, %v2362
        %v2429 = vmax.f32 %v2397, 0.0
        %v2430 = vmax.f32 %v2398, 0.0
        %v2431 = vmax.f32 %v2399, 0.0
        %v2432 = vmax.f32 %v2400, 0.0
        %v2433 = vmax.f32 %v2401, 0.0
        %v2434 = vmax.f32 %v2402, 0.0
        %v2435 = vmax.f32 %v2403, 0.0
        %v2436 = vmax.f32 %v2404, 0.0
        %v2437 = vmax.f32 %v2405, 0.0
        %v2438 = vmax.f32 %v2406, 0.0
        %v2439 = vmax.f32 %v2407, 0.0
        %v2440 = vmax.f32 %v2408, 0.0
        %v2441 = vmax.f32 %v2409, 0.0
        %v2442 = vmax.f32 %v2410, 0.0
        %v2443 = vmax.f32 %v2411, 0.0
        %v2444 = vmax.f32 %v2412, 0.0
        %v2445 = vmax.f32 %v2413, 0.0
        %v2446 = vmax.f32 %v2414, 0.0
        %v2447 = vmax.f32 %v2415, 0.0
        %v2448 = vmax.f32 %v2416, 0.0
        %v2449 = vmax.f32 %v2417, 0.0
        %v2450 = vmax.f32 %v2418, 0.0
        %v2451 = vmax.f32 %v2419, 0.0
        %v2452 = vmax.f32 %v2420, 0.0
        %v2453 = vmax.f32 %v2421, 0.0
        %v2454 = vmax.f32 %v2422, 0.0
        %v2455 = vmax.f32 %v2423, 0.0
        %v2456 = vmax.f32 %v2424, 0.0
        %v2457 = vmax.f32 %v2425, 0.0
        %v2458 = vmax.f32 %v2426, 0.0
        %v2459 = vmax.f32 %v2427, 0.0
        %v2460 = vmax.f32 %v2428, 0.0
        %v2461 = vpack.c.bf16 %v2430, %v2429
        %v2462 = vpack.c.bf16 %v2432, %v2431
        %v2463 = vpack.c.bf16 %v2434, %v2433
        %v2464 = vpack.c.bf16 %v2436, %v2435
        %v2465 = vpack.c.bf16 %v2438, %v2437
        %v2466 = vpack.c.bf16 %v2440, %v2439
        %v2467 = vpack.c.bf16 %v2442, %v2441
        %v2468 = vpack.c.bf16 %v2444, %v2443
        %v2469 = vpack.c.bf16 %v2446, %v2445
        %v2470 = vpack.c.bf16 %v2448, %v2447
        %v2471 = vpack.c.bf16 %v2450, %v2449
        %v2472 = vpack.c.bf16 %v2452, %v2451
        %v2473 = vpack.c.bf16 %v2454, %v2453
        %v2474 = vpack.c.bf16 %v2456, %v2455
        %v2475 = vpack.c.bf16 %v2458, %v2457
        %v2476 = vpack.c.bf16 %v2460, %v2459
        %2477 = vmatprep.subr.bf16.mxu0 0
        %2478 = vmatpush1.bf16.msra.mxu0 %v2468
        %2479 = vmatprep.subr.bf16.mxu0 0
        %2480 = vmatpush1.bf16.msra.mxu0 %v2467
        %2481 = vmatprep.subr.bf16.mxu0 0
        %2482 = vmatpush1.bf16.msra.mxu0 %v2466
        %2483 = vmatprep.subr.bf16.mxu0 0
        %2484 = vmatpush1.bf16.msra.mxu0 %v2465
        %2485 = vmatprep.subr.bf16.mxu0 0
        %2486 = vmatpush1.bf16.msra.mxu0 %v2464
        %2487 = vmatprep.subr.bf16.mxu0 0
        %2488 = vmatpush1.bf16.msra.mxu0 %v2463
        %2489 = vmatprep.subr.bf16.mxu0 0
        %2490 = vmatpush1.bf16.msra.mxu0 %v2462
        %2491 = vmatprep.subr.bf16.mxu0 0
        %2492 = vmatpush1.bf16.msra.mxu0 %v2461
        %2493 = vmatprep.subr.bf16.mxu0 0
        %2494 = vmatpush2.bf16.msra.mxu0 %v2476
        %2495 = vmatprep.subr.bf16.mxu0 0
        %2496 = vmatpush2.bf16.msra.mxu0 %v2475
        %2497 = vmatprep.subr.bf16.mxu0 0
        %2498 = vmatpush2.bf16.msra.mxu0 %v2474
        %2499 = vmatprep.subr.bf16.mxu0 0
        %2500 = vmatpush2.bf16.msra.mxu0 %v2473
        %2501 = vmatprep.subr.bf16.mxu0 0
        %2502 = vmatpush2.bf16.msra.mxu0 %v2472
        %2503 = vmatprep.subr.bf16.mxu0 0
        %2504 = vmatpush2.bf16.msra.mxu0 %v2471
        %2505 = vmatprep.subr.bf16.mxu0 0
        %2506 = vmatpush2.bf16.msra.mxu0 %v2470
        %2507 = vmatprep.subr.bf16.mxu0 0
        %2508 = vmatpush2.bf16.msra.mxu0 %v2469
        %2509 = vmatprep.mubr.bf16.mxu0 %v1394
        %2510 = vmatmul.mubr.bf16.gmra.mxu0 %v1393
        %v2511 = vpop.f32.mrf.mxu0
        %v2512 = vadd.f32 0.0, %v2511
        %v2513 = vpop.f32.mrf.mxu0
        %v2514 = vpop.f32.mrf.mxu0
        %v2515 = vadd.f32 0.0, %v2514
        %v2516 = vpop.f32.mrf.mxu0
        %2517 = vmatprep.mubr.bf16.mxu0 %v1396
        %2518 = vmatmul.mubr.bf16.gmra.mxu0 %v1395
        %v2519 = vpop.f32.mrf.mxu0
        %v2520 = vadd.f32 0.0, %v2519
        %v2521 = vpop.f32.mrf.mxu0
        %v2522 = vpop.f32.mrf.mxu0
        %v2523 = vadd.f32 0.0, %v2522
        %v2524 = vpop.f32.mrf.mxu0
        %2525 = vmatprep.mubr.bf16.mxu0 %v1398
        %2526 = vmatmul.mubr.bf16.gmra.mxu0 %v1397
        %v2527 = vpop.f32.mrf.mxu0
        %v2528 = vadd.f32 0.0, %v2527
        %v2529 = vpop.f32.mrf.mxu0
        %v2530 = vpop.f32.mrf.mxu0
        %v2531 = vadd.f32 0.0, %v2530
        %v2532 = vpop.f32.mrf.mxu0
        %2533 = vmatprep.mubr.bf16.mxu0 %v1400
        %2534 = vmatmul.mubr.bf16.gmra.mxu0 %v1399
        %v2535 = vpop.f32.mrf.mxu0
        %v2536 = vadd.f32 0.0, %v2535
        %v2537 = vpop.f32.mrf.mxu0
        %v2538 = vpop.f32.mrf.mxu0
        %v2539 = vadd.f32 0.0, %v2538
        %v2540 = vpop.f32.mrf.mxu0
        %2541 = vmatprep.mubr.bf16.mxu0 %v1402
        %2542 = vmatmul.mubr.bf16.gmra.mxu0 %v1401
        %v2543 = vpop.f32.mrf.mxu0
        %v2544 = vadd.f32 0.0, %v2543
        %v2545 = vpop.f32.mrf.mxu0
        %v2546 = vpop.f32.mrf.mxu0
        %v2547 = vadd.f32 0.0, %v2546
        %v2548 = vpop.f32.mrf.mxu0
        %2549 = vmatprep.mubr.bf16.mxu0 %v1404
        %2550 = vmatmul.mubr.bf16.gmra.mxu0 %v1403
        %v2551 = vpop.f32.mrf.mxu0
        %v2552 = vadd.f32 0.0, %v2551
        %v2553 = vpop.f32.mrf.mxu0
        %v2554 = vpop.f32.mrf.mxu0
        %v2555 = vadd.f32 0.0, %v2554
        %v2556 = vpop.f32.mrf.mxu0
        %2557 = vmatprep.mubr.bf16.mxu0 %v1406
        %2558 = vmatmul.mubr.bf16.gmra.mxu0 %v1405
        %v2559 = vpop.f32.mrf.mxu0
        %v2560 = vadd.f32 0.0, %v2559
        %v2561 = vpop.f32.mrf.mxu0
        %v2562 = vpop.f32.mrf.mxu0
        %v2563 = vadd.f32 0.0, %v2562
        %v2564 = vpop.f32.mrf.mxu0
        %2565 = vmatprep.mubr.bf16.mxu0 %v1408
        %2566 = vmatmul.mubr.bf16.gmra.mxu0 %v1407
        %v2567 = vpop.f32.mrf.mxu0
        %v2568 = vadd.f32 0.0, %v2567
        %v2569 = vpop.f32.mrf.mxu0
        %v2570 = vpop.f32.mrf.mxu0
        %v2571 = vadd.f32 0.0, %v2570
        %v2572 = vpop.f32.mrf.mxu0
        %2573 = vdwg.mxu0
        %v2574 = vpack.c.bf16 %v2515, %v2512
        %v2575 = vpack.c.bf16 %v2523, %v2520
        %v2576 = vpack.c.bf16 %v2531, %v2528
        %v2577 = vpack.c.bf16 %v2539, %v2536
        %v2578 = vpack.c.bf16 %v2547, %v2544
        %v2579 = vpack.c.bf16 %v2555, %v2552
        %v2580 = vpack.c.bf16 %v2563, %v2560
        %v2581 = vpack.c.bf16 %v2571, %v2568
        %2582 = vmatprep.subr.bf16.mxu0 0
        %2583 = vmatpush1.bf16.msra.mxu0 %v2581
        %2584 = vmatprep.subr.bf16.mxu0 0
        %2585 = vmatpush1.bf16.msra.mxu0 %v2580
        %2586 = vmatprep.subr.bf16.mxu0 0
        %2587 = vmatpush1.bf16.msra.mxu0 %v2579
        %2588 = vmatprep.subr.bf16.mxu0 0
        %2589 = vmatpush1.bf16.msra.mxu0 %v2578
        %2590 = vmatprep.subr.bf16.mxu0 0
        %2591 = vmatpush1.bf16.msra.mxu0 %v2577
        %2592 = vmatprep.subr.bf16.mxu0 0
        %2593 = vmatpush1.bf16.msra.mxu0 %v2576
        %2594 = vmatprep.subr.bf16.mxu0 0
        %2595 = vmatpush1.bf16.msra.mxu0 %v2575
        %2596 = vmatprep.subr.bf16.mxu0 0
        %2597 = vmatpush1.bf16.msra.mxu0 %v2574
        %2598 = vmatprep.subr.bf16.mxu0 0
        %2599 = vmatpush2.bf16.msra.mxu0 0
        %2600 = vmatprep.subr.bf16.mxu0 0
        %2601 = vmatpush2.bf16.msra.mxu0 0
        %2602 = vmatprep.subr.bf16.mxu0 0
        %2603 = vmatpush2.bf16.msra.mxu0 0
        %2604 = vmatprep.subr.bf16.mxu0 0
        %2605 = vmatpush2.bf16.msra.mxu0 0
        %2606 = vmatprep.subr.bf16.mxu0 0
        %2607 = vmatpush2.bf16.msra.mxu0 0
        %2608 = vmatprep.subr.bf16.mxu0 0
        %2609 = vmatpush2.bf16.msra.mxu0 0
        %2610 = vmatprep.subr.bf16.mxu0 0
        %2611 = vmatpush2.bf16.msra.mxu0 0
        %2612 = vmatprep.subr.bf16.mxu0 0
        %2613 = vmatpush2.bf16.msra.mxu0 0
        %2614 = vmatprep.mubr.bf16.mxu0 0
        %2615 = vmatmul.mubr.bf16.gmra.mxu0 %v1626
        %v2616 = vpop.f32.mrf.mxu0
        %v2617 = vadd.f32 0.0, %v2616
        %v2618 = vpop.f32.mrf.mxu0
        %v2619 = vpop.f32.mrf.mxu0
        %v2620 = vadd.f32 0.0, %v2619
        %v2621 = vpop.f32.mrf.mxu0
        %2622 = vmatprep.mubr.bf16.mxu0 0
        %2623 = vmatmul.mubr.bf16.gmra.mxu0 %v1627
        %v2624 = vpop.f32.mrf.mxu0
        %v2625 = vadd.f32 0.0, %v2624
        %v2626 = vpop.f32.mrf.mxu0
        %v2627 = vpop.f32.mrf.mxu0
        %v2628 = vadd.f32 0.0, %v2627
        %v2629 = vpop.f32.mrf.mxu0
        %2630 = vmatprep.mubr.bf16.mxu0 0
        %2631 = vmatmul.mubr.bf16.gmra.mxu0 %v1628
        %v2632 = vpop.f32.mrf.mxu0
        %v2633 = vadd.f32 0.0, %v2632
        %v2634 = vpop.f32.mrf.mxu0
        %v2635 = vpop.f32.mrf.mxu0
        %v2636 = vadd.f32 0.0, %v2635
        %v2637 = vpop.f32.mrf.mxu0
        %2638 = vmatprep.mubr.bf16.mxu0 0
        %2639 = vmatmul.mubr.bf16.gmra.mxu0 %v1629
        %v2640 = vpop.f32.mrf.mxu0
        %v2641 = vadd.f32 0.0, %v2640
        %v2642 = vpop.f32.mrf.mxu0
        %v2643 = vpop.f32.mrf.mxu0
        %v2644 = vadd.f32 0.0, %v2643
        %v2645 = vpop.f32.mrf.mxu0
        %2646 = vmatprep.mubr.bf16.mxu0 0
        %2647 = vmatmul.mubr.bf16.gmra.mxu0 %v1630
        %v2648 = vpop.f32.mrf.mxu0
        %v2649 = vadd.f32 0.0, %v2648
        %v2650 = vpop.f32.mrf.mxu0
        %v2651 = vpop.f32.mrf.mxu0
        %v2652 = vadd.f32 0.0, %v2651
        %v2653 = vpop.f32.mrf.mxu0
        %2654 = vmatprep.mubr.bf16.mxu0 0
        %2655 = vmatmul.mubr.bf16.gmra.mxu0 %v1631
        %v2656 = vpop.f32.mrf.mxu0
        %v2657 = vadd.f32 0.0, %v2656
        %v2658 = vpop.f32.mrf.mxu0
        %v2659 = vpop.f32.mrf.mxu0
        %v2660 = vadd.f32 0.0, %v2659
        %v2661 = vpop.f32.mrf.mxu0
        %2662 = vmatprep.mubr.bf16.mxu0 0
        %2663 = vmatmul.mubr.bf16.gmra.mxu0 %v1632
        %v2664 = vpop.f32.mrf.mxu0
        %v2665 = vadd.f32 0.0, %v2664
        %v2666 = vpop.f32.mrf.mxu0
        %v2667 = vpop.f32.mrf.mxu0
        %v2668 = vadd.f32 0.0, %v2667
        %v2669 = vpop.f32.mrf.mxu0
        %2670 = vmatprep.mubr.bf16.mxu0 0
        %2671 = vmatmul.mubr.bf16.gmra.mxu0 %v1633
        %v2672 = vpop.f32.mrf.mxu0
        %v2673 = vadd.f32 0.0, %v2672
        %v2674 = vpop.f32.mrf.mxu0
        %v2675 = vpop.f32.mrf.mxu0
        %v2676 = vadd.f32 0.0, %v2675
        %v2677 = vpop.f32.mrf.mxu0
        %2678 = vmatprep.mubr.bf16.mxu0 0
        %2679 = vmatmul.mubr.bf16.gmra.mxu0 %v1634
        %v2680 = vpop.f32.mrf.mxu0
        %v2681 = vadd.f32 0.0, %v2680
        %v2682 = vpop.f32.mrf.mxu0
        %v2683 = vpop.f32.mrf.mxu0
        %v2684 = vadd.f32 0.0, %v2683
        %v2685 = vpop.f32.mrf.mxu0
        %2686 = vmatprep.mubr.bf16.mxu0 0
        %2687 = vmatmul.mubr.bf16.gmra.mxu0 %v1635
        %v2688 = vpop.f32.mrf.mxu0
        %v2689 = vadd.f32 0.0, %v2688
        %v2690 = vpop.f32.mrf.mxu0
        %v2691 = vpop.f32.mrf.mxu0
        %v2692 = vadd.f32 0.0, %v2691
        %v2693 = vpop.f32.mrf.mxu0
        %2694 = vmatprep.mubr.bf16.mxu0 0
        %2695 = vmatmul.mubr.bf16.gmra.mxu0 %v1636
        %v2696 = vpop.f32.mrf.mxu0
        %v2697 = vadd.f32 0.0, %v2696
        %v2698 = vpop.f32.mrf.mxu0
        %v2699 = vpop.f32.mrf.mxu0
        %v2700 = vadd.f32 0.0, %v2699
        %v2701 = vpop.f32.mrf.mxu0
        %2702 = vmatprep.mubr.bf16.mxu0 0
        %2703 = vmatmul.mubr.bf16.gmra.mxu0 %v1637
        %v2704 = vpop.f32.mrf.mxu0
        %v2705 = vadd.f32 0.0, %v2704
        %v2706 = vpop.f32.mrf.mxu0
        %v2707 = vpop.f32.mrf.mxu0
        %v2708 = vadd.f32 0.0, %v2707
        %v2709 = vpop.f32.mrf.mxu0
        %2710 = vmatprep.mubr.bf16.mxu0 0
        %2711 = vmatmul.mubr.bf16.gmra.mxu0 %v1638
        %v2712 = vpop.f32.mrf.mxu0
        %v2713 = vadd.f32 0.0, %v2712
        %v2714 = vpop.f32.mrf.mxu0
        %v2715 = vpop.f32.mrf.mxu0
        %v2716 = vadd.f32 0.0, %v2715
        %v2717 = vpop.f32.mrf.mxu0
        %2718 = vmatprep.mubr.bf16.mxu0 0
        %2719 = vmatmul.mubr.bf16.gmra.mxu0 %v1639
        %v2720 = vpop.f32.mrf.mxu0
        %v2721 = vadd.f32 0.0, %v2720
        %v2722 = vpop.f32.mrf.mxu0
        %v2723 = vpop.f32.mrf.mxu0
        %v2724 = vadd.f32 0.0, %v2723
        %v2725 = vpop.f32.mrf.mxu0
        %2726 = vmatprep.mubr.bf16.mxu0 0
        %2727 = vmatmul.mubr.bf16.gmra.mxu0 %v1640
        %v2728 = vpop.f32.mrf.mxu0
        %v2729 = vadd.f32 0.0, %v2728
        %v2730 = vpop.f32.mrf.mxu0
        %v2731 = vpop.f32.mrf.mxu0
        %v2732 = vadd.f32 0.0, %v2731
        %v2733 = vpop.f32.mrf.mxu0
        %2734 = vmatprep.mubr.bf16.mxu0 0
        %2735 = vmatmul.mubr.bf16.gmra.mxu0 %v1641
        %v2736 = vpop.f32.mrf.mxu0
        %v2737 = vadd.f32 0.0, %v2736
        %v2738 = vpop.f32.mrf.mxu0
        %v2739 = vpop.f32.mrf.mxu0
        %v2740 = vadd.f32 0.0, %v2739
        %v2741 = vpop.f32.mrf.mxu0
        %2742 = vdwg.mxu0
        %v2743 = vsub.f32 %v2617, %v2429
        %v2744 = vsub.f32 %v2620, %v2430
        %v2745 = vsub.f32 %v2625, %v2431
        %v2746 = vsub.f32 %v2628, %v2432
        %v2747 = vsub.f32 %v2633, %v2433
        %v2748 = vsub.f32 %v2636, %v2434
        %v2749 = vsub.f32 %v2641, %v2435
        %v2750 = vsub.f32 %v2644, %v2436
        %v2751 = vsub.f32 %v2649, %v2437
        %v2752 = vsub.f32 %v2652, %v2438
        %v2753 = vsub.f32 %v2657, %v2439
        %v2754 = vsub.f32 %v2660, %v2440
        %v2755 = vsub.f32 %v2665, %v2441
        %v2756 = vsub.f32 %v2668, %v2442
        %v2757 = vsub.f32 %v2673, %v2443
        %v2758 = vsub.f32 %v2676, %v2444
        %v2759 = vsub.f32 %v2681, %v2445
        %v2760 = vsub.f32 %v2684, %v2446
        %v2761 = vsub.f32 %v2689, %v2447
        %v2762 = vsub.f32 %v2692, %v2448
        %v2763 = vsub.f32 %v2697, %v2449
        %v2764 = vsub.f32 %v2700, %v2450
        %v2765 = vsub.f32 %v2705, %v2451
        %v2766 = vsub.f32 %v2708, %v2452
        %v2767 = vsub.f32 %v2713, %v2453
        %v2768 = vsub.f32 %v2716, %v2454
        %v2769 = vsub.f32 %v2721, %v2455
        %v2770 = vsub.f32 %v2724, %v2456
        %v2771 = vsub.f32 %v2729, %v2457
        %v2772 = vsub.f32 %v2732, %v2458
        %v2773 = vsub.f32 %v2737, %v2459
        %v2774 = vsub.f32 %v2740, %v2460
        %v2775 = vpack.c.bf16 %v2744, %v2743
        %v2776 = vpack.c.bf16 %v2746, %v2745
        %v2777 = vpack.c.bf16 %v2748, %v2747
        %v2778 = vpack.c.bf16 %v2750, %v2749
        %v2779 = vpack.c.bf16 %v2752, %v2751
        %v2780 = vpack.c.bf16 %v2754, %v2753
        %v2781 = vpack.c.bf16 %v2756, %v2755
        %v2782 = vpack.c.bf16 %v2758, %v2757
        %v2783 = vpack.c.bf16 %v2760, %v2759
        %v2784 = vpack.c.bf16 %v2762, %v2761
        %v2785 = vpack.c.bf16 %v2764, %v2763
        %v2786 = vpack.c.bf16 %v2766, %v2765
        %v2787 = vpack.c.bf16 %v2768, %v2767
        %v2788 = vpack.c.bf16 %v2770, %v2769
        %v2789 = vpack.c.bf16 %v2772, %v2771
        %v2790 = vpack.c.bf16 %v2774, %v2773
        %2791 = vmatprep.subr.bf16.mxu0 0
        %2792 = vmatpush1.bf16.msra.mxu0 %v1922
        %2793 = vmatprep.subr.bf16.mxu0 0
        %2794 = vmatpush1.bf16.msra.mxu0 %v1921
        %2795 = vmatprep.subr.bf16.mxu0 0
        %2796 = vmatpush1.bf16.msra.mxu0 %v1920
        %2797 = vmatprep.subr.bf16.mxu0 0
        %2798 = vmatpush1.bf16.msra.mxu0 %v1919
        %2799 = vmatprep.subr.bf16.mxu0 0
        %2800 = vmatpush1.bf16.msra.mxu0 %v1918
        %2801 = vmatprep.subr.bf16.mxu0 0
        %2802 = vmatpush1.bf16.msra.mxu0 %v1917
        %2803 = vmatprep.subr.bf16.mxu0 0
        %2804 = vmatpush1.bf16.msra.mxu0 %v1916
        %2805 = vmatprep.subr.bf16.mxu0 0
        %2806 = vmatpush1.bf16.msra.mxu0 %v1915
        %2807 = vmatprep.subr.bf16.mxu0 0
        %2808 = vmatpush2.bf16.msra.mxu0 0
        %2809 = vmatprep.subr.bf16.mxu0 0
        %2810 = vmatpush2.bf16.msra.mxu0 0
        %2811 = vmatprep.subr.bf16.mxu0 0
        %2812 = vmatpush2.bf16.msra.mxu0 0
        %2813 = vmatprep.subr.bf16.mxu0 0
        %2814 = vmatpush2.bf16.msra.mxu0 0
        %2815 = vmatprep.subr.bf16.mxu0 0
        %2816 = vmatpush2.bf16.msra.mxu0 0
        %2817 = vmatprep.subr.bf16.mxu0 0
        %2818 = vmatpush2.bf16.msra.mxu0 0
        %2819 = vmatprep.subr.bf16.mxu0 0
        %2820 = vmatpush2.bf16.msra.mxu0 0
        %2821 = vmatprep.subr.bf16.mxu0 0
        %2822 = vmatpush2.bf16.msra.mxu0 0
        %2823 = vmatprep.mubr.bf16.mxu0 0
        %2824 = vmatmul.mubr.bf16.gmra.mxu0 %v2775
        %v2825 = vpop.f32.mrf.mxu0
        %v2826 = vadd.f32 %v619, %v2825
        %v2827 = vpop.f32.mrf.mxu0
        %v2828 = vpop.f32.mrf.mxu0
        %v2829 = vadd.f32 %v619, %v2828
        %v2830 = vpop.f32.mrf.mxu0
        %2831 = vmatprep.mubr.bf16.mxu0 0
        %2832 = vmatmul.mubr.bf16.gmra.mxu0 %v2776
        %v2833 = vpop.f32.mrf.mxu0
        %v2834 = vadd.f32 %v619, %v2833
        %v2835 = vpop.f32.mrf.mxu0
        %v2836 = vpop.f32.mrf.mxu0
        %v2837 = vadd.f32 %v619, %v2836
        %v2838 = vpop.f32.mrf.mxu0
        %2839 = vmatprep.mubr.bf16.mxu0 0
        %2840 = vmatmul.mubr.bf16.gmra.mxu0 %v2777
        %v2841 = vpop.f32.mrf.mxu0
        %v2842 = vadd.f32 %v619, %v2841
        %v2843 = vpop.f32.mrf.mxu0
        %v2844 = vpop.f32.mrf.mxu0
        %v2845 = vadd.f32 %v619, %v2844
        %v2846 = vpop.f32.mrf.mxu0
        %2847 = vmatprep.mubr.bf16.mxu0 0
        %2848 = vmatmul.mubr.bf16.gmra.mxu0 %v2778
        %v2849 = vpop.f32.mrf.mxu0
        %v2850 = vadd.f32 %v619, %v2849
        %v2851 = vpop.f32.mrf.mxu0
        %v2852 = vpop.f32.mrf.mxu0
        %v2853 = vadd.f32 %v619, %v2852
        %v2854 = vpop.f32.mrf.mxu0
        %2855 = vmatprep.mubr.bf16.mxu0 0
        %2856 = vmatmul.mubr.bf16.gmra.mxu0 %v2779
        %v2857 = vpop.f32.mrf.mxu0
        %v2858 = vadd.f32 %v619, %v2857
        %v2859 = vpop.f32.mrf.mxu0
        %v2860 = vpop.f32.mrf.mxu0
        %v2861 = vadd.f32 %v619, %v2860
        %v2862 = vpop.f32.mrf.mxu0
        %2863 = vmatprep.mubr.bf16.mxu0 0
        %2864 = vmatmul.mubr.bf16.gmra.mxu0 %v2780
        %v2865 = vpop.f32.mrf.mxu0
        %v2866 = vadd.f32 %v619, %v2865
        %v2867 = vpop.f32.mrf.mxu0
        %v2868 = vpop.f32.mrf.mxu0
        %v2869 = vadd.f32 %v619, %v2868
        %v2870 = vpop.f32.mrf.mxu0
        %2871 = vmatprep.mubr.bf16.mxu0 0
        %2872 = vmatmul.mubr.bf16.gmra.mxu0 %v2781
        %v2873 = vpop.f32.mrf.mxu0
        %v2874 = vadd.f32 %v619, %v2873
        %v2875 = vpop.f32.mrf.mxu0
        %v2876 = vpop.f32.mrf.mxu0
        %v2877 = vadd.f32 %v619, %v2876
        %v2878 = vpop.f32.mrf.mxu0
        %2879 = vmatprep.mubr.bf16.mxu0 0
        %2880 = vmatmul.mubr.bf16.gmra.mxu0 %v2782
        %v2881 = vpop.f32.mrf.mxu0
        %v2882 = vadd.f32 %v619, %v2881
        %v2883 = vpop.f32.mrf.mxu0
        %v2884 = vpop.f32.mrf.mxu0
        %v2885 = vadd.f32 %v619, %v2884
        %v2886 = vpop.f32.mrf.mxu0
        %2887 = vmatprep.mubr.bf16.mxu0 0
        %2888 = vmatmul.mubr.bf16.gmra.mxu0 %v2783
        %v2889 = vpop.f32.mrf.mxu0
        %v2890 = vadd.f32 %v619, %v2889
        %v2891 = vpop.f32.mrf.mxu0
        %v2892 = vpop.f32.mrf.mxu0
        %v2893 = vadd.f32 %v619, %v2892
        %v2894 = vpop.f32.mrf.mxu0
        %2895 = vmatprep.mubr.bf16.mxu0 0
        %2896 = vmatmul.mubr.bf16.gmra.mxu0 %v2784
        %v2897 = vpop.f32.mrf.mxu0
        %v2898 = vadd.f32 %v619, %v2897
        %v2899 = vpop.f32.mrf.mxu0
        %v2900 = vpop.f32.mrf.mxu0
        %v2901 = vadd.f32 %v619, %v2900
        %v2902 = vpop.f32.mrf.mxu0
        %2903 = vmatprep.mubr.bf16.mxu0 0
        %2904 = vmatmul.mubr.bf16.gmra.mxu0 %v2785
        %v2905 = vpop.f32.mrf.mxu0
        %v2906 = vadd.f32 %v619, %v2905
        %v2907 = vpop.f32.mrf.mxu0
        %v2908 = vpop.f32.mrf.mxu0
        %v2909 = vadd.f32 %v619, %v2908
        %v2910 = vpop.f32.mrf.mxu0
        %2911 = vmatprep.mubr.bf16.mxu0 0
        %2912 = vmatmul.mubr.bf16.gmra.mxu0 %v2786
        %v2913 = vpop.f32.mrf.mxu0
        %v2914 = vadd.f32 %v619, %v2913
        %v2915 = vpop.f32.mrf.mxu0
        %v2916 = vpop.f32.mrf.mxu0
        %v2917 = vadd.f32 %v619, %v2916
        %v2918 = vpop.f32.mrf.mxu0
        %2919 = vmatprep.mubr.bf16.mxu0 0
        %2920 = vmatmul.mubr.bf16.gmra.mxu0 %v2787
        %v2921 = vpop.f32.mrf.mxu0
        %v2922 = vadd.f32 %v619, %v2921
        %v2923 = vpop.f32.mrf.mxu0
        %v2924 = vpop.f32.mrf.mxu0
        %v2925 = vadd.f32 %v619, %v2924
        %v2926 = vpop.f32.mrf.mxu0
        %2927 = vmatprep.mubr.bf16.mxu0 0
        %2928 = vmatmul.mubr.bf16.gmra.mxu0 %v2788
        %v2929 = vpop.f32.mrf.mxu0
        %v2930 = vadd.f32 %v619, %v2929
        %v2931 = vpop.f32.mrf.mxu0
        %v2932 = vpop.f32.mrf.mxu0
        %v2933 = vadd.f32 %v619, %v2932
        %v2934 = vpop.f32.mrf.mxu0
        %2935 = vmatprep.mubr.bf16.mxu0 0
        %2936 = vmatmul.mubr.bf16.gmra.mxu0 %v2789
        %v2937 = vpop.f32.mrf.mxu0
        %v2938 = vadd.f32 %v619, %v2937
        %v2939 = vpop.f32.mrf.mxu0
        %v2940 = vpop.f32.mrf.mxu0
        %v2941 = vadd.f32 %v619, %v2940
        %v2942 = vpop.f32.mrf.mxu0
        %2943 = vmatprep.mubr.bf16.mxu0 0
        %2944 = vmatmul.mubr.bf16.gmra.mxu0 %v2790
        %v2945 = vpop.f32.mrf.mxu0
        %v2946 = vadd.f32 %v619, %v2945
        %v2947 = vpop.f32.mrf.mxu0
        %v2948 = vpop.f32.mrf.mxu0
        %v2949 = vadd.f32 %v619, %v2948
        %v2950 = vpop.f32.mrf.mxu0
        %2951 = vdwg.mxu0
        %v2952 = vmax.f32 %v2826, 0.0
        %v2953 = vmax.f32 %v2829, 0.0
        %v2954 = vmax.f32 %v2834, 0.0
        %v2955 = vmax.f32 %v2837, 0.0
        %v2956 = vmax.f32 %v2842, 0.0
        %v2957 = vmax.f32 %v2845, 0.0
        %v2958 = vmax.f32 %v2850, 0.0
        %v2959 = vmax.f32 %v2853, 0.0
        %v2960 = vmax.f32 %v2858, 0.0
        %v2961 = vmax.f32 %v2861, 0.0
        %v2962 = vmax.f32 %v2866, 0.0
        %v2963 = vmax.f32 %v2869, 0.0
        %v2964 = vmax.f32 %v2874, 0.0
        %v2965 = vmax.f32 %v2877, 0.0
        %v2966 = vmax.f32 %v2882, 0.0
        %v2967 = vmax.f32 %v2885, 0.0
        %v2968 = vmax.f32 %v2890, 0.0
        %v2969 = vmax.f32 %v2893, 0.0
        %v2970 = vmax.f32 %v2898, 0.0
        %v2971 = vmax.f32 %v2901, 0.0
        %v2972 = vmax.f32 %v2906, 0.0
        %v2973 = vmax.f32 %v2909, 0.0
        %v2974 = vmax.f32 %v2914, 0.0
        %v2975 = vmax.f32 %v2917, 0.0
        %v2976 = vmax.f32 %v2922, 0.0
        %v2977 = vmax.f32 %v2925, 0.0
        %v2978 = vmax.f32 %v2930, 0.0
        %v2979 = vmax.f32 %v2933, 0.0
        %v2980 = vmax.f32 %v2938, 0.0
        %v2981 = vmax.f32 %v2941, 0.0
        %v2982 = vmax.f32 %v2946, 0.0
        %v2983 = vmax.f32 %v2949, 0.0
        %v2984 = vpack.c.bf16 %v2953, %v2952
        %v2985 = vpack.c.bf16 %v2955, %v2954
        %v2986 = vpack.c.bf16 %v2957, %v2956
        %v2987 = vpack.c.bf16 %v2959, %v2958
        %v2988 = vpack.c.bf16 %v2961, %v2960
        %v2989 = vpack.c.bf16 %v2963, %v2962
        %v2990 = vpack.c.bf16 %v2965, %v2964
        %v2991 = vpack.c.bf16 %v2967, %v2966
        %v2992 = vpack.c.bf16 %v2969, %v2968
        %v2993 = vpack.c.bf16 %v2971, %v2970
        %v2994 = vpack.c.bf16 %v2973, %v2972
        %v2995 = vpack.c.bf16 %v2975, %v2974
        %v2996 = vpack.c.bf16 %v2977, %v2976
        %v2997 = vpack.c.bf16 %v2979, %v2978
        %v2998 = vpack.c.bf16 %v2981, %v2980
        %v2999 = vpack.c.bf16 %v2983, %v2982
        %3000 = vmatprep.subr.bf16.mxu0 0
        %3001 = vmatpush1.bf16.msra.mxu0 %v2195
        %3002 = vmatprep.subr.bf16.mxu0 0
        %3003 = vmatpush1.bf16.msra.mxu0 %v2194
        %3004 = vmatprep.subr.bf16.mxu0 0
        %3005 = vmatpush1.bf16.msra.mxu0 %v2193
        %3006 = vmatprep.subr.bf16.mxu0 0
        %3007 = vmatpush1.bf16.msra.mxu0 %v2192
        %3008 = vmatprep.subr.bf16.mxu0 0
        %3009 = vmatpush1.bf16.msra.mxu0 %v2191
        %3010 = vmatprep.subr.bf16.mxu0 0
        %3011 = vmatpush1.bf16.msra.mxu0 %v2190
        %3012 = vmatprep.subr.bf16.mxu0 0
        %3013 = vmatpush1.bf16.msra.mxu0 %v2189
        %3014 = vmatprep.subr.bf16.mxu0 0
        %3015 = vmatpush1.bf16.msra.mxu0 %v2188
        %3016 = vmatprep.subr.bf16.mxu0 0
        %3017 = vmatpush2.bf16.msra.mxu0 0
        %3018 = vmatprep.subr.bf16.mxu0 0
        %3019 = vmatpush2.bf16.msra.mxu0 0
        %3020 = vmatprep.subr.bf16.mxu0 0
        %3021 = vmatpush2.bf16.msra.mxu0 0
        %3022 = vmatprep.subr.bf16.mxu0 0
        %3023 = vmatpush2.bf16.msra.mxu0 0
        %3024 = vmatprep.subr.bf16.mxu0 0
        %3025 = vmatpush2.bf16.msra.mxu0 0
        %3026 = vmatprep.subr.bf16.mxu0 0
        %3027 = vmatpush2.bf16.msra.mxu0 0
        %3028 = vmatprep.subr.bf16.mxu0 0
        %3029 = vmatpush2.bf16.msra.mxu0 0
        %3030 = vmatprep.subr.bf16.mxu0 0
        %3031 = vmatpush2.bf16.msra.mxu0 0
        %3032 = vmatprep.mubr.bf16.mxu0 0
        %3033 = vmatmul.mubr.bf16.gmra.mxu0 %v2984
        %v3034 = vpop.f32.mrf.mxu0
        %v3035 = vadd.f32 %v624, %v3034
        %v3036 = vpop.f32.mrf.mxu0
        %v3037 = vpop.f32.mrf.mxu0
        %v3038 = vadd.f32 %v624, %v3037
        %v3039 = vpop.f32.mrf.mxu0
        %3040 = vmatprep.mubr.bf16.mxu0 0
        %3041 = vmatmul.mubr.bf16.gmra.mxu0 %v2985
        %v3042 = vpop.f32.mrf.mxu0
        %v3043 = vadd.f32 %v624, %v3042
        %v3044 = vpop.f32.mrf.mxu0
        %v3045 = vpop.f32.mrf.mxu0
        %v3046 = vadd.f32 %v624, %v3045
        %v3047 = vpop.f32.mrf.mxu0
        %3048 = vmatprep.mubr.bf16.mxu0 0
        %3049 = vmatmul.mubr.bf16.gmra.mxu0 %v2986
        %v3050 = vpop.f32.mrf.mxu0
        %v3051 = vadd.f32 %v624, %v3050
        %v3052 = vpop.f32.mrf.mxu0
        %v3053 = vpop.f32.mrf.mxu0
        %v3054 = vadd.f32 %v624, %v3053
        %v3055 = vpop.f32.mrf.mxu0
        %3056 = vmatprep.mubr.bf16.mxu0 0
        %3057 = vmatmul.mubr.bf16.gmra.mxu0 %v2987
        %v3058 = vpop.f32.mrf.mxu0
        %v3059 = vadd.f32 %v624, %v3058
        %v3060 = vpop.f32.mrf.mxu0
        %v3061 = vpop.f32.mrf.mxu0
        %v3062 = vadd.f32 %v624, %v3061
        %v3063 = vpop.f32.mrf.mxu0
        %3064 = vmatprep.mubr.bf16.mxu0 0
        %3065 = vmatmul.mubr.bf16.gmra.mxu0 %v2988
        %v3066 = vpop.f32.mrf.mxu0
        %v3067 = vadd.f32 %v624, %v3066
        %v3068 = vpop.f32.mrf.mxu0
        %v3069 = vpop.f32.mrf.mxu0
        %v3070 = vadd.f32 %v624, %v3069
        %v3071 = vpop.f32.mrf.mxu0
        %3072 = vmatprep.mubr.bf16.mxu0 0
        %3073 = vmatmul.mubr.bf16.gmra.mxu0 %v2989
        %v3074 = vpop.f32.mrf.mxu0
        %v3075 = vadd.f32 %v624, %v3074
        %v3076 = vpop.f32.mrf.mxu0
        %v3077 = vpop.f32.mrf.mxu0
        %v3078 = vadd.f32 %v624, %v3077
        %v3079 = vpop.f32.mrf.mxu0
        %3080 = vmatprep.mubr.bf16.mxu0 0
        %3081 = vmatmul.mubr.bf16.gmra.mxu0 %v2990
        %v3082 = vpop.f32.mrf.mxu0
        %v3083 = vadd.f32 %v624, %v3082
        %v3084 = vpop.f32.mrf.mxu0
        %v3085 = vpop.f32.mrf.mxu0
        %v3086 = vadd.f32 %v624, %v3085
        %v3087 = vpop.f32.mrf.mxu0
        %3088 = vmatprep.mubr.bf16.mxu0 0
        %3089 = vmatmul.mubr.bf16.gmra.mxu0 %v2991
        %v3090 = vpop.f32.mrf.mxu0
        %v3091 = vadd.f32 %v624, %v3090
        %v3092 = vpop.f32.mrf.mxu0
        %v3093 = vpop.f32.mrf.mxu0
        %v3094 = vadd.f32 %v624, %v3093
        %v3095 = vpop.f32.mrf.mxu0
        %3096 = vmatprep.mubr.bf16.mxu0 0
        %3097 = vmatmul.mubr.bf16.gmra.mxu0 %v2992
        %v3098 = vpop.f32.mrf.mxu0
        %v3099 = vadd.f32 %v624, %v3098
        %v3100 = vpop.f32.mrf.mxu0
        %v3101 = vpop.f32.mrf.mxu0
        %v3102 = vadd.f32 %v624, %v3101
        %v3103 = vpop.f32.mrf.mxu0
        %3104 = vmatprep.mubr.bf16.mxu0 0
        %3105 = vmatmul.mubr.bf16.gmra.mxu0 %v2993
        %v3106 = vpop.f32.mrf.mxu0
        %v3107 = vadd.f32 %v624, %v3106
        %v3108 = vpop.f32.mrf.mxu0
        %v3109 = vpop.f32.mrf.mxu0
        %v3110 = vadd.f32 %v624, %v3109
        %v3111 = vpop.f32.mrf.mxu0
        %3112 = vmatprep.mubr.bf16.mxu0 0
        %3113 = vmatmul.mubr.bf16.gmra.mxu0 %v2994
        %v3114 = vpop.f32.mrf.mxu0
        %v3115 = vadd.f32 %v624, %v3114
        %v3116 = vpop.f32.mrf.mxu0
        %v3117 = vpop.f32.mrf.mxu0
        %v3118 = vadd.f32 %v624, %v3117
        %v3119 = vpop.f32.mrf.mxu0
        %3120 = vmatprep.mubr.bf16.mxu0 0
        %3121 = vmatmul.mubr.bf16.gmra.mxu0 %v2995
        %v3122 = vpop.f32.mrf.mxu0
        %v3123 = vadd.f32 %v624, %v3122
        %v3124 = vpop.f32.mrf.mxu0
        %v3125 = vpop.f32.mrf.mxu0
        %v3126 = vadd.f32 %v624, %v3125
        %v3127 = vpop.f32.mrf.mxu0
        %3128 = vmatprep.mubr.bf16.mxu0 0
        %3129 = vmatmul.mubr.bf16.gmra.mxu0 %v2996
        %v3130 = vpop.f32.mrf.mxu0
        %v3131 = vadd.f32 %v624, %v3130
        %v3132 = vpop.f32.mrf.mxu0
        %v3133 = vpop.f32.mrf.mxu0
        %v3134 = vadd.f32 %v624, %v3133
        %v3135 = vpop.f32.mrf.mxu0
        %3136 = vmatprep.mubr.bf16.mxu0 0
        %3137 = vmatmul.mubr.bf16.gmra.mxu0 %v2997
        %v3138 = vpop.f32.mrf.mxu0
        %v3139 = vadd.f32 %v624, %v3138
        %v3140 = vpop.f32.mrf.mxu0
        %v3141 = vpop.f32.mrf.mxu0
        %v3142 = vadd.f32 %v624, %v3141
        %v3143 = vpop.f32.mrf.mxu0
        %3144 = vmatprep.mubr.bf16.mxu0 0
        %3145 = vmatmul.mubr.bf16.gmra.mxu0 %v2998
        %v3146 = vpop.f32.mrf.mxu0
        %v3147 = vadd.f32 %v624, %v3146
        %v3148 = vpop.f32.mrf.mxu0
        %v3149 = vpop.f32.mrf.mxu0
        %v3150 = vadd.f32 %v624, %v3149
        %v3151 = vpop.f32.mrf.mxu0
        %3152 = vmatprep.mubr.bf16.mxu0 0
        %3153 = vmatmul.mubr.bf16.gmra.mxu0 %v2999
        %v3154 = vpop.f32.mrf.mxu0
        %v3155 = vadd.f32 %v624, %v3154
        %v3156 = vpop.f32.mrf.mxu0
        %v3157 = vpop.f32.mrf.mxu0
        %v3158 = vadd.f32 %v624, %v3157
        %v3159 = vpop.f32.mrf.mxu0
        %3160 = vdwg.mxu0
        %v3161 = vadd.f32 %v2365, %v3035
        %v3162 = vadd.f32 %v2366, %v3038
        %v3163 = vadd.f32 %v2367, %v3043
        %v3164 = vadd.f32 %v2368, %v3046
        %v3165 = vadd.f32 %v2369, %v3051
        %v3166 = vadd.f32 %v2370, %v3054
        %v3167 = vadd.f32 %v2371, %v3059
        %v3168 = vadd.f32 %v2372, %v3062
        %v3169 = vadd.f32 %v2373, %v3067
        %v3170 = vadd.f32 %v2374, %v3070
        %v3171 = vadd.f32 %v2375, %v3075
        %v3172 = vadd.f32 %v2376, %v3078
        %v3173 = vadd.f32 %v2377, %v3083
        %v3174 = vadd.f32 %v2378, %v3086
        %v3175 = vadd.f32 %v2379, %v3091
        %v3176 = vadd.f32 %v2380, %v3094
        %v3177 = vadd.f32 %v2381, %v3099
        %v3178 = vadd.f32 %v2382, %v3102
        %v3179 = vadd.f32 %v2383, %v3107
        %v3180 = vadd.f32 %v2384, %v3110
        %v3181 = vadd.f32 %v2385, %v3115
        %v3182 = vadd.f32 %v2386, %v3118
        %v3183 = vadd.f32 %v2387, %v3123
        %v3184 = vadd.f32 %v2388, %v3126
        %v3185 = vadd.f32 %v2389, %v3131
        %v3186 = vadd.f32 %v2390, %v3134
        %v3187 = vadd.f32 %v2391, %v3139
        %v3188 = vadd.f32 %v2392, %v3142
        %v3189 = vadd.f32 %v2393, %v3147
        %v3190 = vadd.f32 %v2394, %v3150
        %v3191 = vadd.f32 %v2395, %v3155
        %v3192 = vadd.f32 %v2396, %v3158
        %v3193 = vmax.f32 %v3161, 0.0
        %v3194 = vmax.f32 %v3162, 0.0
        %v3195 = vmax.f32 %v3163, 0.0
        %v3196 = vmax.f32 %v3164, 0.0
        %v3197 = vmax.f32 %v3165, 0.0
        %v3198 = vmax.f32 %v3166, 0.0
        %v3199 = vmax.f32 %v3167, 0.0
        %v3200 = vmax.f32 %v3168, 0.0
        %v3201 = vmax.f32 %v3169, 0.0
        %v3202 = vmax.f32 %v3170, 0.0
        %v3203 = vmax.f32 %v3171, 0.0
        %v3204 = vmax.f32 %v3172, 0.0
        %v3205 = vmax.f32 %v3173, 0.0
        %v3206 = vmax.f32 %v3174, 0.0
        %v3207 = vmax.f32 %v3175, 0.0
        %v3208 = vmax.f32 %v3176, 0.0
        %v3209 = vmax.f32 %v3177, 0.0
        %v3210 = vmax.f32 %v3178, 0.0
        %v3211 = vmax.f32 %v3179, 0.0
        %v3212 = vmax.f32 %v3180, 0.0
        %v3213 = vmax.f32 %v3181, 0.0
        %v3214 = vmax.f32 %v3182, 0.0
        %v3215 = vmax.f32 %v3183, 0.0
        %v3216 = vmax.f32 %v3184, 0.0
        %v3217 = vmax.f32 %v3185, 0.0
        %v3218 = vmax.f32 %v3186, 0.0
        %v3219 = vmax.f32 %v3187, 0.0
        %v3220 = vmax.f32 %v3188, 0.0
        %v3221 = vmax.f32 %v3189, 0.0
        %v3222 = vmax.f32 %v3190, 0.0
        %v3223 = vmax.f32 %v3191, 0.0
        %v3224 = vmax.f32 %v3192, 0.0
        %v3225 = vpack.c.bf16 %v3194, %v3193
        %v3226 = vpack.c.bf16 %v3196, %v3195
        %v3227 = vpack.c.bf16 %v3198, %v3197
        %v3228 = vpack.c.bf16 %v3200, %v3199
        %v3229 = vpack.c.bf16 %v3202, %v3201
        %v3230 = vpack.c.bf16 %v3204, %v3203
        %v3231 = vpack.c.bf16 %v3206, %v3205
        %v3232 = vpack.c.bf16 %v3208, %v3207
        %v3233 = vpack.c.bf16 %v3210, %v3209
        %v3234 = vpack.c.bf16 %v3212, %v3211
        %v3235 = vpack.c.bf16 %v3214, %v3213
        %v3236 = vpack.c.bf16 %v3216, %v3215
        %v3237 = vpack.c.bf16 %v3218, %v3217
        %v3238 = vpack.c.bf16 %v3220, %v3219
        %v3239 = vpack.c.bf16 %v3222, %v3221
        %v3240 = vpack.c.bf16 %v3224, %v3223
        %3241 = vmatprep.subr.bf16.mxu0 0
        %3242 = vmatpush1.bf16.msra.mxu0 %v3232
        %3243 = vmatprep.subr.bf16.mxu0 0
        %3244 = vmatpush1.bf16.msra.mxu0 %v3231
        %3245 = vmatprep.subr.bf16.mxu0 0
        %3246 = vmatpush1.bf16.msra.mxu0 %v3230
        %3247 = vmatprep.subr.bf16.mxu0 0
        %3248 = vmatpush1.bf16.msra.mxu0 %v3229
        %3249 = vmatprep.subr.bf16.mxu0 0
        %3250 = vmatpush1.bf16.msra.mxu0 %v3228
        %3251 = vmatprep.subr.bf16.mxu0 0
        %3252 = vmatpush1.bf16.msra.mxu0 %v3227
        %3253 = vmatprep.subr.bf16.mxu0 0
        %3254 = vmatpush1.bf16.msra.mxu0 %v3226
        %3255 = vmatprep.subr.bf16.mxu0 0
        %3256 = vmatpush1.bf16.msra.mxu0 %v3225
        %3257 = vmatprep.subr.bf16.mxu0 0
        %3258 = vmatpush2.bf16.msra.mxu0 %v3240
        %3259 = vmatprep.subr.bf16.mxu0 0
        %3260 = vmatpush2.bf16.msra.mxu0 %v3239
        %3261 = vmatprep.subr.bf16.mxu0 0
        %3262 = vmatpush2.bf16.msra.mxu0 %v3238
        %3263 = vmatprep.subr.bf16.mxu0 0
        %3264 = vmatpush2.bf16.msra.mxu0 %v3237
        %3265 = vmatprep.subr.bf16.mxu0 0
        %3266 = vmatpush2.bf16.msra.mxu0 %v3236
        %3267 = vmatprep.subr.bf16.mxu0 0
        %3268 = vmatpush2.bf16.msra.mxu0 %v3235
        %3269 = vmatprep.subr.bf16.mxu0 0
        %3270 = vmatpush2.bf16.msra.mxu0 %v3234
        %3271 = vmatprep.subr.bf16.mxu0 0
        %3272 = vmatpush2.bf16.msra.mxu0 %v3233
        %3273 = vmatprep.mubr.bf16.mxu0 %v1394
        %3274 = vmatmul.mubr.bf16.gmra.mxu0 %v1393
        %v3275 = vpop.f32.mrf.mxu0
        %v3276 = vadd.f32 0.0, %v3275
        %v3277 = vpop.f32.mrf.mxu0
        %v3278 = vpop.f32.mrf.mxu0
        %v3279 = vadd.f32 0.0, %v3278
        %v3280 = vpop.f32.mrf.mxu0
        %3281 = vmatprep.mubr.bf16.mxu0 %v1396
        %3282 = vmatmul.mubr.bf16.gmra.mxu0 %v1395
        %v3283 = vpop.f32.mrf.mxu0
        %v3284 = vadd.f32 0.0, %v3283
        %v3285 = vpop.f32.mrf.mxu0
        %v3286 = vpop.f32.mrf.mxu0
        %v3287 = vadd.f32 0.0, %v3286
        %v3288 = vpop.f32.mrf.mxu0
        %3289 = vmatprep.mubr.bf16.mxu0 %v1398
        %3290 = vmatmul.mubr.bf16.gmra.mxu0 %v1397
        %v3291 = vpop.f32.mrf.mxu0
        %v3292 = vadd.f32 0.0, %v3291
        %v3293 = vpop.f32.mrf.mxu0
        %v3294 = vpop.f32.mrf.mxu0
        %v3295 = vadd.f32 0.0, %v3294
        %v3296 = vpop.f32.mrf.mxu0
        %3297 = vmatprep.mubr.bf16.mxu0 %v1400
        %3298 = vmatmul.mubr.bf16.gmra.mxu0 %v1399
        %v3299 = vpop.f32.mrf.mxu0
        %v3300 = vadd.f32 0.0, %v3299
        %v3301 = vpop.f32.mrf.mxu0
        %v3302 = vpop.f32.mrf.mxu0
        %v3303 = vadd.f32 0.0, %v3302
        %v3304 = vpop.f32.mrf.mxu0
        %3305 = vmatprep.mubr.bf16.mxu0 %v1402
        %3306 = vmatmul.mubr.bf16.gmra.mxu0 %v1401
        %v3307 = vpop.f32.mrf.mxu0
        %v3308 = vadd.f32 0.0, %v3307
        %v3309 = vpop.f32.mrf.mxu0
        %v3310 = vpop.f32.mrf.mxu0
        %v3311 = vadd.f32 0.0, %v3310
        %v3312 = vpop.f32.mrf.mxu0
        %3313 = vmatprep.mubr.bf16.mxu0 %v1404
        %3314 = vmatmul.mubr.bf16.gmra.mxu0 %v1403
        %v3315 = vpop.f32.mrf.mxu0
        %v3316 = vadd.f32 0.0, %v3315
        %v3317 = vpop.f32.mrf.mxu0
        %v3318 = vpop.f32.mrf.mxu0
        %v3319 = vadd.f32 0.0, %v3318
        %v3320 = vpop.f32.mrf.mxu0
        %3321 = vmatprep.mubr.bf16.mxu0 %v1406
        %3322 = vmatmul.mubr.bf16.gmra.mxu0 %v1405
        %v3323 = vpop.f32.mrf.mxu0
        %v3324 = vadd.f32 0.0, %v3323
        %v3325 = vpop.f32.mrf.mxu0
        %v3326 = vpop.f32.mrf.mxu0
        %v3327 = vadd.f32 0.0, %v3326
        %v3328 = vpop.f32.mrf.mxu0
        %3329 = vmatprep.mubr.bf16.mxu0 %v1408
        %3330 = vmatmul.mubr.bf16.gmra.mxu0 %v1407
        %v3331 = vpop.f32.mrf.mxu0
        %v3332 = vadd.f32 0.0, %v3331
        %v3333 = vpop.f32.mrf.mxu0
        %v3334 = vpop.f32.mrf.mxu0
        %v3335 = vadd.f32 0.0, %v3334
        %v3336 = vpop.f32.mrf.mxu0
        %3337 = vdwg.mxu0
        %v3338 = vpack.c.bf16 %v3279, %v3276
        %v3339 = vpack.c.bf16 %v3287, %v3284
        %v3340 = vpack.c.bf16 %v3295, %v3292
        %v3341 = vpack.c.bf16 %v3303, %v3300
        %v3342 = vpack.c.bf16 %v3311, %v3308
        %v3343 = vpack.c.bf16 %v3319, %v3316
        %v3344 = vpack.c.bf16 %v3327, %v3324
        %v3345 = vpack.c.bf16 %v3335, %v3332
        %3346 = vmatprep.subr.bf16.mxu0 0
        %3347 = vmatpush1.bf16.msra.mxu0 %v3345
        %3348 = vmatprep.subr.bf16.mxu0 0
        %3349 = vmatpush1.bf16.msra.mxu0 %v3344
        %3350 = vmatprep.subr.bf16.mxu0 0
        %3351 = vmatpush1.bf16.msra.mxu0 %v3343
        %3352 = vmatprep.subr.bf16.mxu0 0
        %3353 = vmatpush1.bf16.msra.mxu0 %v3342
        %3354 = vmatprep.subr.bf16.mxu0 0
        %3355 = vmatpush1.bf16.msra.mxu0 %v3341
        %3356 = vmatprep.subr.bf16.mxu0 0
        %3357 = vmatpush1.bf16.msra.mxu0 %v3340
        %3358 = vmatprep.subr.bf16.mxu0 0
        %3359 = vmatpush1.bf16.msra.mxu0 %v3339
        %3360 = vmatprep.subr.bf16.mxu0 0
        %3361 = vmatpush1.bf16.msra.mxu0 %v3338
        %3362 = vmatprep.subr.bf16.mxu0 0
        %3363 = vmatpush2.bf16.msra.mxu0 0
        %3364 = vmatprep.subr.bf16.mxu0 0
        %3365 = vmatpush2.bf16.msra.mxu0 0
        %3366 = vmatprep.subr.bf16.mxu0 0
        %3367 = vmatpush2.bf16.msra.mxu0 0
        %3368 = vmatprep.subr.bf16.mxu0 0
        %3369 = vmatpush2.bf16.msra.mxu0 0
        %3370 = vmatprep.subr.bf16.mxu0 0
        %3371 = vmatpush2.bf16.msra.mxu0 0
        %3372 = vmatprep.subr.bf16.mxu0 0
        %3373 = vmatpush2.bf16.msra.mxu0 0
        %3374 = vmatprep.subr.bf16.mxu0 0
        %3375 = vmatpush2.bf16.msra.mxu0 0
        %3376 = vmatprep.subr.bf16.mxu0 0
        %3377 = vmatpush2.bf16.msra.mxu0 0
        %3378 = vmatprep.mubr.bf16.mxu0 0
        %3379 = vmatmul.mubr.bf16.gmra.mxu0 %v1626
        %v3380 = vpop.f32.mrf.mxu0
        %v3381 = vadd.f32 0.0, %v3380
        %v3382 = vpop.f32.mrf.mxu0
        %v3383 = vpop.f32.mrf.mxu0
        %v3384 = vadd.f32 0.0, %v3383
        %v3385 = vpop.f32.mrf.mxu0
        %3386 = vmatprep.mubr.bf16.mxu0 0
        %3387 = vmatmul.mubr.bf16.gmra.mxu0 %v1627
        %v3388 = vpop.f32.mrf.mxu0
        %v3389 = vadd.f32 0.0, %v3388
        %v3390 = vpop.f32.mrf.mxu0
        %v3391 = vpop.f32.mrf.mxu0
        %v3392 = vadd.f32 0.0, %v3391
        %v3393 = vpop.f32.mrf.mxu0
        %3394 = vmatprep.mubr.bf16.mxu0 0
        %3395 = vmatmul.mubr.bf16.gmra.mxu0 %v1628
        %v3396 = vpop.f32.mrf.mxu0
        %v3397 = vadd.f32 0.0, %v3396
        %v3398 = vpop.f32.mrf.mxu0
        %v3399 = vpop.f32.mrf.mxu0
        %v3400 = vadd.f32 0.0, %v3399
        %v3401 = vpop.f32.mrf.mxu0
        %3402 = vmatprep.mubr.bf16.mxu0 0
        %3403 = vmatmul.mubr.bf16.gmra.mxu0 %v1629
        %v3404 = vpop.f32.mrf.mxu0
        %v3405 = vadd.f32 0.0, %v3404
        %v3406 = vpop.f32.mrf.mxu0
        %v3407 = vpop.f32.mrf.mxu0
        %v3408 = vadd.f32 0.0, %v3407
        %v3409 = vpop.f32.mrf.mxu0
        %3410 = vmatprep.mubr.bf16.mxu0 0
        %3411 = vmatmul.mubr.bf16.gmra.mxu0 %v1630
        %v3412 = vpop.f32.mrf.mxu0
        %v3413 = vadd.f32 0.0, %v3412
        %v3414 = vpop.f32.mrf.mxu0
        %v3415 = vpop.f32.mrf.mxu0
        %v3416 = vadd.f32 0.0, %v3415
        %v3417 = vpop.f32.mrf.mxu0
        %3418 = vmatprep.mubr.bf16.mxu0 0
        %3419 = vmatmul.mubr.bf16.gmra.mxu0 %v1631
        %v3420 = vpop.f32.mrf.mxu0
        %v3421 = vadd.f32 0.0, %v3420
        %v3422 = vpop.f32.mrf.mxu0
        %v3423 = vpop.f32.mrf.mxu0
        %v3424 = vadd.f32 0.0, %v3423
        %v3425 = vpop.f32.mrf.mxu0
        %3426 = vmatprep.mubr.bf16.mxu0 0
        %3427 = vmatmul.mubr.bf16.gmra.mxu0 %v1632
        %v3428 = vpop.f32.mrf.mxu0
        %v3429 = vadd.f32 0.0, %v3428
        %v3430 = vpop.f32.mrf.mxu0
        %v3431 = vpop.f32.mrf.mxu0
        %v3432 = vadd.f32 0.0, %v3431
        %v3433 = vpop.f32.mrf.mxu0
        %3434 = vmatprep.mubr.bf16.mxu0 0
        %3435 = vmatmul.mubr.bf16.gmra.mxu0 %v1633
        %v3436 = vpop.f32.mrf.mxu0
        %v3437 = vadd.f32 0.0, %v3436
        %v3438 = vpop.f32.mrf.mxu0
        %v3439 = vpop.f32.mrf.mxu0
        %v3440 = vadd.f32 0.0, %v3439
        %v3441 = vpop.f32.mrf.mxu0
        %3442 = vmatprep.mubr.bf16.mxu0 0
        %3443 = vmatmul.mubr.bf16.gmra.mxu0 %v1634
        %v3444 = vpop.f32.mrf.mxu0
        %v3445 = vadd.f32 0.0, %v3444
        %v3446 = vpop.f32.mrf.mxu0
        %v3447 = vpop.f32.mrf.mxu0
        %v3448 = vadd.f32 0.0, %v3447
        %v3449 = vpop.f32.mrf.mxu0
        %3450 = vmatprep.mubr.bf16.mxu0 0
        %3451 = vmatmul.mubr.bf16.gmra.mxu0 %v1635
        %v3452 = vpop.f32.mrf.mxu0
        %v3453 = vadd.f32 0.0, %v3452
        %v3454 = vpop.f32.mrf.mxu0
        %v3455 = vpop.f32.mrf.mxu0
        %v3456 = vadd.f32 0.0, %v3455
        %v3457 = vpop.f32.mrf.mxu0
        %3458 = vmatprep.mubr.bf16.mxu0 0
        %3459 = vmatmul.mubr.bf16.gmra.mxu0 %v1636
        %v3460 = vpop.f32.mrf.mxu0
        %v3461 = vadd.f32 0.0, %v3460
        %v3462 = vpop.f32.mrf.mxu0
        %v3463 = vpop.f32.mrf.mxu0
        %v3464 = vadd.f32 0.0, %v3463
        %v3465 = vpop.f32.mrf.mxu0
        %3466 = vmatprep.mubr.bf16.mxu0 0
        %3467 = vmatmul.mubr.bf16.gmra.mxu0 %v1637
        %v3468 = vpop.f32.mrf.mxu0
        %v3469 = vadd.f32 0.0, %v3468
        %v3470 = vpop.f32.mrf.mxu0
        %v3471 = vpop.f32.mrf.mxu0
        %v3472 = vadd.f32 0.0, %v3471
        %v3473 = vpop.f32.mrf.mxu0
        %3474 = vmatprep.mubr.bf16.mxu0 0
        %3475 = vmatmul.mubr.bf16.gmra.mxu0 %v1638
        %v3476 = vpop.f32.mrf.mxu0
        %v3477 = vadd.f32 0.0, %v3476
        %v3478 = vpop.f32.mrf.mxu0
        %v3479 = vpop.f32.mrf.mxu0
        %v3480 = vadd.f32 0.0, %v3479
        %v3481 = vpop.f32.mrf.mxu0
        %3482 = vmatprep.mubr.bf16.mxu0 0
        %3483 = vmatmul.mubr.bf16.gmra.mxu0 %v1639
        %v3484 = vpop.f32.mrf.mxu0
        %v3485 = vadd.f32 0.0, %v3484
        %v3486 = vpop.f32.mrf.mxu0
        %v3487 = vpop.f32.mrf.mxu0
        %v3488 = vadd.f32 0.0, %v3487
        %v3489 = vpop.f32.mrf.mxu0
        %3490 = vmatprep.mubr.bf16.mxu0 0
        %3491 = vmatmul.mubr.bf16.gmra.mxu0 %v1640
        %v3492 = vpop.f32.mrf.mxu0
        %v3493 = vadd.f32 0.0, %v3492
        %v3494 = vpop.f32.mrf.mxu0
        %v3495 = vpop.f32.mrf.mxu0
        %v3496 = vadd.f32 0.0, %v3495
        %v3497 = vpop.f32.mrf.mxu0
        %3498 = vmatprep.mubr.bf16.mxu0 0
        %3499 = vmatmul.mubr.bf16.gmra.mxu0 %v1641
        %v3500 = vpop.f32.mrf.mxu0
        %v3501 = vadd.f32 0.0, %v3500
        %v3502 = vpop.f32.mrf.mxu0
        %v3503 = vpop.f32.mrf.mxu0
        %v3504 = vadd.f32 0.0, %v3503
        %v3505 = vpop.f32.mrf.mxu0
        %3506 = vdwg.mxu0
        %v3507 = vsub.f32 %v3381, %v3193
        %v3508 = vsub.f32 %v3384, %v3194
        %v3509 = vsub.f32 %v3389, %v3195
        %v3510 = vsub.f32 %v3392, %v3196
        %v3511 = vsub.f32 %v3397, %v3197
        %v3512 = vsub.f32 %v3400, %v3198
        %v3513 = vsub.f32 %v3405, %v3199
        %v3514 = vsub.f32 %v3408, %v3200
        %v3515 = vsub.f32 %v3413, %v3201
        %v3516 = vsub.f32 %v3416, %v3202
        %v3517 = vsub.f32 %v3421, %v3203
        %v3518 = vsub.f32 %v3424, %v3204
        %v3519 = vsub.f32 %v3429, %v3205
        %v3520 = vsub.f32 %v3432, %v3206
        %v3521 = vsub.f32 %v3437, %v3207
        %v3522 = vsub.f32 %v3440, %v3208
        %v3523 = vsub.f32 %v3445, %v3209
        %v3524 = vsub.f32 %v3448, %v3210
        %v3525 = vsub.f32 %v3453, %v3211
        %v3526 = vsub.f32 %v3456, %v3212
        %v3527 = vsub.f32 %v3461, %v3213
        %v3528 = vsub.f32 %v3464, %v3214
        %v3529 = vsub.f32 %v3469, %v3215
        %v3530 = vsub.f32 %v3472, %v3216
        %v3531 = vsub.f32 %v3477, %v3217
        %v3532 = vsub.f32 %v3480, %v3218
        %v3533 = vsub.f32 %v3485, %v3219
        %v3534 = vsub.f32 %v3488, %v3220
        %v3535 = vsub.f32 %v3493, %v3221
        %v3536 = vsub.f32 %v3496, %v3222
        %v3537 = vsub.f32 %v3501, %v3223
        %v3538 = vsub.f32 %v3504, %v3224
        %v3539 = vpack.c.bf16 %v3508, %v3507
        %v3540 = vpack.c.bf16 %v3510, %v3509
        %v3541 = vpack.c.bf16 %v3512, %v3511
        %v3542 = vpack.c.bf16 %v3514, %v3513
        %v3543 = vpack.c.bf16 %v3516, %v3515
        %v3544 = vpack.c.bf16 %v3518, %v3517
        %v3545 = vpack.c.bf16 %v3520, %v3519
        %v3546 = vpack.c.bf16 %v3522, %v3521
        %v3547 = vpack.c.bf16 %v3524, %v3523
        %v3548 = vpack.c.bf16 %v3526, %v3525
        %v3549 = vpack.c.bf16 %v3528, %v3527
        %v3550 = vpack.c.bf16 %v3530, %v3529
        %v3551 = vpack.c.bf16 %v3532, %v3531
        %v3552 = vpack.c.bf16 %v3534, %v3533
        %v3553 = vpack.c.bf16 %v3536, %v3535
        %v3554 = vpack.c.bf16 %v3538, %v3537
        %3555 = vmatprep.subr.bf16.mxu0 0
        %3556 = vmatpush1.bf16.msra.mxu0 %v1922
        %3557 = vmatprep.subr.bf16.mxu0 0
        %3558 = vmatpush1.bf16.msra.mxu0 %v1921
        %3559 = vmatprep.subr.bf16.mxu0 0
        %3560 = vmatpush1.bf16.msra.mxu0 %v1920
        %3561 = vmatprep.subr.bf16.mxu0 0
        %3562 = vmatpush1.bf16.msra.mxu0 %v1919
        %3563 = vmatprep.subr.bf16.mxu0 0
        %3564 = vmatpush1.bf16.msra.mxu0 %v1918
        %3565 = vmatprep.subr.bf16.mxu0 0
        %3566 = vmatpush1.bf16.msra.mxu0 %v1917
        %3567 = vmatprep.subr.bf16.mxu0 0
        %3568 = vmatpush1.bf16.msra.mxu0 %v1916
        %3569 = vmatprep.subr.bf16.mxu0 0
        %3570 = vmatpush1.bf16.msra.mxu0 %v1915
        %3571 = vmatprep.subr.bf16.mxu0 0
        %3572 = vmatpush2.bf16.msra.mxu0 0
        %3573 = vmatprep.subr.bf16.mxu0 0
        %3574 = vmatpush2.bf16.msra.mxu0 0
        %3575 = vmatprep.subr.bf16.mxu0 0
        %3576 = vmatpush2.bf16.msra.mxu0 0
        %3577 = vmatprep.subr.bf16.mxu0 0
        %3578 = vmatpush2.bf16.msra.mxu0 0
        %3579 = vmatprep.subr.bf16.mxu0 0
        %3580 = vmatpush2.bf16.msra.mxu0 0
        %3581 = vmatprep.subr.bf16.mxu0 0
        %3582 = vmatpush2.bf16.msra.mxu0 0
        %3583 = vmatprep.subr.bf16.mxu0 0
        %3584 = vmatpush2.bf16.msra.mxu0 0
        %3585 = vmatprep.subr.bf16.mxu0 0
        %3586 = vmatpush2.bf16.msra.mxu0 0
        %3587 = vmatprep.mubr.bf16.mxu0 0
        %3588 = vmatmul.mubr.bf16.gmra.mxu0 %v3539
        %v3589 = vpop.f32.mrf.mxu0
        %v3590 = vadd.f32 %v619, %v3589
        %v3591 = vpop.f32.mrf.mxu0
        %v3592 = vpop.f32.mrf.mxu0
        %v3593 = vadd.f32 %v619, %v3592
        %v3594 = vpop.f32.mrf.mxu0
        %3595 = vmatprep.mubr.bf16.mxu0 0
        %3596 = vmatmul.mubr.bf16.gmra.mxu0 %v3540
        %v3597 = vpop.f32.mrf.mxu0
        %v3598 = vadd.f32 %v619, %v3597
        %v3599 = vpop.f32.mrf.mxu0
        %v3600 = vpop.f32.mrf.mxu0
        %v3601 = vadd.f32 %v619, %v3600
        %v3602 = vpop.f32.mrf.mxu0
        %3603 = vmatprep.mubr.bf16.mxu0 0
        %3604 = vmatmul.mubr.bf16.gmra.mxu0 %v3541
        %v3605 = vpop.f32.mrf.mxu0
        %v3606 = vadd.f32 %v619, %v3605
        %v3607 = vpop.f32.mrf.mxu0
        %v3608 = vpop.f32.mrf.mxu0
        %v3609 = vadd.f32 %v619, %v3608
        %v3610 = vpop.f32.mrf.mxu0
        %3611 = vmatprep.mubr.bf16.mxu0 0
        %3612 = vmatmul.mubr.bf16.gmra.mxu0 %v3542
        %v3613 = vpop.f32.mrf.mxu0
        %v3614 = vadd.f32 %v619, %v3613
        %v3615 = vpop.f32.mrf.mxu0
        %v3616 = vpop.f32.mrf.mxu0
        %v3617 = vadd.f32 %v619, %v3616
        %v3618 = vpop.f32.mrf.mxu0
        %3619 = vmatprep.mubr.bf16.mxu0 0
        %3620 = vmatmul.mubr.bf16.gmra.mxu0 %v3543
        %v3621 = vpop.f32.mrf.mxu0
        %v3622 = vadd.f32 %v619, %v3621
        %v3623 = vpop.f32.mrf.mxu0
        %v3624 = vpop.f32.mrf.mxu0
        %v3625 = vadd.f32 %v619, %v3624
        %v3626 = vpop.f32.mrf.mxu0
        %3627 = vmatprep.mubr.bf16.mxu0 0
        %3628 = vmatmul.mubr.bf16.gmra.mxu0 %v3544
        %v3629 = vpop.f32.mrf.mxu0
        %v3630 = vadd.f32 %v619, %v3629
        %v3631 = vpop.f32.mrf.mxu0
        %v3632 = vpop.f32.mrf.mxu0
        %v3633 = vadd.f32 %v619, %v3632
        %v3634 = vpop.f32.mrf.mxu0
        %3635 = vmatprep.mubr.bf16.mxu0 0
        %3636 = vmatmul.mubr.bf16.gmra.mxu0 %v3545
        %v3637 = vpop.f32.mrf.mxu0
        %v3638 = vadd.f32 %v619, %v3637
        %v3639 = vpop.f32.mrf.mxu0
        %v3640 = vpop.f32.mrf.mxu0
        %v3641 = vadd.f32 %v619, %v3640
        %v3642 = vpop.f32.mrf.mxu0
        %3643 = vmatprep.mubr.bf16.mxu0 0
        %3644 = vmatmul.mubr.bf16.gmra.mxu0 %v3546
        %v3645 = vpop.f32.mrf.mxu0
        %v3646 = vadd.f32 %v619, %v3645
        %v3647 = vpop.f32.mrf.mxu0
        %v3648 = vpop.f32.mrf.mxu0
        %v3649 = vadd.f32 %v619, %v3648
        %v3650 = vpop.f32.mrf.mxu0
        %3651 = vmatprep.mubr.bf16.mxu0 0
        %3652 = vmatmul.mubr.bf16.gmra.mxu0 %v3547
        %v3653 = vpop.f32.mrf.mxu0
        %v3654 = vadd.f32 %v619, %v3653
        %v3655 = vpop.f32.mrf.mxu0
        %v3656 = vpop.f32.mrf.mxu0
        %v3657 = vadd.f32 %v619, %v3656
        %v3658 = vpop.f32.mrf.mxu0
        %3659 = vmatprep.mubr.bf16.mxu0 0
        %3660 = vmatmul.mubr.bf16.gmra.mxu0 %v3548
        %v3661 = vpop.f32.mrf.mxu0
        %v3662 = vadd.f32 %v619, %v3661
        %v3663 = vpop.f32.mrf.mxu0
        %v3664 = vpop.f32.mrf.mxu0
        %v3665 = vadd.f32 %v619, %v3664
        %v3666 = vpop.f32.mrf.mxu0
        %3667 = vmatprep.mubr.bf16.mxu0 0
        %3668 = vmatmul.mubr.bf16.gmra.mxu0 %v3549
        %v3669 = vpop.f32.mrf.mxu0
        %v3670 = vadd.f32 %v619, %v3669
        %v3671 = vpop.f32.mrf.mxu0
        %v3672 = vpop.f32.mrf.mxu0
        %v3673 = vadd.f32 %v619, %v3672
        %v3674 = vpop.f32.mrf.mxu0
        %3675 = vmatprep.mubr.bf16.mxu0 0
        %3676 = vmatmul.mubr.bf16.gmra.mxu0 %v3550
        %v3677 = vpop.f32.mrf.mxu0
        %v3678 = vadd.f32 %v619, %v3677
        %v3679 = vpop.f32.mrf.mxu0
        %v3680 = vpop.f32.mrf.mxu0
        %v3681 = vadd.f32 %v619, %v3680
        %v3682 = vpop.f32.mrf.mxu0
        %3683 = vmatprep.mubr.bf16.mxu0 0
        %3684 = vmatmul.mubr.bf16.gmra.mxu0 %v3551
        %v3685 = vpop.f32.mrf.mxu0
        %v3686 = vadd.f32 %v619, %v3685
        %v3687 = vpop.f32.mrf.mxu0
        %v3688 = vpop.f32.mrf.mxu0
        %v3689 = vadd.f32 %v619, %v3688
        %v3690 = vpop.f32.mrf.mxu0
        %3691 = vmatprep.mubr.bf16.mxu0 0
        %3692 = vmatmul.mubr.bf16.gmra.mxu0 %v3552
        %v3693 = vpop.f32.mrf.mxu0
        %v3694 = vadd.f32 %v619, %v3693
        %v3695 = vpop.f32.mrf.mxu0
        %v3696 = vpop.f32.mrf.mxu0
        %v3697 = vadd.f32 %v619, %v3696
        %v3698 = vpop.f32.mrf.mxu0
        %3699 = vmatprep.mubr.bf16.mxu0 0
        %3700 = vmatmul.mubr.bf16.gmra.mxu0 %v3553
        %v3701 = vpop.f32.mrf.mxu0
        %v3702 = vadd.f32 %v619, %v3701
        %v3703 = vpop.f32.mrf.mxu0
        %v3704 = vpop.f32.mrf.mxu0
        %v3705 = vadd.f32 %v619, %v3704
        %v3706 = vpop.f32.mrf.mxu0
        %3707 = vmatprep.mubr.bf16.mxu0 0
        %3708 = vmatmul.mubr.bf16.gmra.mxu0 %v3554
        %v3709 = vpop.f32.mrf.mxu0
        %v3710 = vadd.f32 %v619, %v3709
        %v3711 = vpop.f32.mrf.mxu0
        %v3712 = vpop.f32.mrf.mxu0
        %v3713 = vadd.f32 %v619, %v3712
        %v3714 = vpop.f32.mrf.mxu0
        %3715 = vdwg.mxu0
        %v3716 = vmax.f32 %v3590, 0.0
        %v3717 = vmax.f32 %v3593, 0.0
        %v3718 = vmax.f32 %v3598, 0.0
        %v3719 = vmax.f32 %v3601, 0.0
        %v3720 = vmax.f32 %v3606, 0.0
        %v3721 = vmax.f32 %v3609, 0.0
        %v3722 = vmax.f32 %v3614, 0.0
        %v3723 = vmax.f32 %v3617, 0.0
        %v3724 = vmax.f32 %v3622, 0.0
        %v3725 = vmax.f32 %v3625, 0.0
        %v3726 = vmax.f32 %v3630, 0.0
        %v3727 = vmax.f32 %v3633, 0.0
        %v3728 = vmax.f32 %v3638, 0.0
        %v3729 = vmax.f32 %v3641, 0.0
        %v3730 = vmax.f32 %v3646, 0.0
        %v3731 = vmax.f32 %v3649, 0.0
        %v3732 = vmax.f32 %v3654, 0.0
        %v3733 = vmax.f32 %v3657, 0.0
        %v3734 = vmax.f32 %v3662, 0.0
        %v3735 = vmax.f32 %v3665, 0.0
        %v3736 = vmax.f32 %v3670, 0.0
        %v3737 = vmax.f32 %v3673, 0.0
        %v3738 = vmax.f32 %v3678, 0.0
        %v3739 = vmax.f32 %v3681, 0.0
        %v3740 = vmax.f32 %v3686, 0.0
        %v3741 = vmax.f32 %v3689, 0.0
        %v3742 = vmax.f32 %v3694, 0.0
        %v3743 = vmax.f32 %v3697, 0.0
        %v3744 = vmax.f32 %v3702, 0.0
        %v3745 = vmax.f32 %v3705, 0.0
        %v3746 = vmax.f32 %v3710, 0.0
        %v3747 = vmax.f32 %v3713, 0.0
        %v3748 = vpack.c.bf16 %v3717, %v3716
        %v3749 = vpack.c.bf16 %v3719, %v3718
        %v3750 = vpack.c.bf16 %v3721, %v3720
        %v3751 = vpack.c.bf16 %v3723, %v3722
        %v3752 = vpack.c.bf16 %v3725, %v3724
        %v3753 = vpack.c.bf16 %v3727, %v3726
        %v3754 = vpack.c.bf16 %v3729, %v3728
        %v3755 = vpack.c.bf16 %v3731, %v3730
        %v3756 = vpack.c.bf16 %v3733, %v3732
        %v3757 = vpack.c.bf16 %v3735, %v3734
        %v3758 = vpack.c.bf16 %v3737, %v3736
        %v3759 = vpack.c.bf16 %v3739, %v3738
        %v3760 = vpack.c.bf16 %v3741, %v3740
        %v3761 = vpack.c.bf16 %v3743, %v3742
        %v3762 = vpack.c.bf16 %v3745, %v3744
        %v3763 = vpack.c.bf16 %v3747, %v3746
        %3764 = vmatprep.subr.bf16.mxu0 0
        %3765 = vmatpush1.bf16.msra.mxu0 %v2195
        %3766 = vmatprep.subr.bf16.mxu0 0
        %3767 = vmatpush1.bf16.msra.mxu0 %v2194
        %3768 = vmatprep.subr.bf16.mxu0 0
        %3769 = vmatpush1.bf16.msra.mxu0 %v2193
        %3770 = vmatprep.subr.bf16.mxu0 0
        %3771 = vmatpush1.bf16.msra.mxu0 %v2192
        %3772 = vmatprep.subr.bf16.mxu0 0
        %3773 = vmatpush1.bf16.msra.mxu0 %v2191
        %3774 = vmatprep.subr.bf16.mxu0 0
        %3775 = vmatpush1.bf16.msra.mxu0 %v2190
        %3776 = vmatprep.subr.bf16.mxu0 0
        %3777 = vmatpush1.bf16.msra.mxu0 %v2189
        %3778 = vmatprep.subr.bf16.mxu0 0
        %3779 = vmatpush1.bf16.msra.mxu0 %v2188
        %3780 = vmatprep.subr.bf16.mxu0 0
        %3781 = vmatpush2.bf16.msra.mxu0 0
        %3782 = vmatprep.subr.bf16.mxu0 0
        %3783 = vmatpush2.bf16.msra.mxu0 0
        %3784 = vmatprep.subr.bf16.mxu0 0
        %3785 = vmatpush2.bf16.msra.mxu0 0
        %3786 = vmatprep.subr.bf16.mxu0 0
        %3787 = vmatpush2.bf16.msra.mxu0 0
        %3788 = vmatprep.subr.bf16.mxu0 0
        %3789 = vmatpush2.bf16.msra.mxu0 0
        %3790 = vmatprep.subr.bf16.mxu0 0
        %3791 = vmatpush2.bf16.msra.mxu0 0
        %3792 = vmatprep.subr.bf16.mxu0 0
        %3793 = vmatpush2.bf16.msra.mxu0 0
        %3794 = vmatprep.subr.bf16.mxu0 0
        %3795 = vmatpush2.bf16.msra.mxu0 0
        %3796 = vmatprep.mubr.bf16.mxu0 0
        %3797 = vmatmul.mubr.bf16.gmra.mxu0 %v3748
        %v3798 = vpop.f32.mrf.mxu0
        %v3799 = vadd.f32 %v624, %v3798
        %v3800 = vpop.f32.mrf.mxu0
        %v3801 = vpop.f32.mrf.mxu0
        %v3802 = vadd.f32 %v624, %v3801
        %v3803 = vpop.f32.mrf.mxu0
        %3804 = vmatprep.mubr.bf16.mxu0 0
        %3805 = vmatmul.mubr.bf16.gmra.mxu0 %v3749
        %v3806 = vpop.f32.mrf.mxu0
        %v3807 = vadd.f32 %v624, %v3806
        %v3808 = vpop.f32.mrf.mxu0
        %v3809 = vpop.f32.mrf.mxu0
        %v3810 = vadd.f32 %v624, %v3809
        %v3811 = vpop.f32.mrf.mxu0
        %3812 = vmatprep.mubr.bf16.mxu0 0
        %3813 = vmatmul.mubr.bf16.gmra.mxu0 %v3750
        %v3814 = vpop.f32.mrf.mxu0
        %v3815 = vadd.f32 %v624, %v3814
        %v3816 = vpop.f32.mrf.mxu0
        %v3817 = vpop.f32.mrf.mxu0
        %v3818 = vadd.f32 %v624, %v3817
        %v3819 = vpop.f32.mrf.mxu0
        %3820 = vmatprep.mubr.bf16.mxu0 0
        %3821 = vmatmul.mubr.bf16.gmra.mxu0 %v3751
        %v3822 = vpop.f32.mrf.mxu0
        %v3823 = vadd.f32 %v624, %v3822
        %v3824 = vpop.f32.mrf.mxu0
        %v3825 = vpop.f32.mrf.mxu0
        %v3826 = vadd.f32 %v624, %v3825
        %v3827 = vpop.f32.mrf.mxu0
        %3828 = vmatprep.mubr.bf16.mxu0 0
        %3829 = vmatmul.mubr.bf16.gmra.mxu0 %v3752
        %v3830 = vpop.f32.mrf.mxu0
        %v3831 = vadd.f32 %v624, %v3830
        %v3832 = vpop.f32.mrf.mxu0
        %v3833 = vpop.f32.mrf.mxu0
        %v3834 = vadd.f32 %v624, %v3833
        %v3835 = vpop.f32.mrf.mxu0
        %3836 = vmatprep.mubr.bf16.mxu0 0
        %3837 = vmatmul.mubr.bf16.gmra.mxu0 %v3753
        %v3838 = vpop.f32.mrf.mxu0
        %v3839 = vadd.f32 %v624, %v3838
        %v3840 = vpop.f32.mrf.mxu0
        %v3841 = vpop.f32.mrf.mxu0
        %v3842 = vadd.f32 %v624, %v3841
        %v3843 = vpop.f32.mrf.mxu0
        %3844 = vmatprep.mubr.bf16.mxu0 0
        %3845 = vmatmul.mubr.bf16.gmra.mxu0 %v3754
        %v3846 = vpop.f32.mrf.mxu0
        %v3847 = vadd.f32 %v624, %v3846
        %v3848 = vpop.f32.mrf.mxu0
        %v3849 = vpop.f32.mrf.mxu0
        %v3850 = vadd.f32 %v624, %v3849
        %v3851 = vpop.f32.mrf.mxu0
        %3852 = vmatprep.mubr.bf16.mxu0 0
        %3853 = vmatmul.mubr.bf16.gmra.mxu0 %v3755
        %v3854 = vpop.f32.mrf.mxu0
        %v3855 = vadd.f32 %v624, %v3854
        %v3856 = vpop.f32.mrf.mxu0
        %v3857 = vpop.f32.mrf.mxu0
        %v3858 = vadd.f32 %v624, %v3857
        %v3859 = vpop.f32.mrf.mxu0
        %3860 = vmatprep.mubr.bf16.mxu0 0
        %3861 = vmatmul.mubr.bf16.gmra.mxu0 %v3756
        %v3862 = vpop.f32.mrf.mxu0
        %v3863 = vadd.f32 %v624, %v3862
        %v3864 = vpop.f32.mrf.mxu0
        %v3865 = vpop.f32.mrf.mxu0
        %v3866 = vadd.f32 %v624, %v3865
        %v3867 = vpop.f32.mrf.mxu0
        %3868 = vmatprep.mubr.bf16.mxu0 0
        %3869 = vmatmul.mubr.bf16.gmra.mxu0 %v3757
        %v3870 = vpop.f32.mrf.mxu0
        %v3871 = vadd.f32 %v624, %v3870
        %v3872 = vpop.f32.mrf.mxu0
        %v3873 = vpop.f32.mrf.mxu0
        %v3874 = vadd.f32 %v624, %v3873
        %v3875 = vpop.f32.mrf.mxu0
        %3876 = vmatprep.mubr.bf16.mxu0 0
        %3877 = vmatmul.mubr.bf16.gmra.mxu0 %v3758
        %v3878 = vpop.f32.mrf.mxu0
        %v3879 = vadd.f32 %v624, %v3878
        %v3880 = vpop.f32.mrf.mxu0
        %v3881 = vpop.f32.mrf.mxu0
        %v3882 = vadd.f32 %v624, %v3881
        %v3883 = vpop.f32.mrf.mxu0
        %3884 = vmatprep.mubr.bf16.mxu0 0
        %3885 = vmatmul.mubr.bf16.gmra.mxu0 %v3759
        %v3886 = vpop.f32.mrf.mxu0
        %v3887 = vadd.f32 %v624, %v3886
        %v3888 = vpop.f32.mrf.mxu0
        %v3889 = vpop.f32.mrf.mxu0
        %v3890 = vadd.f32 %v624, %v3889
        %v3891 = vpop.f32.mrf.mxu0
        %3892 = vmatprep.mubr.bf16.mxu0 0
        %3893 = vmatmul.mubr.bf16.gmra.mxu0 %v3760
        %v3894 = vpop.f32.mrf.mxu0
        %v3895 = vadd.f32 %v624, %v3894
        %v3896 = vpop.f32.mrf.mxu0
        %v3897 = vpop.f32.mrf.mxu0
        %v3898 = vadd.f32 %v624, %v3897
        %v3899 = vpop.f32.mrf.mxu0
        %3900 = vmatprep.mubr.bf16.mxu0 0
        %3901 = vmatmul.mubr.bf16.gmra.mxu0 %v3761
        %v3902 = vpop.f32.mrf.mxu0
        %v3903 = vadd.f32 %v624, %v3902
        %v3904 = vpop.f32.mrf.mxu0
        %v3905 = vpop.f32.mrf.mxu0
        %v3906 = vadd.f32 %v624, %v3905
        %v3907 = vpop.f32.mrf.mxu0
        %3908 = vmatprep.mubr.bf16.mxu0 0
        %3909 = vmatmul.mubr.bf16.gmra.mxu0 %v3762
        %v3910 = vpop.f32.mrf.mxu0
        %v3911 = vadd.f32 %v624, %v3910
        %v3912 = vpop.f32.mrf.mxu0
        %v3913 = vpop.f32.mrf.mxu0
        %v3914 = vadd.f32 %v624, %v3913
        %v3915 = vpop.f32.mrf.mxu0
        %3916 = vmatprep.mubr.bf16.mxu0 0
        %3917 = vmatmul.mubr.bf16.gmra.mxu0 %v3763
        %v3918 = vpop.f32.mrf.mxu0
        %v3919 = vadd.f32 %v624, %v3918
        %v3920 = vpop.f32.mrf.mxu0
        %v3921 = vpop.f32.mrf.mxu0
        %v3922 = vadd.f32 %v624, %v3921
        %v3923 = vpop.f32.mrf.mxu0
        %3924 = vdwg.mxu0
        %v3925 = vadd.f32 %v2365, %v3799
        %v3926 = vadd.f32 %v2366, %v3802
        %v3927 = vadd.f32 %v2367, %v3807
        %v3928 = vadd.f32 %v2368, %v3810
        %v3929 = vadd.f32 %v2369, %v3815
        %v3930 = vadd.f32 %v2370, %v3818
        %v3931 = vadd.f32 %v2371, %v3823
        %v3932 = vadd.f32 %v2372, %v3826
        %v3933 = vadd.f32 %v2373, %v3831
        %v3934 = vadd.f32 %v2374, %v3834
        %v3935 = vadd.f32 %v2375, %v3839
        %v3936 = vadd.f32 %v2376, %v3842
        %v3937 = vadd.f32 %v2377, %v3847
        %v3938 = vadd.f32 %v2378, %v3850
        %v3939 = vadd.f32 %v2379, %v3855
        %v3940 = vadd.f32 %v2380, %v3858
        %v3941 = vadd.f32 %v2381, %v3863
        %v3942 = vadd.f32 %v2382, %v3866
        %v3943 = vadd.f32 %v2383, %v3871
        %v3944 = vadd.f32 %v2384, %v3874
        %v3945 = vadd.f32 %v2385, %v3879
        %v3946 = vadd.f32 %v2386, %v3882
        %v3947 = vadd.f32 %v2387, %v3887
        %v3948 = vadd.f32 %v2388, %v3890
        %v3949 = vadd.f32 %v2389, %v3895
        %v3950 = vadd.f32 %v2390, %v3898
        %v3951 = vadd.f32 %v2391, %v3903
        %v3952 = vadd.f32 %v2392, %v3906
        %v3953 = vadd.f32 %v2393, %v3911
        %v3954 = vadd.f32 %v2394, %v3914
        %v3955 = vadd.f32 %v2395, %v3919
        %v3956 = vadd.f32 %v2396, %v3922
        %v3957 = vmax.f32 %v3925, 0.0
        %v3958 = vmax.f32 %v3926, 0.0
        %v3959 = vmax.f32 %v3927, 0.0
        %v3960 = vmax.f32 %v3928, 0.0
        %v3961 = vmax.f32 %v3929, 0.0
        %v3962 = vmax.f32 %v3930, 0.0
        %v3963 = vmax.f32 %v3931, 0.0
        %v3964 = vmax.f32 %v3932, 0.0
        %v3965 = vmax.f32 %v3933, 0.0
        %v3966 = vmax.f32 %v3934, 0.0
        %v3967 = vmax.f32 %v3935, 0.0
        %v3968 = vmax.f32 %v3936, 0.0
        %v3969 = vmax.f32 %v3937, 0.0
        %v3970 = vmax.f32 %v3938, 0.0
        %v3971 = vmax.f32 %v3939, 0.0
        %v3972 = vmax.f32 %v3940, 0.0
        %v3973 = vmax.f32 %v3941, 0.0
        %v3974 = vmax.f32 %v3942, 0.0
        %v3975 = vmax.f32 %v3943, 0.0
        %v3976 = vmax.f32 %v3944, 0.0
        %v3977 = vmax.f32 %v3945, 0.0
        %v3978 = vmax.f32 %v3946, 0.0
        %v3979 = vmax.f32 %v3947, 0.0
        %v3980 = vmax.f32 %v3948, 0.0
        %v3981 = vmax.f32 %v3949, 0.0
        %v3982 = vmax.f32 %v3950, 0.0
        %v3983 = vmax.f32 %v3951, 0.0
        %v3984 = vmax.f32 %v3952, 0.0
        %v3985 = vmax.f32 %v3953, 0.0
        %v3986 = vmax.f32 %v3954, 0.0
        %v3987 = vmax.f32 %v3955, 0.0
        %v3988 = vmax.f32 %v3956, 0.0
        %v3989 = vld [vmem:[%s596] sm:$0xff]
        %v3990 = vld [vmem:[%s596 + $0x8] sm:$0xff]
        %v3991 = vld [vmem:[%s596 + $0x10] sm:$0xff]
        %v3992 = vld [vmem:[%s596 + $0x18] sm:$0xff]
        %v3993 = vld [vmem:[%s596 + $0x20] sm:$0xff]
        %v3994 = vld [vmem:[%s596 + $0x28] sm:$0xff]
        %v3995 = vld [vmem:[%s596 + $0x30] sm:$0xff]
        %v3996 = vld [vmem:[%s596 + $0x38] sm:$0xff]
        %v3997 = vld [vmem:[%s596 + $0x40] sm:$0xff]
        %v3998 = vld [vmem:[%s596 + $0x48] sm:$0xff]
        %v3999 = vld [vmem:[%s596 + $0x50] sm:$0xff]
        %v4000 = vld [vmem:[%s596 + $0x58] sm:$0xff]
        %v4001 = vld [vmem:[%s596 + $0x60] sm:$0xff]
        %v4002 = vld [vmem:[%s596 + $0x68] sm:$0xff]
        %v4003 = vld [vmem:[%s596 + $0x70] sm:$0xff]
        %v4004 = vld [vmem:[%s596 + $0x78] sm:$0xff]
        %v4005 = vpack.c.bf16 %v3958, %v3957
        %v4006 = vpack.c.bf16 %v3960, %v3959
        %v4007 = vpack.c.bf16 %v3962, %v3961
        %v4008 = vpack.c.bf16 %v3964, %v3963
        %v4009 = vpack.c.bf16 %v3966, %v3965
        %v4010 = vpack.c.bf16 %v3968, %v3967
        %v4011 = vpack.c.bf16 %v3970, %v3969
        %v4012 = vpack.c.bf16 %v3972, %v3971
        %v4013 = vpack.c.bf16 %v3974, %v3973
        %v4014 = vpack.c.bf16 %v3976, %v3975
        %v4015 = vpack.c.bf16 %v3978, %v3977
        %v4016 = vpack.c.bf16 %v3980, %v3979
        %v4017 = vpack.c.bf16 %v3982, %v3981
        %v4018 = vpack.c.bf16 %v3984, %v3983
        %v4019 = vpack.c.bf16 %v3986, %v3985
        %v4020 = vpack.c.bf16 %v3988, %v3987
        %v4037 = vunpack.c.l.b16 %v3989
        %v4038 = vunpack.c.h.b16 %v3989
        %v4039 = vunpack.c.l.b16 %v3990
        %v4040 = vunpack.c.h.b16 %v3990
        %v4041 = vunpack.c.l.b16 %v3991
        %v4042 = vunpack.c.h.b16 %v3991
        %v4043 = vunpack.c.l.b16 %v3992
        %v4044 = vunpack.c.h.b16 %v3992
        %v4045 = vunpack.c.l.b16 %v3993
        %v4046 = vunpack.c.h.b16 %v3993
        %v4047 = vunpack.c.l.b16 %v3994
        %v4048 = vunpack.c.h.b16 %v3994
        %v4049 = vunpack.c.l.b16 %v3995
        %v4050 = vunpack.c.h.b16 %v3995
        %v4051 = vunpack.c.l.b16 %v3996
        %v4052 = vunpack.c.h.b16 %v3996
        %v4053 = vunpack.c.l.b16 %v3997
        %v4054 = vunpack.c.h.b16 %v3997
        %v4055 = vunpack.c.l.b16 %v3998
        %v4056 = vunpack.c.h.b16 %v3998
        %v4057 = vunpack.c.l.b16 %v3999
        %v4058 = vunpack.c.h.b16 %v3999
        %v4059 = vunpack.c.l.b16 %v4000
        %v4060 = vunpack.c.h.b16 %v4000
        %v4061 = vunpack.c.l.b16 %v4001
        %v4062 = vunpack.c.h.b16 %v4001
        %v4063 = vunpack.c.l.b16 %v4002
        %v4064 = vunpack.c.h.b16 %v4002
        %v4065 = vunpack.c.l.b16 %v4003
        %v4066 = vunpack.c.h.b16 %v4003
        %v4067 = vunpack.c.l.b16 %v4004
        %v4068 = vunpack.c.h.b16 %v4004
        %v4069 = vpack.c.b16 %v4039, %v4037
        %v4070 = vpack.c.b16 %v4040, %v4038
        %v4071 = vpack.c.b16 %v4043, %v4041
        %v4072 = vpack.c.b16 %v4044, %v4042
        %v4073 = vpack.c.b16 %v4047, %v4045
        %v4074 = vpack.c.b16 %v4048, %v4046
        %v4075 = vpack.c.b16 %v4051, %v4049
        %v4076 = vpack.c.b16 %v4052, %v4050
        %v4077 = vpack.c.b16 %v4055, %v4053
        %v4078 = vpack.c.b16 %v4056, %v4054
        %v4079 = vpack.c.b16 %v4059, %v4057
        %v4080 = vpack.c.b16 %v4060, %v4058
        %v4081 = vpack.c.b16 %v4063, %v4061
        %v4082 = vpack.c.b16 %v4064, %v4062
        %v4083 = vpack.c.b16 %v4067, %v4065
        %v4084 = vpack.c.b16 %v4068, %v4066
        %4101 = vmatprep.subr.bf16.mxu0 0
        %4102 = vmatpush1.bf16.msra.mxu0 %v4012
        %4103 = vmatprep.subr.bf16.mxu0 0
        %4104 = vmatpush1.bf16.msra.mxu0 %v4011
        %4105 = vmatprep.subr.bf16.mxu0 0
        %4106 = vmatpush1.bf16.msra.mxu0 %v4010
        %4107 = vmatprep.subr.bf16.mxu0 0
        %4108 = vmatpush1.bf16.msra.mxu0 %v4009
        %4109 = vmatprep.subr.bf16.mxu0 0
        %4110 = vmatpush1.bf16.msra.mxu0 %v4008
        %4111 = vmatprep.subr.bf16.mxu0 0
        %4112 = vmatpush1.bf16.msra.mxu0 %v4007
        %4113 = vmatprep.subr.bf16.mxu0 0
        %4114 = vmatpush1.bf16.msra.mxu0 %v4006
        %4115 = vmatprep.subr.bf16.mxu0 0
        %4116 = vmatpush1.bf16.msra.mxu0 %v4005
        %4117 = vmatprep.subr.bf16.mxu0 0
        %4118 = vmatpush2.bf16.msra.mxu0 %v4020
        %4119 = vmatprep.subr.bf16.mxu0 0
        %4120 = vmatpush2.bf16.msra.mxu0 %v4019
        %4121 = vmatprep.subr.bf16.mxu0 0
        %4122 = vmatpush2.bf16.msra.mxu0 %v4018
        %4123 = vmatprep.subr.bf16.mxu0 0
        %4124 = vmatpush2.bf16.msra.mxu0 %v4017
        %4125 = vmatprep.subr.bf16.mxu0 0
        %4126 = vmatpush2.bf16.msra.mxu0 %v4016
        %4127 = vmatprep.subr.bf16.mxu0 0
        %4128 = vmatpush2.bf16.msra.mxu0 %v4015
        %4129 = vmatprep.subr.bf16.mxu0 0
        %4130 = vmatpush2.bf16.msra.mxu0 %v4014
        %4131 = vmatprep.subr.bf16.mxu0 0
        %4132 = vmatpush2.bf16.msra.mxu0 %v4013
        %4133 = vmatprep.mubr.bf16.mxu0 %v4070
        %4134 = vmatmul.mubr.bf16.gmra.mxu0 %v4069
        %v4135 = vpop.f32.mrf.mxu0
        %v4136 = vadd.f32 0.0, %v4135
        %v4137 = vpop.f32.mrf.mxu0
        %v4138 = vpop.f32.mrf.mxu0
        %v4139 = vadd.f32 0.0, %v4138
        %v4140 = vpop.f32.mrf.mxu0
        %4141 = vmatprep.mubr.bf16.mxu0 %v4072
        %4142 = vmatmul.mubr.bf16.gmra.mxu0 %v4071
        %v4143 = vpop.f32.mrf.mxu0
        %v4144 = vadd.f32 0.0, %v4143
        %v4145 = vpop.f32.mrf.mxu0
        %v4146 = vpop.f32.mrf.mxu0
        %v4147 = vadd.f32 0.0, %v4146
        %v4148 = vpop.f32.mrf.mxu0
        %4149 = vmatprep.mubr.bf16.mxu0 %v4074
        %4150 = vmatmul.mubr.bf16.gmra.mxu0 %v4073
        %v4151 = vpop.f32.mrf.mxu0
        %v4152 = vadd.f32 0.0, %v4151
        %v4153 = vpop.f32.mrf.mxu0
        %v4154 = vpop.f32.mrf.mxu0
        %v4155 = vadd.f32 0.0, %v4154
        %v4156 = vpop.f32.mrf.mxu0
        %4157 = vmatprep.mubr.bf16.mxu0 %v4076
        %4158 = vmatmul.mubr.bf16.gmra.mxu0 %v4075
        %v4159 = vpop.f32.mrf.mxu0
        %v4160 = vadd.f32 0.0, %v4159
        %v4161 = vpop.f32.mrf.mxu0
        %v4162 = vpop.f32.mrf.mxu0
        %v4163 = vadd.f32 0.0, %v4162
        %v4164 = vpop.f32.mrf.mxu0
        %4165 = vmatprep.mubr.bf16.mxu0 %v4078
        %4166 = vmatmul.mubr.bf16.gmra.mxu0 %v4077
        %v4167 = vpop.f32.mrf.mxu0
        %v4168 = vadd.f32 0.0, %v4167
        %v4169 = vpop.f32.mrf.mxu0
        %v4170 = vpop.f32.mrf.mxu0
        %v4171 = vadd.f32 0.0, %v4170
        %v4172 = vpop.f32.mrf.mxu0
        %4173 = vmatprep.mubr.bf16.mxu0 %v4080
        %4174 = vmatmul.mubr.bf16.gmra.mxu0 %v4079
        %v4175 = vpop.f32.mrf.mxu0
        %v4176 = vadd.f32 0.0, %v4175
        %v4177 = vpop.f32.mrf.mxu0
        %v4178 = vpop.f32.mrf.mxu0
        %v4179 = vadd.f32 0.0, %v4178
        %v4180 = vpop.f32.mrf.mxu0
        %4181 = vmatprep.mubr.bf16.mxu0 %v4082
        %4182 = vmatmul.mubr.bf16.gmra.mxu0 %v4081
        %v4183 = vpop.f32.mrf.mxu0
        %v4184 = vadd.f32 0.0, %v4183
        %v4185 = vpop.f32.mrf.mxu0
        %v4186 = vpop.f32.mrf.mxu0
        %v4187 = vadd.f32 0.0, %v4186
        %v4188 = vpop.f32.mrf.mxu0
        %4189 = vmatprep.mubr.bf16.mxu0 %v4084
        %4190 = vmatmul.mubr.bf16.gmra.mxu0 %v4083
        %v4191 = vpop.f32.mrf.mxu0
        %v4192 = vadd.f32 0.0, %v4191
        %v4193 = vpop.f32.mrf.mxu0
        %v4194 = vpop.f32.mrf.mxu0
        %v4195 = vadd.f32 0.0, %v4194
        %v4196 = vpop.f32.mrf.mxu0
        %4197 = vdwg.mxu0
        %v4198 = vpack.c.bf16 %v4139, %v4136
        %v4199 = vpack.c.bf16 %v4147, %v4144
        %v4200 = vpack.c.bf16 %v4155, %v4152
        %v4201 = vpack.c.bf16 %v4163, %v4160
        %v4202 = vpack.c.bf16 %v4171, %v4168
        %v4203 = vpack.c.bf16 %v4179, %v4176
        %v4204 = vpack.c.bf16 %v4187, %v4184
        %v4205 = vpack.c.bf16 %v4195, %v4192
        %v4206 = vld [vmem:[%s11] sm:$0xf]
        %v4207 = vld [vmem:[%s11 + $0x4] sm:$0xf]
        %v4208 = vld [vmem:[%s11 + $0x8] sm:$0xf]
        %v4209 = vld [vmem:[%s11 + $0xc] sm:$0xf]
        %v4210 = vld [vmem:[%s11 + $0x10] sm:$0xf]
        %v4211 = vld [vmem:[%s11 + $0x14] sm:$0xf]
        %v4212 = vld [vmem:[%s11 + $0x18] sm:$0xf]
        %v4213 = vld [vmem:[%s11 + $0x1c] sm:$0xf]
        %v4214 = vld [vmem:[%s11 + $0x20] sm:$0xf]
        %v4215 = vld [vmem:[%s11 + $0x24] sm:$0xf]
        %v4216 = vld [vmem:[%s11 + $0x28] sm:$0xf]
        %v4217 = vld [vmem:[%s11 + $0x2c] sm:$0xf]
        %v4218 = vld [vmem:[%s11 + $0x30] sm:$0xf]
        %v4219 = vld [vmem:[%s11 + $0x34] sm:$0xf]
        %v4220 = vld [vmem:[%s11 + $0x38] sm:$0xf]
        %v4221 = vld [vmem:[%s11 + $0x3c] sm:$0xf]
        %v4238 = vunpack.c.l.b16 %v4206
        %v4239 = vunpack.c.l.b16 %v4207
        %v4240 = vunpack.c.l.b16 %v4208
        %v4241 = vunpack.c.l.b16 %v4209
        %v4242 = vunpack.c.l.b16 %v4210
        %v4243 = vunpack.c.l.b16 %v4211
        %v4244 = vunpack.c.l.b16 %v4212
        %v4245 = vunpack.c.l.b16 %v4213
        %v4246 = vunpack.c.l.b16 %v4214
        %v4247 = vunpack.c.l.b16 %v4215
        %v4248 = vunpack.c.l.b16 %v4216
        %v4249 = vunpack.c.l.b16 %v4217
        %v4250 = vunpack.c.l.b16 %v4218
        %v4251 = vunpack.c.l.b16 %v4219
        %v4252 = vunpack.c.l.b16 %v4220
        %v4253 = vunpack.c.l.b16 %v4221
        %v4254 = vpack.c.b16 %v4239, %v4238
        %v4255 = vpack.c.b16 %v4241, %v4240
        %v4256 = vpack.c.b16 %v4243, %v4242
        %v4257 = vpack.c.b16 %v4245, %v4244
        %v4258 = vpack.c.b16 %v4247, %v4246
        %v4259 = vpack.c.b16 %v4249, %v4248
        %v4260 = vpack.c.b16 %v4251, %v4250
        %v4261 = vpack.c.b16 %v4253, %v4252
        %4270 = vmatprep.subr.bf16.mxu0 0
        %4271 = vmatpush1.bf16.msra.mxu0 %v4261
        %4272 = vmatprep.subr.bf16.mxu0 0
        %4273 = vmatpush1.bf16.msra.mxu0 %v4260
        %4274 = vmatprep.subr.bf16.mxu0 0
        %4275 = vmatpush1.bf16.msra.mxu0 %v4259
        %4276 = vmatprep.subr.bf16.mxu0 0
        %4277 = vmatpush1.bf16.msra.mxu0 %v4258
        %4278 = vmatprep.subr.bf16.mxu0 0
        %4279 = vmatpush1.bf16.msra.mxu0 %v4257
        %4280 = vmatprep.subr.bf16.mxu0 0
        %4281 = vmatpush1.bf16.msra.mxu0 %v4256
        %4282 = vmatprep.subr.bf16.mxu0 0
        %4283 = vmatpush1.bf16.msra.mxu0 %v4255
        %4284 = vmatprep.subr.bf16.mxu0 0
        %4285 = vmatpush1.bf16.msra.mxu0 %v4254
        %4286 = vmatprep.subr.bf16.mxu0 0
        %4287 = vmatpush2.bf16.msra.mxu0 0
        %4288 = vmatprep.subr.bf16.mxu0 0
        %4289 = vmatpush2.bf16.msra.mxu0 0
        %4290 = vmatprep.subr.bf16.mxu0 0
        %4291 = vmatpush2.bf16.msra.mxu0 0
        %4292 = vmatprep.subr.bf16.mxu0 0
        %4293 = vmatpush2.bf16.msra.mxu0 0
        %4294 = vmatprep.subr.bf16.mxu0 0
        %4295 = vmatpush2.bf16.msra.mxu0 0
        %4296 = vmatprep.subr.bf16.mxu0 0
        %4297 = vmatpush2.bf16.msra.mxu0 0
        %4298 = vmatprep.subr.bf16.mxu0 0
        %4299 = vmatpush2.bf16.msra.mxu0 0
        %4300 = vmatprep.subr.bf16.mxu0 0
        %4301 = vmatpush2.bf16.msra.mxu0 0
        %4302 = vmatprep.mubr.bf16.mxu0 0
        %4303 = vmatmul.mubr.bf16.gmra.mxu0 %v4198
        %v4304 = vpop.f32.mrf.mxu0
        %v4305 = vadd.f32 0.0, %v4304
        %v4306 = vpop.f32.mrf.mxu0
        %v4307 = vpop.f32.mrf.mxu0
        %v4308 = vadd.f32 0.0, %v4307
        %v4309 = vpop.f32.mrf.mxu0
        %4310 = vmatprep.mubr.bf16.mxu0 0
        %4311 = vmatmul.mubr.bf16.gmra.mxu0 %v4199
        %v4312 = vpop.f32.mrf.mxu0
        %v4313 = vadd.f32 0.0, %v4312
        %v4314 = vpop.f32.mrf.mxu0
        %v4315 = vpop.f32.mrf.mxu0
        %v4316 = vadd.f32 0.0, %v4315
        %v4317 = vpop.f32.mrf.mxu0
        %4318 = vmatprep.mubr.bf16.mxu0 0
        %4319 = vmatmul.mubr.bf16.gmra.mxu0 %v4200
        %v4320 = vpop.f32.mrf.mxu0
        %v4321 = vadd.f32 0.0, %v4320
        %v4322 = vpop.f32.mrf.mxu0
        %v4323 = vpop.f32.mrf.mxu0
        %v4324 = vadd.f32 0.0, %v4323
        %v4325 = vpop.f32.mrf.mxu0
        %4326 = vmatprep.mubr.bf16.mxu0 0
        %4327 = vmatmul.mubr.bf16.gmra.mxu0 %v4201
        %v4328 = vpop.f32.mrf.mxu0
        %v4329 = vadd.f32 0.0, %v4328
        %v4330 = vpop.f32.mrf.mxu0
        %v4331 = vpop.f32.mrf.mxu0
        %v4332 = vadd.f32 0.0, %v4331
        %v4333 = vpop.f32.mrf.mxu0
        %4334 = vmatprep.mubr.bf16.mxu0 0
        %4335 = vmatmul.mubr.bf16.gmra.mxu0 %v4202
        %v4336 = vpop.f32.mrf.mxu0
        %v4337 = vadd.f32 0.0, %v4336
        %v4338 = vpop.f32.mrf.mxu0
        %v4339 = vpop.f32.mrf.mxu0
        %v4340 = vadd.f32 0.0, %v4339
        %v4341 = vpop.f32.mrf.mxu0
        %4342 = vmatprep.mubr.bf16.mxu0 0
        %4343 = vmatmul.mubr.bf16.gmra.mxu0 %v4203
        %v4344 = vpop.f32.mrf.mxu0
        %v4345 = vadd.f32 0.0, %v4344
        %v4346 = vpop.f32.mrf.mxu0
        %v4347 = vpop.f32.mrf.mxu0
        %v4348 = vadd.f32 0.0, %v4347
        %v4349 = vpop.f32.mrf.mxu0
        %4350 = vmatprep.mubr.bf16.mxu0 0
        %4351 = vmatmul.mubr.bf16.gmra.mxu0 %v4204
        %v4352 = vpop.f32.mrf.mxu0
        %v4353 = vadd.f32 0.0, %v4352
        %v4354 = vpop.f32.mrf.mxu0
        %v4355 = vpop.f32.mrf.mxu0
        %v4356 = vadd.f32 0.0, %v4355
        %v4357 = vpop.f32.mrf.mxu0
        %4358 = vmatprep.mubr.bf16.mxu0 0
        %4359 = vmatmul.mubr.bf16.gmra.mxu0 %v4205
        %v4360 = vpop.f32.mrf.mxu0
        %v4361 = vadd.f32 0.0, %v4360
        %v4362 = vpop.f32.mrf.mxu0
        %v4363 = vpop.f32.mrf.mxu0
        %v4364 = vadd.f32 0.0, %v4363
        %v4365 = vpop.f32.mrf.mxu0
        %4366 = vdwg.mxu0
        %v4367 = vadd.f32 %v767, %v4305
        %v4368 = vadd.f32 %v771, %v4308
        %v4369 = vadd.f32 %v777, %v4313
        %v4370 = vadd.f32 %v781, %v4316
        %v4371 = vadd.f32 %v787, %v4321
        %v4372 = vadd.f32 %v791, %v4324
        %v4373 = vadd.f32 %v797, %v4329
        %v4374 = vadd.f32 %v801, %v4332
        %v4375 = vadd.f32 %v807, %v4337
        %v4376 = vadd.f32 %v811, %v4340
        %v4377 = vadd.f32 %v817, %v4345
        %v4378 = vadd.f32 %v821, %v4348
        %v4379 = vadd.f32 %v827, %v4353
        %v4380 = vadd.f32 %v831, %v4356
        %v4381 = vadd.f32 %v837, %v4361
        %v4382 = vadd.f32 %v841, %v4364
        %v4383 = vlaneseq
        %v4384 = vshrl.u32 %v4383, 7
        %v4385 = vsub.s32 0, %v4384
        %v4386 = vrot.slane %v612, %v4385
        %v4387 = vadd.f32 %v4367, %v4386
        %v4388 = vadd.f32 %v4368, %v4386
        %v4389 = vadd.f32 %v4369, %v4386
        %v4390 = vadd.f32 %v4370, %v4386
        %v4391 = vadd.f32 %v4371, %v4386
        %v4392 = vadd.f32 %v4372, %v4386
        %v4393 = vadd.f32 %v4373, %v4386
        %v4394 = vadd.f32 %v4374, %v4386
        %v4395 = vadd.f32 %v4375, %v4386
        %v4396 = vadd.f32 %v4376, %v4386
        %v4397 = vadd.f32 %v4377, %v4386
        %v4398 = vadd.f32 %v4378, %v4386
        %v4399 = vadd.f32 %v4379, %v4386
        %v4400 = vadd.f32 %v4380, %v4386
        %v4401 = vadd.f32 %v4381, %v4386
        %v4402 = vadd.f32 %v4382, %v4386
        %v4403 = vmax.f32 %v4387, 0.0
        %v4404 = vmax.f32 %v4388, 0.0
        %v4405 = vmax.f32 %v4389, 0.0
        %v4406 = vmax.f32 %v4390, 0.0
        %v4407 = vmax.f32 %v4391, 0.0
        %v4408 = vmax.f32 %v4392, 0.0
        %v4409 = vmax.f32 %v4393, 0.0
        %v4410 = vmax.f32 %v4394, 0.0
        %v4411 = vmax.f32 %v4395, 0.0
        %v4412 = vmax.f32 %v4396, 0.0
        %v4413 = vmax.f32 %v4397, 0.0
        %v4414 = vmax.f32 %v4398, 0.0
        %v4415 = vmax.f32 %v4399, 0.0
        %v4416 = vmax.f32 %v4400, 0.0
        %v4417 = vmax.f32 %v4401, 0.0
        %v4418 = vmax.f32 %v4402, 0.0
        %4419 = vadd.xlane.f32.xlu0 %v4403
        %v4420 = vpop.xlane.xlu0 %4419
        %4421 = vadd.xlane.f32.xlu0 %v4404
        %v4422 = vpop.xlane.xlu0 %4421
        %4423 = vadd.xlane.f32.xlu0 %v4405
        %v4424 = vpop.xlane.xlu0 %4423
        %4425 = vadd.xlane.f32.xlu0 %v4406
        %v4426 = vpop.xlane.xlu0 %4425
        %4427 = vadd.xlane.f32.xlu0 %v4407
        %v4428 = vpop.xlane.xlu0 %4427
        %4429 = vadd.xlane.f32.xlu0 %v4408
        %v4430 = vpop.xlane.xlu0 %4429
        %4431 = vadd.xlane.f32.xlu0 %v4409
        %v4432 = vpop.xlane.xlu0 %4431
        %4433 = vadd.xlane.f32.xlu0 %v4410
        %v4434 = vpop.xlane.xlu0 %4433
        %4435 = vadd.xlane.f32.xlu0 %v4411
        %v4436 = vpop.xlane.xlu0 %4435
        %4437 = vadd.xlane.f32.xlu0 %v4412
        %v4438 = vpop.xlane.xlu0 %4437
        %4439 = vadd.xlane.f32.xlu0 %v4413
        %v4440 = vpop.xlane.xlu0 %4439
        %4441 = vadd.xlane.f32.xlu0 %v4414
        %v4442 = vpop.xlane.xlu0 %4441
        %4443 = vadd.xlane.f32.xlu0 %v4415
        %v4444 = vpop.xlane.xlu0 %4443
        %4445 = vadd.xlane.f32.xlu0 %v4416
        %v4446 = vpop.xlane.xlu0 %4445
        %4447 = vadd.xlane.f32.xlu0 %v4417
        %v4448 = vpop.xlane.xlu0 %4447
        %4449 = vadd.xlane.f32.xlu0 %v4418
        %v4450 = vpop.xlane.xlu0 %4449
        %v4451 = vrcp.pop 128.0
        %v4452 = vmul.f32 %v4420, %v4451
        %v4453 = vmul.f32 %v4422, %v4451
        %v4454 = vmul.f32 %v4424, %v4451
        %v4455 = vmul.f32 %v4426, %v4451
        %v4456 = vmul.f32 %v4428, %v4451
        %v4457 = vmul.f32 %v4430, %v4451
        %v4458 = vmul.f32 %v4432, %v4451
        %v4459 = vmul.f32 %v4434, %v4451
        %v4460 = vmul.f32 %v4436, %v4451
        %v4461 = vmul.f32 %v4438, %v4451
        %v4462 = vmul.f32 %v4440, %v4451
        %v4463 = vmul.f32 %v4442, %v4451
        %v4464 = vmul.f32 %v4444, %v4451
        %v4465 = vmul.f32 %v4446, %v4451
        %v4466 = vmul.f32 %v4448, %v4451
        %v4467 = vmul.f32 %v4450, %v4451
        %v4468 = vsub.f32 %v4403, %v4452
        %v4469 = vsub.f32 %v4404, %v4453
        %v4470 = vsub.f32 %v4405, %v4454
        %v4471 = vsub.f32 %v4406, %v4455
        %v4472 = vsub.f32 %v4407, %v4456
        %v4473 = vsub.f32 %v4408, %v4457
        %v4474 = vsub.f32 %v4409, %v4458
        %v4475 = vsub.f32 %v4410, %v4459
        %v4476 = vsub.f32 %v4411, %v4460
        %v4477 = vsub.f32 %v4412, %v4461
        %v4478 = vsub.f32 %v4413, %v4462
        %v4479 = vsub.f32 %v4414, %v4463
        %v4480 = vsub.f32 %v4415, %v4464
        %v4481 = vsub.f32 %v4416, %v4465
        %v4482 = vsub.f32 %v4417, %v4466
        %v4483 = vsub.f32 %v4418, %v4467
        %v4484 = vmul.f32 %v4468, %v4468
        %v4485 = vmul.f32 %v4469, %v4469
        %v4486 = vmul.f32 %v4470, %v4470
        %v4487 = vmul.f32 %v4471, %v4471
        %v4488 = vmul.f32 %v4472, %v4472
        %v4489 = vmul.f32 %v4473, %v4473
        %v4490 = vmul.f32 %v4474, %v4474
        %v4491 = vmul.f32 %v4475, %v4475
        %v4492 = vmul.f32 %v4476, %v4476
        %v4493 = vmul.f32 %v4477, %v4477
        %v4494 = vmul.f32 %v4478, %v4478
        %v4495 = vmul.f32 %v4479, %v4479
        %v4496 = vmul.f32 %v4480, %v4480
        %v4497 = vmul.f32 %v4481, %v4481
        %v4498 = vmul.f32 %v4482, %v4482
        %v4499 = vmul.f32 %v4483, %v4483
        %4500 = vadd.xlane.f32.xlu0 %v4484
        %v4501 = vpop.xlane.xlu0 %4500
        %4502 = vadd.xlane.f32.xlu0 %v4485
        %v4503 = vpop.xlane.xlu0 %4502
        %4504 = vadd.xlane.f32.xlu0 %v4486
        %v4505 = vpop.xlane.xlu0 %4504
        %4506 = vadd.xlane.f32.xlu0 %v4487
        %v4507 = vpop.xlane.xlu0 %4506
        %4508 = vadd.xlane.f32.xlu0 %v4488
        %v4509 = vpop.xlane.xlu0 %4508
        %4510 = vadd.xlane.f32.xlu0 %v4489
        %v4511 = vpop.xlane.xlu0 %4510
        %4512 = vadd.xlane.f32.xlu0 %v4490
        %v4513 = vpop.xlane.xlu0 %4512
        %4514 = vadd.xlane.f32.xlu0 %v4491
        %v4515 = vpop.xlane.xlu0 %4514
        %4516 = vadd.xlane.f32.xlu0 %v4492
        %v4517 = vpop.xlane.xlu0 %4516
        %4518 = vadd.xlane.f32.xlu0 %v4493
        %v4519 = vpop.xlane.xlu0 %4518
        %4520 = vadd.xlane.f32.xlu0 %v4494
        %v4521 = vpop.xlane.xlu0 %4520
        %4522 = vadd.xlane.f32.xlu0 %v4495
        %v4523 = vpop.xlane.xlu0 %4522
        %4524 = vadd.xlane.f32.xlu0 %v4496
        %v4525 = vpop.xlane.xlu0 %4524
        %4526 = vadd.xlane.f32.xlu0 %v4497
        %v4527 = vpop.xlane.xlu0 %4526
        %4528 = vadd.xlane.f32.xlu0 %v4498
        %v4529 = vpop.xlane.xlu0 %4528
        %4530 = vadd.xlane.f32.xlu0 %v4499
        %v4531 = vpop.xlane.xlu0 %4530
        %v4532 = vmul.f32 %v4501, %v4451
        %v4533 = vmul.f32 %v4503, %v4451
        %v4534 = vmul.f32 %v4505, %v4451
        %v4535 = vmul.f32 %v4507, %v4451
        %v4536 = vmul.f32 %v4509, %v4451
        %v4537 = vmul.f32 %v4511, %v4451
        %v4538 = vmul.f32 %v4513, %v4451
        %v4539 = vmul.f32 %v4515, %v4451
        %v4540 = vmul.f32 %v4517, %v4451
        %v4541 = vmul.f32 %v4519, %v4451
        %v4542 = vmul.f32 %v4521, %v4451
        %v4543 = vmul.f32 %v4523, %v4451
        %v4544 = vmul.f32 %v4525, %v4451
        %v4545 = vmul.f32 %v4527, %v4451
        %v4546 = vmul.f32 %v4529, %v4451
        %v4547 = vmul.f32 %v4531, %v4451
        %v4548 = vadd.f32 %v4532, 1e-05
        %v4549 = vadd.f32 %v4533, 1e-05
        %v4550 = vadd.f32 %v4534, 1e-05
        %v4551 = vadd.f32 %v4535, 1e-05
        %v4552 = vadd.f32 %v4536, 1e-05
        %v4553 = vadd.f32 %v4537, 1e-05
        %v4554 = vadd.f32 %v4538, 1e-05
        %v4555 = vadd.f32 %v4539, 1e-05
        %v4556 = vadd.f32 %v4540, 1e-05
        %v4557 = vadd.f32 %v4541, 1e-05
        %v4558 = vadd.f32 %v4542, 1e-05
        %v4559 = vadd.f32 %v4543, 1e-05
        %v4560 = vadd.f32 %v4544, 1e-05
        %v4561 = vadd.f32 %v4545, 1e-05
        %v4562 = vadd.f32 %v4546, 1e-05
        %v4563 = vadd.f32 %v4547, 1e-05
        %v4564 = vrsqrt.pop %v4548
        %v4565 = vrsqrt.pop %v4549
        %v4566 = vrsqrt.pop %v4550
        %v4567 = vrsqrt.pop %v4551
        %v4568 = vrsqrt.pop %v4552
        %v4569 = vrsqrt.pop %v4553
        %v4570 = vrsqrt.pop %v4554
        %v4571 = vrsqrt.pop %v4555
        %v4572 = vrsqrt.pop %v4556
        %v4573 = vrsqrt.pop %v4557
        %v4574 = vrsqrt.pop %v4558
        %v4575 = vrsqrt.pop %v4559
        %v4576 = vrsqrt.pop %v4560
        %v4577 = vrsqrt.pop %v4561
        %v4578 = vrsqrt.pop %v4562
        %v4579 = vrsqrt.pop %v4563
        %v4580 = vmul.f32 %v4468, %v4564
        %v4581 = vmul.f32 %v4469, %v4565
        %v4582 = vmul.f32 %v4470, %v4566
        %v4583 = vmul.f32 %v4471, %v4567
        %v4584 = vmul.f32 %v4472, %v4568
        %v4585 = vmul.f32 %v4473, %v4569
        %v4586 = vmul.f32 %v4474, %v4570
        %v4587 = vmul.f32 %v4475, %v4571
        %v4588 = vmul.f32 %v4476, %v4572
        %v4589 = vmul.f32 %v4477, %v4573
        %v4590 = vmul.f32 %v4478, %v4574
        %v4591 = vmul.f32 %v4479, %v4575
        %v4592 = vmul.f32 %v4480, %v4576
        %v4593 = vmul.f32 %v4481, %v4577
        %v4594 = vmul.f32 %v4482, %v4578
        %v4595 = vmul.f32 %v4483, %v4579
        %v4596 = vlaneseq
        %v4597 = vshrl.u32 %v4596, 7
        %v4598 = vsub.s32 0, %v4597
        %v4599 = vrot.slane %v613, %v4598
        %v4600 = vmul.f32 %v4580, %v4599
        %v4601 = vmul.f32 %v4581, %v4599
        %v4602 = vmul.f32 %v4582, %v4599
        %v4603 = vmul.f32 %v4583, %v4599
        %v4604 = vmul.f32 %v4584, %v4599
        %v4605 = vmul.f32 %v4585, %v4599
        %v4606 = vmul.f32 %v4586, %v4599
        %v4607 = vmul.f32 %v4587, %v4599
        %v4608 = vmul.f32 %v4588, %v4599
        %v4609 = vmul.f32 %v4589, %v4599
        %v4610 = vmul.f32 %v4590, %v4599
        %v4611 = vmul.f32 %v4591, %v4599
        %v4612 = vmul.f32 %v4592, %v4599
        %v4613 = vmul.f32 %v4593, %v4599
        %v4614 = vmul.f32 %v4594, %v4599
        %v4615 = vmul.f32 %v4595, %v4599
        %v4616 = vlaneseq
        %v4617 = vshrl.u32 %v4616, 7
        %v4618 = vsub.s32 0, %v4617
        %v4619 = vrot.slane %v614, %v4618
        %v4620 = vadd.f32 %v4600, %v4619
        %v4621 = vadd.f32 %v4601, %v4619
        %v4622 = vadd.f32 %v4602, %v4619
        %v4623 = vadd.f32 %v4603, %v4619
        %v4624 = vadd.f32 %v4604, %v4619
        %v4625 = vadd.f32 %v4605, %v4619
        %v4626 = vadd.f32 %v4606, %v4619
        %v4627 = vadd.f32 %v4607, %v4619
        %v4628 = vadd.f32 %v4608, %v4619
        %v4629 = vadd.f32 %v4609, %v4619
        %v4630 = vadd.f32 %v4610, %v4619
        %v4631 = vadd.f32 %v4611, %v4619
        %v4632 = vadd.f32 %v4612, %v4619
        %v4633 = vadd.f32 %v4613, %v4619
        %v4634 = vadd.f32 %v4614, %v4619
        %v4635 = vadd.f32 %v4615, %v4619
        %v4636 = vmax.f32 %v4620, 0.0
        %v4637 = vmax.f32 %v4621, 0.0
        %v4638 = vmax.f32 %v4622, 0.0
        %v4639 = vmax.f32 %v4623, 0.0
        %v4640 = vmax.f32 %v4624, 0.0
        %v4641 = vmax.f32 %v4625, 0.0
        %v4642 = vmax.f32 %v4626, 0.0
        %v4643 = vmax.f32 %v4627, 0.0
        %v4644 = vmax.f32 %v4628, 0.0
        %v4645 = vmax.f32 %v4629, 0.0
        %v4646 = vmax.f32 %v4630, 0.0
        %v4647 = vmax.f32 %v4631, 0.0
        %v4648 = vmax.f32 %v4632, 0.0
        %v4649 = vmax.f32 %v4633, 0.0
        %v4650 = vmax.f32 %v4634, 0.0
        %v4651 = vmax.f32 %v4635, 0.0
        %v4652 = vld [vmem:[%s605] sm:$0xf]
        %v4653 = vpack.c.bf16 %v4637, %v4636
        %v4654 = vpack.c.bf16 %v4639, %v4638
        %v4655 = vpack.c.bf16 %v4641, %v4640
        %v4656 = vpack.c.bf16 %v4643, %v4642
        %v4657 = vpack.c.bf16 %v4645, %v4644
        %v4658 = vpack.c.bf16 %v4647, %v4646
        %v4659 = vpack.c.bf16 %v4649, %v4648
        %v4660 = vpack.c.bf16 %v4651, %v4650
        %4661 = vmatprep.subr.bf16.mxu0 0
        %4662 = vmatpush1.bf16.msra.mxu0 %v4660
        %4663 = vmatprep.subr.bf16.mxu0 0
        %4664 = vmatpush1.bf16.msra.mxu0 %v4659
        %4665 = vmatprep.subr.bf16.mxu0 0
        %4666 = vmatpush1.bf16.msra.mxu0 %v4658
        %4667 = vmatprep.subr.bf16.mxu0 0
        %4668 = vmatpush1.bf16.msra.mxu0 %v4657
        %4669 = vmatprep.subr.bf16.mxu0 0
        %4670 = vmatpush1.bf16.msra.mxu0 %v4656
        %4671 = vmatprep.subr.bf16.mxu0 0
        %4672 = vmatpush1.bf16.msra.mxu0 %v4655
        %4673 = vmatprep.subr.bf16.mxu0 0
        %4674 = vmatpush1.bf16.msra.mxu0 %v4654
        %4675 = vmatprep.subr.bf16.mxu0 0
        %4676 = vmatpush1.bf16.msra.mxu0 %v4653
        %4677 = vmatprep.subr.bf16.mxu0 0
        %4678 = vmatpush2.bf16.msra.mxu0 0
        %4679 = vmatprep.subr.bf16.mxu0 0
        %4680 = vmatpush2.bf16.msra.mxu0 0
        %4681 = vmatprep.subr.bf16.mxu0 0
        %4682 = vmatpush2.bf16.msra.mxu0 0
        %4683 = vmatprep.subr.bf16.mxu0 0
        %4684 = vmatpush2.bf16.msra.mxu0 0
        %4685 = vmatprep.subr.bf16.mxu0 0
        %4686 = vmatpush2.bf16.msra.mxu0 0
        %4687 = vmatprep.subr.bf16.mxu0 0
        %4688 = vmatpush2.bf16.msra.mxu0 0
        %4689 = vmatprep.subr.bf16.mxu0 0
        %4690 = vmatpush2.bf16.msra.mxu0 0
        %4691 = vmatprep.subr.bf16.mxu0 0
        %4692 = vmatpush2.bf16.msra.mxu0 0
        %4693 = vmatprep.mubr.bf16.mxu0 0
        %4694 = vmatmul.mubr.bf16.gmra.mxu0 %v4652
        %v4695 = vpop.f32.mrf.mxu0
        %v4696 = vadd.f32 0.0, %v4695
        %v4697 = vpop.f32.mrf.mxu0
        %v4698 = vpop.f32.mrf.mxu0
        %v4699 = vpop.f32.mrf.mxu0
        %4700 = vdwg.mxu0
        %v4701 = vld [vmem:[%s609] sm:$0xff]
        %4703 = vset.pattern.permute.xlu0 0
        %4704 = vperm.xlu0 %4703, %v4701
        %v4705 = vpop.permute.xlu0 %4704
        %v4707 = vrcp.pop %v4705
        %v4708 = vmul.f32 %v4696, %v4707
        %v4709 = vpack.c.bf16 %v4708, %v4708
        %v4710 = vld [vmem:[#allocation6] sm:$0xf]
        %v4711 = vld [vmem:[#allocation6 + $0x4] sm:$0xf]
        %v4712 = vld [vmem:[#allocation6 + $0x8] sm:$0xf]
        %v4713 = vld [vmem:[#allocation6 + $0xc] sm:$0xf]
        %v4714 = vld [vmem:[#allocation6 + $0x10] sm:$0xf]
        %v4715 = vld [vmem:[#allocation6 + $0x14] sm:$0xf]
        %v4716 = vld [vmem:[#allocation6 + $0x18] sm:$0xf]
        %v4717 = vld [vmem:[#allocation6 + $0x1c] sm:$0xf]
        %v4718 = vld [vmem:[#allocation6 + $0x20] sm:$0xf]
        %v4719 = vld [vmem:[#allocation6 + $0x24] sm:$0xf]
        %v4720 = vld [vmem:[#allocation6 + $0x28] sm:$0xf]
        %v4721 = vld [vmem:[#allocation6 + $0x2c] sm:$0xf]
        %v4722 = vld [vmem:[#allocation6 + $0x30] sm:$0xf]
        %v4723 = vld [vmem:[#allocation6 + $0x34] sm:$0xf]
        %v4724 = vld [vmem:[#allocation6 + $0x38] sm:$0xf]
        %v4725 = vld [vmem:[#allocation6 + $0x3c] sm:$0xf]
        %v4742 = vunpack.c.l.b16 %v4710
        %v4743 = vunpack.c.l.b16 %v4711
        %v4744 = vunpack.c.l.b16 %v4712
        %v4745 = vunpack.c.l.b16 %v4713
        %v4746 = vunpack.c.l.b16 %v4714
        %v4747 = vunpack.c.l.b16 %v4715
        %v4748 = vunpack.c.l.b16 %v4716
        %v4749 = vunpack.c.l.b16 %v4717
        %v4750 = vunpack.c.l.b16 %v4718
        %v4751 = vunpack.c.l.b16 %v4719
        %v4752 = vunpack.c.l.b16 %v4720
        %v4753 = vunpack.c.l.b16 %v4721
        %v4754 = vunpack.c.l.b16 %v4722
        %v4755 = vunpack.c.l.b16 %v4723
        %v4756 = vunpack.c.l.b16 %v4724
        %v4757 = vunpack.c.l.b16 %v4725
        %v4758 = vpack.c.b16 %v4743, %v4742
        %v4759 = vpack.c.b16 %v4745, %v4744
        %v4760 = vpack.c.b16 %v4747, %v4746
        %v4761 = vpack.c.b16 %v4749, %v4748
        %v4762 = vpack.c.b16 %v4751, %v4750
        %v4763 = vpack.c.b16 %v4753, %v4752
        %v4764 = vpack.c.b16 %v4755, %v4754
        %v4765 = vpack.c.b16 %v4757, %v4756
        %4774 = vmatprep.subr.bf16.mxu0 0
        %4775 = vmatpush1.bf16.msra.mxu0 %v4765
        %4776 = vmatprep.subr.bf16.mxu0 0
        %4777 = vmatpush1.bf16.msra.mxu0 %v4764
        %4778 = vmatprep.subr.bf16.mxu0 0
        %4779 = vmatpush1.bf16.msra.mxu0 %v4763
        %4780 = vmatprep.subr.bf16.mxu0 0
        %4781 = vmatpush1.bf16.msra.mxu0 %v4762
        %4782 = vmatprep.subr.bf16.mxu0 0
        %4783 = vmatpush1.bf16.msra.mxu0 %v4761
        %4784 = vmatprep.subr.bf16.mxu0 0
        %4785 = vmatpush1.bf16.msra.mxu0 %v4760
        %4786 = vmatprep.subr.bf16.mxu0 0
        %4787 = vmatpush1.bf16.msra.mxu0 %v4759
        %4788 = vmatprep.subr.bf16.mxu0 0
        %4789 = vmatpush1.bf16.msra.mxu0 %v4758
        %4790 = vmatprep.subr.bf16.mxu0 0
        %4791 = vmatpush2.bf16.msra.mxu0 0
        %4792 = vmatprep.subr.bf16.mxu0 0
        %4793 = vmatpush2.bf16.msra.mxu0 0
        %4794 = vmatprep.subr.bf16.mxu0 0
        %4795 = vmatpush2.bf16.msra.mxu0 0
        %4796 = vmatprep.subr.bf16.mxu0 0
        %4797 = vmatpush2.bf16.msra.mxu0 0
        %4798 = vmatprep.subr.bf16.mxu0 0
        %4799 = vmatpush2.bf16.msra.mxu0 0
        %4800 = vmatprep.subr.bf16.mxu0 0
        %4801 = vmatpush2.bf16.msra.mxu0 0
        %4802 = vmatprep.subr.bf16.mxu0 0
        %4803 = vmatpush2.bf16.msra.mxu0 0
        %4804 = vmatprep.subr.bf16.mxu0 0
        %4805 = vmatpush2.bf16.msra.mxu0 0
        %4806 = vmatprep.mubr.bf16.mxu0 0
        %4807 = vmatmul.mubr.bf16.gmra.mxu0 %v4709
        %v4808 = vpop.f32.mrf.mxu0
        %v4809 = vadd.f32 0.0, %v4808
        %v4810 = vpop.f32.mrf.mxu0
        %v4811 = vpop.f32.mrf.mxu0
        %v4812 = vpop.f32.mrf.mxu0
        %4813 = vdwg.mxu0
        %4814 = vst [vmem:[%s576] sm:$0xff] %v4809
        %s4815 = sand.u32 %s367, 1
        %s4816 = scalar_lea.sflag [#allocation5], %s4815
        %s4817 = sand.u32 %s367, 1
        %s4818 = smul.addr %s4817, 8
        %s4819 = scalar_lea.vmem [#allocation8], %s4818
        // Predicated region
        $region85: #{tpu_custom_call.1} parent=75 // pred_check
          %p4820 = pneg %p377
        $region86: #{tpu_custom_call.1} parent=75 // pred_check_branch
          %4822 = sbr.rel (%p4820) target = $region88
        $region87: #{tpu_custom_call.1} parent=75 // pred_region
          %s4824 = ssub.s32 128, 128
          %4825 = vsyncadd %s4816, %s4824
          %s4826 = smul.addr %s30, 128
          %s4827 = scalar_lea.hbm %s14, %s4826
          %s4829 = sshll.u32 %s4819, 4
          %s4830 = int_to_ptr.vmem [resolvable:$true] %s4829
          %4832 = dma.vmem_to_hbm [thread:$0]  %s4830, 128, %s4827, %s4816
        $region88: #{tpu_custom_call.1} parent=75 // pred_fallthru
          _
      $region76: #{tpu_custom_call.1} parent=5 // pred_fallthru
        _
      %p4833 = scmp.le.s32.totalorder 2, %s25
      // Predicated region
      $region89: #{tpu_custom_call.1} parent=5 // pred_check
        %p4834 = pneg %p4833
      $region90: #{tpu_custom_call.1} parent=5 // pred_check_branch
        %4836 = sbr.rel (%p4834) target = $region92
      $region91: #{tpu_custom_call.1} parent=5 // pred_region
        %s4837 = ssub.s32 %s25, 2
        // Predicated region
        $region93: #{tpu_custom_call.1} parent=91 // pred_check
          %p4838 = pneg %p383
        $region94: #{tpu_custom_call.1} parent=91 // pred_check_branch
          %4840 = sbr.rel (%p4838) target = $region96
        $region95: #{tpu_custom_call.1} parent=91 // pred_region
          %s4841 = sand.u32 %s368, 1
          %s4842 = scalar_lea.sflag [#allocation5], %s4841
          %s4843 = sand.u32 %s368, 1
          %s4844 = smul.addr %s4843, 8
          %s4845 = scalar_lea.vmem [#allocation8], %s4844
          %4846 = dma.done %s4842, 128
        $region96: #{tpu_custom_call.1} parent=91 // pred_fallthru
          _
      $region92: #{tpu_custom_call.1} parent=5 // pred_fallthru
        _
    $region6: #{tpu_custom_call.1} parent=1 // loop_footer
      %s29 = sadd.s32 1, %s25
    $region7: #{tpu_custom_call.1} parent=1 // loop_footer_branch
      %24 = sbr.rel target = $region3
    $region8: #{tpu_custom_call.1} parent=1 // loop_exit
      _
    %4847 = vsyncpa [#allocation4], 1
    %s4848 = scalar_lea.sflag [#allocation4], 1
    %4849 = vsyncpa %s4848, 1
    %4850 = vsyncpa [#allocation7], 1
    %4851 = vsyncpa [#allocation5], 1
    %s4852 = scalar_lea.sflag [#allocation5], 1
    %4853 = vsyncpa %s4852, 1

</llo_original>
